<compile_context>
chip_gen: v5e
topology: v5e:2x2
jax: 0.10.0
libtpu: 0.0.40
codegen_flags: <defaults>
</compile_context>

<pallas_src>
import numpy as np
import jax
import jax.numpy as jnp
from jax.experimental import pallas as pl
from jax.experimental.pallas import tpu as pltpu


def rnade_kernel(x_t_ref, w_ref, c_ref, b_t_ref, v_t_ref, out_ref):
    """One batch (lane) tile; full autoregressive loop over d in-kernel.

    Transposed ("batch on lanes") layout:
      x_t_ref: (D, TN)     inputs, batch tile on the 128-lane axis
      w_ref:   (H, D)      W
      c_ref:   (H, 1)      hidden bias
      b_t_ref: (3C, D)     [b_pi | b_mu | b_sigma]^T per dimension
      v_t_ref: (D, 3C, H)  [V_pi | V_mu | V_sigma]^T per dim (lane-dense in H)
      out_ref: (1, TN)     per-example log-likelihood (written once)
    """
    D, TN = x_t_ref.shape
    H = w_ref.shape[0]
    C = b_t_ref.shape[0] // 3
    inv_sqrt_2pi = jnp.float32(1.0 / np.sqrt(2.0 * np.pi))

    # Loop-carried values (no scratch refs): hidden pre-activation and the
    # running log-prob accumulator for this batch tile.
    a0 = jnp.broadcast_to(c_ref[...], (H, TN))          # a = c
    acc0 = jnp.zeros((1, TN), jnp.float32)

    def step(d, carry):
        a, acc = carry
        h = jnp.maximum(a, 0.0)                          # (H, TN) ReLU

        # Fused pi/mu/sigma projection: one MXU push, result lane-dense in
        # the batch dimension.
        z = b_t_ref[:, pl.ds(d, 1)] + jnp.dot(
            v_t_ref[d], h, preferred_element_type=jnp.float32)   # (3C, TN)
        z_pi = z[0:C, :]
        mu = z[C:2 * C, :]
        z_sigma = z[2 * C:3 * C, :]

        # Softmax over mixture components (sublane axis, lanes stay dense).
        # EUP approx reciprocal + one Newton step avoids the VALU divide.
        z_max = jnp.max(z_pi, axis=0, keepdims=True)     # (1, TN)
        e = jnp.exp(z_pi - z_max)                        # (C, TN)
        denom = jnp.sum(e, axis=0, keepdims=True)        # (1, TN)
        r = pl.reciprocal(denom, approx=True)
        r = r * (2.0 - denom * r)                        # Newton refinement
        pi = e * r                                       # (C, TN)

        # 1/sigma computed directly (no divide): inv_sigma = exp(-z_sigma).
        inv_sigma = jnp.exp(-z_sigma)                    # (C, TN)
        x_d = x_t_ref[pl.ds(d, 1), :]                    # (1, TN) sublane row
        t = (x_d - mu) * inv_sigma
        gauss = (inv_sqrt_2pi * inv_sigma) * jnp.exp(-0.5 * t * t)   # (C, TN)
        p_cond = jnp.sum(pi * gauss, axis=0, keepdims=True)          # (1, TN)
        acc = acc + jnp.log(p_cond + 1e-10)

        # Input-only autoregressive recurrence (depends on x and W only);
        # with the loop unrolled the scheduler can overlap it with this
        # step's epilogue and start the next step's matmul early.
        a = a + w_ref[:, pl.ds(d, 1)] * x_d              # (H,1)*(1,TN)
        return a, acc

    if D <= 64:
        carry = (a0, acc0)
        for d in range(D):                               # full unroll
            carry = step(d, carry)
    else:
        carry = jax.lax.fori_loop(0, D, step, (a0, acc0), unroll=8)

    out_ref[...] = carry[1]                              # single lane-dense store


def _pad_to(v, m):
    return ((v + m - 1) // m) * m


def _pick_lane_tile(n_pad):
    """Lane (batch) tile: multiple of 128, <=512, >=2 tiles when possible."""
    if n_pad <= 128:
        return n_pad
    for t in (512, 256, 128):
        if n_pad % t == 0 and n_pad // t >= 2:
            return t
    return 128


def _vmem_bytes_estimate(D, H, C, TN):
    """Rough resident-VMEM estimate (with (8,128) tile padding)."""
    pad_l = lambda v: _pad_to(v, 128)
    pad_s = lambda v: _pad_to(v, 8)
    est = 0
    est += 2 * pad_s(D) * pad_l(TN) * 4            # x tile (double-buffered)
    est += 2 * pad_s(1) * pad_l(TN) * 4            # out tile
    est += 2 * pad_s(H) * pad_l(D) * 4             # W
    est += 2 * pad_s(H) * pad_l(1) * 4             # c
    est += 2 * pad_s(3 * C) * pad_l(D) * 4         # b_all^T
    est += 2 * D * pad_s(3 * C) * pad_l(H) * 4     # V_all^T (dominant term)
    est += 2 * pad_s(H) * pad_l(TN) * 4            # carried `a` + working set
    return int(est)


def rnade_forward(x, W, c, b_pi, V_pi, b_mu, V_mu, b_sigma, V_sigma):
    """x: [N, D]; W: [H, D]; c: [H]; b_*: [D, C]; V_*: [D, H, C] -> [N]."""
    N, D = x.shape
    H = W.shape[0]
    C = b_pi.shape[1]

    x = jnp.asarray(x, jnp.float32)
    W = jnp.asarray(W, jnp.float32)                                  # (H, D)
    c2 = jnp.asarray(c, jnp.float32).reshape(H, 1)                   # (H, 1)
    b_t = jnp.concatenate([b_pi, b_mu, b_sigma],
                          axis=1).astype(jnp.float32).T              # (3C, D)
    v_all = jnp.concatenate([V_pi, V_mu, V_sigma],
                            axis=2).astype(jnp.float32)              # (D, H, 3C)
    v_t = jnp.transpose(v_all, (0, 2, 1))                            # (D, 3C, H)

    # Batch goes on the lane axis: pad N up to a multiple of 128.
    n_pad = _pad_to(max(N, 1), 128)
    x_t = jnp.zeros((D, n_pad), jnp.float32).at[:, :N].set(x.T)      # (D, Npad)

    TN = _pick_lane_tile(n_pad)
    nb = n_pad // TN
    vmem_limit = int(min(64 * 2**20,
                         max(32 * 2**20, 2 * _vmem_bytes_estimate(D, H, C, TN))))

    imap2 = lambda i: (0, 0)
    imap3 = lambda i: (0, 0, 0)

    def _build(single_buffer_params):
        def const_spec(shape):
            imap = imap2 if len(shape) == 2 else imap3
            if single_buffer_params:
                # Params never change across grid steps -> single buffer.
                return pl.BlockSpec(shape, imap, pipeline_mode=pl.Buffered(1))
            return pl.BlockSpec(shape, imap)

        grid_spec = pltpu.PrefetchScalarGridSpec(
            num_scalar_prefetch=0,
            grid=(nb,),                                   # batch (lane) tiles
            in_specs=[
                pl.BlockSpec((D, TN), lambda i: (0, i)),  # x^T tile
                const_spec((H, D)),                       # W       (resident)
                const_spec((H, 1)),                       # c       (resident)
                const_spec((3 * C, D)),                   # b_all^T (resident)
                const_spec((D, 3 * C, H)),                # V_all^T (resident)
            ],
            out_specs=pl.BlockSpec((1, TN), lambda i: (0, i)),
        )
        return pl.pallas_call(
            rnade_kernel,
            out_shape=jax.ShapeDtypeStruct((1, n_pad), jnp.float32),
            grid_spec=grid_spec,
            compiler_params=pltpu.CompilerParams(
                dimension_semantics=("parallel",),        # megacore-shardable
                vmem_limit_bytes=vmem_limit),
        )

    try:
        out_t = _build(True)(x_t, W, c2, b_t, v_t)
    except Exception:
        # Fallback if this JAX build rejects pl.Buffered(1) on pallas_call specs.
        out_t = _build(False)(x_t, W, c2, b_t, v_t)
    return out_t[0, :N]


def rnade_ref(x, W, c, b_pi, V_pi, b_mu, V_mu, b_sigma, V_sigma):
    """Pure-JAX reference mirroring the PyTorch forward exactly."""
    N, D = x.shape
    H = W.shape[0]
    a = jnp.broadcast_to(c[None, :], (N, H))
    lp = jnp.zeros((N,), jnp.float32)
    for d in range(D):
        h = jax.nn.relu(a)
        pi = jax.nn.softmax(b_pi[d] + h @ V_pi[d], axis=1)
        mu = b_mu[d] + h @ V_mu[d]
        sigma = jnp.exp(b_sigma[d] + h @ V_sigma[d])
        x_d = x[:, d:d + 1]
        gauss = (1.0 / (jnp.sqrt(2.0 * jnp.pi) * sigma)) * \
            jnp.exp(-0.5 * ((x_d - mu) / sigma) ** 2)
        p = jnp.sum(pi * gauss, axis=1)
        lp = lp + jnp.log(p + 1e-10)
        a = a + x_d * W[:, d][None, :]
    return lp


if __name__ == "__main__":
    # Small shapes consistent with the module: [N, D] input.
    N, D, H, C = 8, 8, 32, 4

    key = jax.random.PRNGKey(0)
    kx, kw, kpi, kmu, ksig = jax.random.split(key, 5)

    x = jax.random.normal(kx, (N, D), dtype=jnp.float32)

    # Deterministic parameter init matching the PyTorch __init__ shapes.
    W = 0.01 * jax.random.normal(kw, (H, D), dtype=jnp.float32)
    c = jnp.zeros((H,), jnp.float32)
    b_pi = jnp.zeros((D, C), jnp.float32)
    V_pi = 0.01 * jax.random.normal(kpi, (D, H, C), dtype=jnp.float32)
    b_mu = jnp.zeros((D, C), jnp.float32)
    V_mu = 0.01 * jax.random.normal(kmu, (D, H, C), dtype=jnp.float32)
    b_sigma = jnp.zeros((D, C), jnp.float32)
    V_sigma = 0.01 * jax.random.normal(ksig, (D, H, C), dtype=jnp.float32)

    out = rnade_forward(x, W, c, b_pi, V_pi, b_mu, V_mu, b_sigma, V_sigma)
    out = jax.block_until_ready(out)

    ref = rnade_ref(x, W, c, b_pi, V_pi, b_mu, V_mu, b_sigma, V_sigma)
    np.testing.assert_allclose(np.asarray(out), np.asarray(ref),
                               rtol=5e-4, atol=5e-4)

    print("KERNEL_OK")
</pallas_src>

<mosaic_0001>
module attributes {stable_mosaic.version = 11 : i64} {
  func.func @rnade_kernel(%arg0: i32, %arg1: memref<8x128xf32, #tpu.memory_space<vmem>>, %arg2: memref<32x8xf32, #tpu.memory_space<vmem>>, %arg3: memref<32x1xf32, #tpu.memory_space<vmem>>, %arg4: memref<12x8xf32, #tpu.memory_space<vmem>>, %arg5: memref<8x12x32xf32, #tpu.memory_space<vmem>>, %arg6: memref<1x128xf32, #tpu.memory_space<vmem>>) attributes {dimension_semantics = [#tpu.dimension_semantics<parallel>], iteration_bounds = array<i64: 1>, scalar_prefetch = 0 : i64, scratch_operands = 0 : i64, tpu.core_type = #tpu.core_type<tc>, window_params = [{transform_indices = @transform_0, window_bounds = array<i64: 8, 128>}, {pipeline_mode = #tpu.pipeline_mode<synchronous>, transform_indices = @transform_1, window_bounds = array<i64: 32, 8>}, {pipeline_mode = #tpu.pipeline_mode<synchronous>, transform_indices = @transform_2, window_bounds = array<i64: 32, 1>}, {pipeline_mode = #tpu.pipeline_mode<synchronous>, transform_indices = @transform_3, window_bounds = array<i64: 12, 8>}, {pipeline_mode = #tpu.pipeline_mode<synchronous>, transform_indices = @transform_4, window_bounds = array<i64: 8, 12, 32>}, {transform_indices = @transform_5, window_bounds = array<i64: 1, 128>}]} {
    %c0 = arith.constant 0 : index
    %c0_0 = arith.constant 0 : index
    %0 = vector.load %arg3[%c0, %c0_0] : memref<32x1xf32, #tpu.memory_space<vmem>>, vector<32x1xf32>
    %1 = vector.shape_cast %0 : vector<32x1xf32> to vector<32x1xf32>
    %2 = vector.broadcast %1 : vector<32x1xf32> to vector<32x128xf32>
    %cst = arith.constant 0.000000e+00 : f32
    %3 = vector.broadcast %cst : f32 to vector<1x128xf32>
    %cst_1 = arith.constant 0.000000e+00 : f32
    %4 = vector.broadcast %cst_1 : f32 to vector<32x128xf32>
    %5 = arith.maximumf %2, %4 : vector<32x128xf32>
    %c0_2 = arith.constant 0 : index
    %c0_3 = arith.constant 0 : index
    %6 = vector.load %arg4[%c0_2, %c0_3] : memref<12x8xf32, #tpu.memory_space<vmem>>, vector<12x1xf32>
    %c0_4 = arith.constant 0 : index
    %c0_5 = arith.constant 0 : index
    %c0_6 = arith.constant 0 : index
    %7 = vector.load %arg5[%c0_4, %c0_5, %c0_6] : memref<8x12x32xf32, #tpu.memory_space<vmem>>, vector<1x12x32xf32>
    %8 = vector.shape_cast %7 : vector<1x12x32xf32> to vector<12x32xf32>
    %cst_7 = arith.constant dense<0.000000e+00> : vector<12x128xf32>
    %9 = tpu.matmul %8, %5, %cst_7 {dimension_numbers = #tpu.dot_dimension_numbers<[1], [0], [0], [1], [0, 0, 1, 1], [], []>} : vector<12x32xf32>, vector<32x128xf32>, vector<12x128xf32> -> vector<12x128xf32>
    %10 = vector.broadcast %6 : vector<12x1xf32> to vector<12x128xf32>
    %11 = arith.addf %10, %9 : vector<12x128xf32>
    %12 = vector.extract_strided_slice %11 {offsets = [0, 0], sizes = [4, 128], strides = [1, 1]} : vector<12x128xf32> to vector<4x128xf32>
    %13 = vector.extract_strided_slice %11 {offsets = [4, 0], sizes = [4, 128], strides = [1, 1]} : vector<12x128xf32> to vector<4x128xf32>
    %14 = vector.extract_strided_slice %11 {offsets = [8, 0], sizes = [4, 128], strides = [1, 1]} : vector<12x128xf32> to vector<4x128xf32>
    %cst_8 = arith.constant dense<0xFF800000> : vector<128xf32>
    %15 = vector.multi_reduction <maximumf>, %12, %cst_8 [0] : vector<4x128xf32> to vector<128xf32>
    %16 = vector.shape_cast %15 : vector<128xf32> to vector<1x128xf32>
    %17 = vector.broadcast %16 : vector<1x128xf32> to vector<4x128xf32>
    %18 = arith.subf %12, %17 : vector<4x128xf32>
    %19 = math.exp %18 : vector<4x128xf32>
    %cst_9 = arith.constant dense<0.000000e+00> : vector<128xf32>
    %20 = vector.multi_reduction <add>, %19, %cst_9 [0] : vector<4x128xf32> to vector<128xf32>
    %21 = vector.shape_cast %20 : vector<128xf32> to vector<1x128xf32>
    %22 = tpu.reciprocal %21 {approx = true} : vector<1x128xf32> -> vector<1x128xf32>
    %23 = arith.mulf %21, %22 : vector<1x128xf32>
    %cst_10 = arith.constant 2.000000e+00 : f32
    %24 = vector.broadcast %cst_10 : f32 to vector<1x128xf32>
    %25 = arith.subf %24, %23 : vector<1x128xf32>
    %26 = arith.mulf %22, %25 : vector<1x128xf32>
    %27 = vector.broadcast %26 : vector<1x128xf32> to vector<4x128xf32>
    %28 = arith.mulf %19, %27 : vector<4x128xf32>
    %cst_11 = arith.constant 0.000000e+00 : f32
    %29 = vector.broadcast %cst_11 : f32 to vector<4x128xf32>
    %30 = arith.subf %29, %14 : vector<4x128xf32>
    %31 = math.exp %30 : vector<4x128xf32>
    %c0_12 = arith.constant 0 : index
    %c0_13 = arith.constant 0 : index
    %32 = vector.load %arg1[%c0_12, %c0_13] : memref<8x128xf32, #tpu.memory_space<vmem>>, vector<1x128xf32>
    %33 = vector.broadcast %32 : vector<1x128xf32> to vector<4x128xf32>
    %34 = arith.subf %33, %13 : vector<4x128xf32>
    %35 = arith.mulf %34, %31 : vector<4x128xf32>
    %cst_14 = arith.constant 0.398942292 : f32
    %36 = vector.broadcast %cst_14 : f32 to vector<4x128xf32>
    %37 = arith.mulf %36, %31 : vector<4x128xf32>
    %cst_15 = arith.constant -5.000000e-01 : f32
    %38 = vector.broadcast %cst_15 : f32 to vector<4x128xf32>
    %39 = arith.mulf %38, %35 : vector<4x128xf32>
    %40 = arith.mulf %39, %35 : vector<4x128xf32>
    %41 = math.exp %40 : vector<4x128xf32>
    %42 = arith.mulf %37, %41 : vector<4x128xf32>
    %43 = arith.mulf %28, %42 : vector<4x128xf32>
    %cst_16 = arith.constant dense<0.000000e+00> : vector<128xf32>
    %44 = vector.multi_reduction <add>, %43, %cst_16 [0] : vector<4x128xf32> to vector<128xf32>
    %45 = vector.shape_cast %44 : vector<128xf32> to vector<1x128xf32>
    %cst_17 = arith.constant 1.000000e-10 : f32
    %46 = vector.broadcast %cst_17 : f32 to vector<1x128xf32>
    %47 = arith.addf %45, %46 : vector<1x128xf32>
    %48 = math.log %47 : vector<1x128xf32>
    %49 = arith.addf %3, %48 : vector<1x128xf32>
    %c0_18 = arith.constant 0 : index
    %c0_19 = arith.constant 0 : index
    %50 = vector.load %arg2[%c0_18, %c0_19] : memref<32x8xf32, #tpu.memory_space<vmem>>, vector<32x1xf32>
    %51 = vector.broadcast %50 : vector<32x1xf32> to vector<32x128xf32>
    %52 = vector.broadcast %32 : vector<1x128xf32> to vector<32x128xf32>
    %53 = arith.mulf %51, %52 : vector<32x128xf32>
    %54 = arith.addf %2, %53 : vector<32x128xf32>
    %cst_20 = arith.constant 0.000000e+00 : f32
    %55 = vector.broadcast %cst_20 : f32 to vector<32x128xf32>
    %56 = arith.maximumf %54, %55 : vector<32x128xf32>
    %c0_21 = arith.constant 0 : index
    %c1 = arith.constant 1 : index
    %57 = vector.load %arg4[%c0_21, %c1] : memref<12x8xf32, #tpu.memory_space<vmem>>, vector<12x1xf32>
    %c1_22 = arith.constant 1 : index
    %c0_23 = arith.constant 0 : index
    %c0_24 = arith.constant 0 : index
    %58 = vector.load %arg5[%c1_22, %c0_23, %c0_24] : memref<8x12x32xf32, #tpu.memory_space<vmem>>, vector<1x12x32xf32>
    %59 = vector.shape_cast %58 : vector<1x12x32xf32> to vector<12x32xf32>
    %cst_25 = arith.constant dense<0.000000e+00> : vector<12x128xf32>
    %60 = tpu.matmul %59, %56, %cst_25 {dimension_numbers = #tpu.dot_dimension_numbers<[1], [0], [0], [1], [0, 0, 1, 1], [], []>} : vector<12x32xf32>, vector<32x128xf32>, vector<12x128xf32> -> vector<12x128xf32>
    %61 = vector.broadcast %57 : vector<12x1xf32> to vector<12x128xf32>
    %62 = arith.addf %61, %60 : vector<12x128xf32>
    %63 = vector.extract_strided_slice %62 {offsets = [0, 0], sizes = [4, 128], strides = [1, 1]} : vector<12x128xf32> to vector<4x128xf32>
    %64 = vector.extract_strided_slice %62 {offsets = [4, 0], sizes = [4, 128], strides = [1, 1]} : vector<12x128xf32> to vector<4x128xf32>
    %65 = vector.extract_strided_slice %62 {offsets = [8, 0], sizes = [4, 128], strides = [1, 1]} : vector<12x128xf32> to vector<4x128xf32>
    %cst_26 = arith.constant dense<0xFF800000> : vector<128xf32>
    %66 = vector.multi_reduction <maximumf>, %63, %cst_26 [0] : vector<4x128xf32> to vector<128xf32>
    %67 = vector.shape_cast %66 : vector<128xf32> to vector<1x128xf32>
    %68 = vector.broadcast %67 : vector<1x128xf32> to vector<4x128xf32>
    %69 = arith.subf %63, %68 : vector<4x128xf32>
    %70 = math.exp %69 : vector<4x128xf32>
    %cst_27 = arith.constant dense<0.000000e+00> : vector<128xf32>
    %71 = vector.multi_reduction <add>, %70, %cst_27 [0] : vector<4x128xf32> to vector<128xf32>
    %72 = vector.shape_cast %71 : vector<128xf32> to vector<1x128xf32>
    %73 = tpu.reciprocal %72 {approx = true} : vector<1x128xf32> -> vector<1x128xf32>
    %74 = arith.mulf %72, %73 : vector<1x128xf32>
    %cst_28 = arith.constant 2.000000e+00 : f32
    %75 = vector.broadcast %cst_28 : f32 to vector<1x128xf32>
    %76 = arith.subf %75, %74 : vector<1x128xf32>
    %77 = arith.mulf %73, %76 : vector<1x128xf32>
    %78 = vector.broadcast %77 : vector<1x128xf32> to vector<4x128xf32>
    %79 = arith.mulf %70, %78 : vector<4x128xf32>
    %cst_29 = arith.constant 0.000000e+00 : f32
    %80 = vector.broadcast %cst_29 : f32 to vector<4x128xf32>
    %81 = arith.subf %80, %65 : vector<4x128xf32>
    %82 = math.exp %81 : vector<4x128xf32>
    %c1_30 = arith.constant 1 : index
    %c0_31 = arith.constant 0 : index
    %83 = vector.load %arg1[%c1_30, %c0_31] : memref<8x128xf32, #tpu.memory_space<vmem>>, vector<1x128xf32>
    %84 = vector.broadcast %83 : vector<1x128xf32> to vector<4x128xf32>
    %85 = arith.subf %84, %64 : vector<4x128xf32>
    %86 = arith.mulf %85, %82 : vector<4x128xf32>
    %cst_32 = arith.constant 0.398942292 : f32
    %87 = vector.broadcast %cst_32 : f32 to vector<4x128xf32>
    %88 = arith.mulf %87, %82 : vector<4x128xf32>
    %cst_33 = arith.constant -5.000000e-01 : f32
    %89 = vector.broadcast %cst_33 : f32 to vector<4x128xf32>
    %90 = arith.mulf %89, %86 : vector<4x128xf32>
    %91 = arith.mulf %90, %86 : vector<4x128xf32>
    %92 = math.exp %91 : vector<4x128xf32>
    %93 = arith.mulf %88, %92 : vector<4x128xf32>
    %94 = arith.mulf %79, %93 : vector<4x128xf32>
    %cst_34 = arith.constant dense<0.000000e+00> : vector<128xf32>
    %95 = vector.multi_reduction <add>, %94, %cst_34 [0] : vector<4x128xf32> to vector<128xf32>
    %96 = vector.shape_cast %95 : vector<128xf32> to vector<1x128xf32>
    %cst_35 = arith.constant 1.000000e-10 : f32
    %97 = vector.broadcast %cst_35 : f32 to vector<1x128xf32>
    %98 = arith.addf %96, %97 : vector<1x128xf32>
    %99 = math.log %98 : vector<1x128xf32>
    %100 = arith.addf %49, %99 : vector<1x128xf32>
    %c0_36 = arith.constant 0 : index
    %c1_37 = arith.constant 1 : index
    %101 = vector.load %arg2[%c0_36, %c1_37] : memref<32x8xf32, #tpu.memory_space<vmem>>, vector<32x1xf32>
    %102 = vector.broadcast %101 : vector<32x1xf32> to vector<32x128xf32>
    %103 = vector.broadcast %83 : vector<1x128xf32> to vector<32x128xf32>
    %104 = arith.mulf %102, %103 : vector<32x128xf32>
    %105 = arith.addf %54, %104 : vector<32x128xf32>
    %cst_38 = arith.constant 0.000000e+00 : f32
    %106 = vector.broadcast %cst_38 : f32 to vector<32x128xf32>
    %107 = arith.maximumf %105, %106 : vector<32x128xf32>
    %c0_39 = arith.constant 0 : index
    %c2 = arith.constant 2 : index
    %108 = vector.load %arg4[%c0_39, %c2] : memref<12x8xf32, #tpu.memory_space<vmem>>, vector<12x1xf32>
    %c2_40 = arith.constant 2 : index
    %c0_41 = arith.constant 0 : index
    %c0_42 = arith.constant 0 : index
    %109 = vector.load %arg5[%c2_40, %c0_41, %c0_42] : memref<8x12x32xf32, #tpu.memory_space<vmem>>, vector<1x12x32xf32>
    %110 = vector.shape_cast %109 : vector<1x12x32xf32> to vector<12x32xf32>
    %cst_43 = arith.constant dense<0.000000e+00> : vector<12x128xf32>
    %111 = tpu.matmul %110, %107, %cst_43 {dimension_numbers = #tpu.dot_dimension_numbers<[1], [0], [0], [1], [0, 0, 1, 1], [], []>} : vector<12x32xf32>, vector<32x128xf32>, vector<12x128xf32> -> vector<12x128xf32>
    %112 = vector.broadcast %108 : vector<12x1xf32> to vector<12x128xf32>
    %113 = arith.addf %112, %111 : vector<12x128xf32>
    %114 = vector.extract_strided_slice %113 {offsets = [0, 0], sizes = [4, 128], strides = [1, 1]} : vector<12x128xf32> to vector<4x128xf32>
    %115 = vector.extract_strided_slice %113 {offsets = [4, 0], sizes = [4, 128], strides = [1, 1]} : vector<12x128xf32> to vector<4x128xf32>
    %116 = vector.extract_strided_slice %113 {offsets = [8, 0], sizes = [4, 128], strides = [1, 1]} : vector<12x128xf32> to vector<4x128xf32>
    %cst_44 = arith.constant dense<0xFF800000> : vector<128xf32>
    %117 = vector.multi_reduction <maximumf>, %114, %cst_44 [0] : vector<4x128xf32> to vector<128xf32>
    %118 = vector.shape_cast %117 : vector<128xf32> to vector<1x128xf32>
    %119 = vector.broadcast %118 : vector<1x128xf32> to vector<4x128xf32>
    %120 = arith.subf %114, %119 : vector<4x128xf32>
    %121 = math.exp %120 : vector<4x128xf32>
    %cst_45 = arith.constant dense<0.000000e+00> : vector<128xf32>
    %122 = vector.multi_reduction <add>, %121, %cst_45 [0] : vector<4x128xf32> to vector<128xf32>
    %123 = vector.shape_cast %122 : vector<128xf32> to vector<1x128xf32>
    %124 = tpu.reciprocal %123 {approx = true} : vector<1x128xf32> -> vector<1x128xf32>
    %125 = arith.mulf %123, %124 : vector<1x128xf32>
    %cst_46 = arith.constant 2.000000e+00 : f32
    %126 = vector.broadcast %cst_46 : f32 to vector<1x128xf32>
    %127 = arith.subf %126, %125 : vector<1x128xf32>
    %128 = arith.mulf %124, %127 : vector<1x128xf32>
    %129 = vector.broadcast %128 : vector<1x128xf32> to vector<4x128xf32>
    %130 = arith.mulf %121, %129 : vector<4x128xf32>
    %cst_47 = arith.constant 0.000000e+00 : f32
    %131 = vector.broadcast %cst_47 : f32 to vector<4x128xf32>
    %132 = arith.subf %131, %116 : vector<4x128xf32>
    %133 = math.exp %132 : vector<4x128xf32>
    %c2_48 = arith.constant 2 : index
    %c0_49 = arith.constant 0 : index
    %134 = vector.load %arg1[%c2_48, %c0_49] : memref<8x128xf32, #tpu.memory_space<vmem>>, vector<1x128xf32>
    %135 = vector.broadcast %134 : vector<1x128xf32> to vector<4x128xf32>
    %136 = arith.subf %135, %115 : vector<4x128xf32>
    %137 = arith.mulf %136, %133 : vector<4x128xf32>
    %cst_50 = arith.constant 0.398942292 : f32
    %138 = vector.broadcast %cst_50 : f32 to vector<4x128xf32>
    %139 = arith.mulf %138, %133 : vector<4x128xf32>
    %cst_51 = arith.constant -5.000000e-01 : f32
    %140 = vector.broadcast %cst_51 : f32 to vector<4x128xf32>
    %141 = arith.mulf %140, %137 : vector<4x128xf32>
    %142 = arith.mulf %141, %137 : vector<4x128xf32>
    %143 = math.exp %142 : vector<4x128xf32>
    %144 = arith.mulf %139, %143 : vector<4x128xf32>
    %145 = arith.mulf %130, %144 : vector<4x128xf32>
    %cst_52 = arith.constant dense<0.000000e+00> : vector<128xf32>
    %146 = vector.multi_reduction <add>, %145, %cst_52 [0] : vector<4x128xf32> to vector<128xf32>
    %147 = vector.shape_cast %146 : vector<128xf32> to vector<1x128xf32>
    %cst_53 = arith.constant 1.000000e-10 : f32
    %148 = vector.broadcast %cst_53 : f32 to vector<1x128xf32>
    %149 = arith.addf %147, %148 : vector<1x128xf32>
    %150 = math.log %149 : vector<1x128xf32>
    %151 = arith.addf %100, %150 : vector<1x128xf32>
    %c0_54 = arith.constant 0 : index
    %c2_55 = arith.constant 2 : index
    %152 = vector.load %arg2[%c0_54, %c2_55] : memref<32x8xf32, #tpu.memory_space<vmem>>, vector<32x1xf32>
    %153 = vector.broadcast %152 : vector<32x1xf32> to vector<32x128xf32>
    %154 = vector.broadcast %134 : vector<1x128xf32> to vector<32x128xf32>
    %155 = arith.mulf %153, %154 : vector<32x128xf32>
    %156 = arith.addf %105, %155 : vector<32x128xf32>
    %cst_56 = arith.constant 0.000000e+00 : f32
    %157 = vector.broadcast %cst_56 : f32 to vector<32x128xf32>
    %158 = arith.maximumf %156, %157 : vector<32x128xf32>
    %c0_57 = arith.constant 0 : index
    %c3 = arith.constant 3 : index
    %159 = vector.load %arg4[%c0_57, %c3] : memref<12x8xf32, #tpu.memory_space<vmem>>, vector<12x1xf32>
    %c3_58 = arith.constant 3 : index
    %c0_59 = arith.constant 0 : index
    %c0_60 = arith.constant 0 : index
    %160 = vector.load %arg5[%c3_58, %c0_59, %c0_60] : memref<8x12x32xf32, #tpu.memory_space<vmem>>, vector<1x12x32xf32>
    %161 = vector.shape_cast %160 : vector<1x12x32xf32> to vector<12x32xf32>
    %cst_61 = arith.constant dense<0.000000e+00> : vector<12x128xf32>
    %162 = tpu.matmul %161, %158, %cst_61 {dimension_numbers = #tpu.dot_dimension_numbers<[1], [0], [0], [1], [0, 0, 1, 1], [], []>} : vector<12x32xf32>, vector<32x128xf32>, vector<12x128xf32> -> vector<12x128xf32>
    %163 = vector.broadcast %159 : vector<12x1xf32> to vector<12x128xf32>
    %164 = arith.addf %163, %162 : vector<12x128xf32>
    %165 = vector.extract_strided_slice %164 {offsets = [0, 0], sizes = [4, 128], strides = [1, 1]} : vector<12x128xf32> to vector<4x128xf32>
    %166 = vector.extract_strided_slice %164 {offsets = [4, 0], sizes = [4, 128], strides = [1, 1]} : vector<12x128xf32> to vector<4x128xf32>
    %167 = vector.extract_strided_slice %164 {offsets = [8, 0], sizes = [4, 128], strides = [1, 1]} : vector<12x128xf32> to vector<4x128xf32>
    %cst_62 = arith.constant dense<0xFF800000> : vector<128xf32>
    %168 = vector.multi_reduction <maximumf>, %165, %cst_62 [0] : vector<4x128xf32> to vector<128xf32>
    %169 = vector.shape_cast %168 : vector<128xf32> to vector<1x128xf32>
    %170 = vector.broadcast %169 : vector<1x128xf32> to vector<4x128xf32>
    %171 = arith.subf %165, %170 : vector<4x128xf32>
    %172 = math.exp %171 : vector<4x128xf32>
    %cst_63 = arith.constant dense<0.000000e+00> : vector<128xf32>
    %173 = vector.multi_reduction <add>, %172, %cst_63 [0] : vector<4x128xf32> to vector<128xf32>
    %174 = vector.shape_cast %173 : vector<128xf32> to vector<1x128xf32>
    %175 = tpu.reciprocal %174 {approx = true} : vector<1x128xf32> -> vector<1x128xf32>
    %176 = arith.mulf %174, %175 : vector<1x128xf32>
    %cst_64 = arith.constant 2.000000e+00 : f32
    %177 = vector.broadcast %cst_64 : f32 to vector<1x128xf32>
    %178 = arith.subf %177, %176 : vector<1x128xf32>
    %179 = arith.mulf %175, %178 : vector<1x128xf32>
    %180 = vector.broadcast %179 : vector<1x128xf32> to vector<4x128xf32>
    %181 = arith.mulf %172, %180 : vector<4x128xf32>
    %cst_65 = arith.constant 0.000000e+00 : f32
    %182 = vector.broadcast %cst_65 : f32 to vector<4x128xf32>
    %183 = arith.subf %182, %167 : vector<4x128xf32>
    %184 = math.exp %183 : vector<4x128xf32>
    %c3_66 = arith.constant 3 : index
    %c0_67 = arith.constant 0 : index
    %185 = vector.load %arg1[%c3_66, %c0_67] : memref<8x128xf32, #tpu.memory_space<vmem>>, vector<1x128xf32>
    %186 = vector.broadcast %185 : vector<1x128xf32> to vector<4x128xf32>
    %187 = arith.subf %186, %166 : vector<4x128xf32>
    %188 = arith.mulf %187, %184 : vector<4x128xf32>
    %cst_68 = arith.constant 0.398942292 : f32
    %189 = vector.broadcast %cst_68 : f32 to vector<4x128xf32>
    %190 = arith.mulf %189, %184 : vector<4x128xf32>
    %cst_69 = arith.constant -5.000000e-01 : f32
    %191 = vector.broadcast %cst_69 : f32 to vector<4x128xf32>
    %192 = arith.mulf %191, %188 : vector<4x128xf32>
    %193 = arith.mulf %192, %188 : vector<4x128xf32>
    %194 = math.exp %193 : vector<4x128xf32>
    %195 = arith.mulf %190, %194 : vector<4x128xf32>
    %196 = arith.mulf %181, %195 : vector<4x128xf32>
    %cst_70 = arith.constant dense<0.000000e+00> : vector<128xf32>
    %197 = vector.multi_reduction <add>, %196, %cst_70 [0] : vector<4x128xf32> to vector<128xf32>
    %198 = vector.shape_cast %197 : vector<128xf32> to vector<1x128xf32>
    %cst_71 = arith.constant 1.000000e-10 : f32
    %199 = vector.broadcast %cst_71 : f32 to vector<1x128xf32>
    %200 = arith.addf %198, %199 : vector<1x128xf32>
    %201 = math.log %200 : vector<1x128xf32>
    %202 = arith.addf %151, %201 : vector<1x128xf32>
    %c0_72 = arith.constant 0 : index
    %c3_73 = arith.constant 3 : index
    %203 = vector.load %arg2[%c0_72, %c3_73] : memref<32x8xf32, #tpu.memory_space<vmem>>, vector<32x1xf32>
    %204 = vector.broadcast %203 : vector<32x1xf32> to vector<32x128xf32>
    %205 = vector.broadcast %185 : vector<1x128xf32> to vector<32x128xf32>
    %206 = arith.mulf %204, %205 : vector<32x128xf32>
    %207 = arith.addf %156, %206 : vector<32x128xf32>
    %cst_74 = arith.constant 0.000000e+00 : f32
    %208 = vector.broadcast %cst_74 : f32 to vector<32x128xf32>
    %209 = arith.maximumf %207, %208 : vector<32x128xf32>
    %c0_75 = arith.constant 0 : index
    %c4 = arith.constant 4 : index
    %210 = vector.load %arg4[%c0_75, %c4] : memref<12x8xf32, #tpu.memory_space<vmem>>, vector<12x1xf32>
    %c4_76 = arith.constant 4 : index
    %c0_77 = arith.constant 0 : index
    %c0_78 = arith.constant 0 : index
    %211 = vector.load %arg5[%c4_76, %c0_77, %c0_78] : memref<8x12x32xf32, #tpu.memory_space<vmem>>, vector<1x12x32xf32>
    %212 = vector.shape_cast %211 : vector<1x12x32xf32> to vector<12x32xf32>
    %cst_79 = arith.constant dense<0.000000e+00> : vector<12x128xf32>
    %213 = tpu.matmul %212, %209, %cst_79 {dimension_numbers = #tpu.dot_dimension_numbers<[1], [0], [0], [1], [0, 0, 1, 1], [], []>} : vector<12x32xf32>, vector<32x128xf32>, vector<12x128xf32> -> vector<12x128xf32>
    %214 = vector.broadcast %210 : vector<12x1xf32> to vector<12x128xf32>
    %215 = arith.addf %214, %213 : vector<12x128xf32>
    %216 = vector.extract_strided_slice %215 {offsets = [0, 0], sizes = [4, 128], strides = [1, 1]} : vector<12x128xf32> to vector<4x128xf32>
    %217 = vector.extract_strided_slice %215 {offsets = [4, 0], sizes = [4, 128], strides = [1, 1]} : vector<12x128xf32> to vector<4x128xf32>
    %218 = vector.extract_strided_slice %215 {offsets = [8, 0], sizes = [4, 128], strides = [1, 1]} : vector<12x128xf32> to vector<4x128xf32>
    %cst_80 = arith.constant dense<0xFF800000> : vector<128xf32>
    %219 = vector.multi_reduction <maximumf>, %216, %cst_80 [0] : vector<4x128xf32> to vector<128xf32>
    %220 = vector.shape_cast %219 : vector<128xf32> to vector<1x128xf32>
    %221 = vector.broadcast %220 : vector<1x128xf32> to vector<4x128xf32>
    %222 = arith.subf %216, %221 : vector<4x128xf32>
    %223 = math.exp %222 : vector<4x128xf32>
    %cst_81 = arith.constant dense<0.000000e+00> : vector<128xf32>
    %224 = vector.multi_reduction <add>, %223, %cst_81 [0] : vector<4x128xf32> to vector<128xf32>
    %225 = vector.shape_cast %224 : vector<128xf32> to vector<1x128xf32>
    %226 = tpu.reciprocal %225 {approx = true} : vector<1x128xf32> -> vector<1x128xf32>
    %227 = arith.mulf %225, %226 : vector<1x128xf32>
    %cst_82 = arith.constant 2.000000e+00 : f32
    %228 = vector.broadcast %cst_82 : f32 to vector<1x128xf32>
    %229 = arith.subf %228, %227 : vector<1x128xf32>
    %230 = arith.mulf %226, %229 : vector<1x128xf32>
    %231 = vector.broadcast %230 : vector<1x128xf32> to vector<4x128xf32>
    %232 = arith.mulf %223, %231 : vector<4x128xf32>
    %cst_83 = arith.constant 0.000000e+00 : f32
    %233 = vector.broadcast %cst_83 : f32 to vector<4x128xf32>
    %234 = arith.subf %233, %218 : vector<4x128xf32>
    %235 = math.exp %234 : vector<4x128xf32>
    %c4_84 = arith.constant 4 : index
    %c0_85 = arith.constant 0 : index
    %236 = vector.load %arg1[%c4_84, %c0_85] : memref<8x128xf32, #tpu.memory_space<vmem>>, vector<1x128xf32>
    %237 = vector.broadcast %236 : vector<1x128xf32> to vector<4x128xf32>
    %238 = arith.subf %237, %217 : vector<4x128xf32>
    %239 = arith.mulf %238, %235 : vector<4x128xf32>
    %cst_86 = arith.constant 0.398942292 : f32
    %240 = vector.broadcast %cst_86 : f32 to vector<4x128xf32>
    %241 = arith.mulf %240, %235 : vector<4x128xf32>
    %cst_87 = arith.constant -5.000000e-01 : f32
    %242 = vector.broadcast %cst_87 : f32 to vector<4x128xf32>
    %243 = arith.mulf %242, %239 : vector<4x128xf32>
    %244 = arith.mulf %243, %239 : vector<4x128xf32>
    %245 = math.exp %244 : vector<4x128xf32>
    %246 = arith.mulf %241, %245 : vector<4x128xf32>
    %247 = arith.mulf %232, %246 : vector<4x128xf32>
    %cst_88 = arith.constant dense<0.000000e+00> : vector<128xf32>
    %248 = vector.multi_reduction <add>, %247, %cst_88 [0] : vector<4x128xf32> to vector<128xf32>
    %249 = vector.shape_cast %248 : vector<128xf32> to vector<1x128xf32>
    %cst_89 = arith.constant 1.000000e-10 : f32
    %250 = vector.broadcast %cst_89 : f32 to vector<1x128xf32>
    %251 = arith.addf %249, %250 : vector<1x128xf32>
    %252 = math.log %251 : vector<1x128xf32>
    %253 = arith.addf %202, %252 : vector<1x128xf32>
    %c0_90 = arith.constant 0 : index
    %c4_91 = arith.constant 4 : index
    %254 = vector.load %arg2[%c0_90, %c4_91] : memref<32x8xf32, #tpu.memory_space<vmem>>, vector<32x1xf32>
    %255 = vector.broadcast %254 : vector<32x1xf32> to vector<32x128xf32>
    %256 = vector.broadcast %236 : vector<1x128xf32> to vector<32x128xf32>
    %257 = arith.mulf %255, %256 : vector<32x128xf32>
    %258 = arith.addf %207, %257 : vector<32x128xf32>
    %cst_92 = arith.constant 0.000000e+00 : f32
    %259 = vector.broadcast %cst_92 : f32 to vector<32x128xf32>
    %260 = arith.maximumf %258, %259 : vector<32x128xf32>
    %c0_93 = arith.constant 0 : index
    %c5 = arith.constant 5 : index
    %261 = vector.load %arg4[%c0_93, %c5] : memref<12x8xf32, #tpu.memory_space<vmem>>, vector<12x1xf32>
    %c5_94 = arith.constant 5 : index
    %c0_95 = arith.constant 0 : index
    %c0_96 = arith.constant 0 : index
    %262 = vector.load %arg5[%c5_94, %c0_95, %c0_96] : memref<8x12x32xf32, #tpu.memory_space<vmem>>, vector<1x12x32xf32>
    %263 = vector.shape_cast %262 : vector<1x12x32xf32> to vector<12x32xf32>
    %cst_97 = arith.constant dense<0.000000e+00> : vector<12x128xf32>
    %264 = tpu.matmul %263, %260, %cst_97 {dimension_numbers = #tpu.dot_dimension_numbers<[1], [0], [0], [1], [0, 0, 1, 1], [], []>} : vector<12x32xf32>, vector<32x128xf32>, vector<12x128xf32> -> vector<12x128xf32>
    %265 = vector.broadcast %261 : vector<12x1xf32> to vector<12x128xf32>
    %266 = arith.addf %265, %264 : vector<12x128xf32>
    %267 = vector.extract_strided_slice %266 {offsets = [0, 0], sizes = [4, 128], strides = [1, 1]} : vector<12x128xf32> to vector<4x128xf32>
    %268 = vector.extract_strided_slice %266 {offsets = [4, 0], sizes = [4, 128], strides = [1, 1]} : vector<12x128xf32> to vector<4x128xf32>
    %269 = vector.extract_strided_slice %266 {offsets = [8, 0], sizes = [4, 128], strides = [1, 1]} : vector<12x128xf32> to vector<4x128xf32>
    %cst_98 = arith.constant dense<0xFF800000> : vector<128xf32>
    %270 = vector.multi_reduction <maximumf>, %267, %cst_98 [0] : vector<4x128xf32> to vector<128xf32>
    %271 = vector.shape_cast %270 : vector<128xf32> to vector<1x128xf32>
    %272 = vector.broadcast %271 : vector<1x128xf32> to vector<4x128xf32>
    %273 = arith.subf %267, %272 : vector<4x128xf32>
    %274 = math.exp %273 : vector<4x128xf32>
    %cst_99 = arith.constant dense<0.000000e+00> : vector<128xf32>
    %275 = vector.multi_reduction <add>, %274, %cst_99 [0] : vector<4x128xf32> to vector<128xf32>
    %276 = vector.shape_cast %275 : vector<128xf32> to vector<1x128xf32>
    %277 = tpu.reciprocal %276 {approx = true} : vector<1x128xf32> -> vector<1x128xf32>
    %278 = arith.mulf %276, %277 : vector<1x128xf32>
    %cst_100 = arith.constant 2.000000e+00 : f32
    %279 = vector.broadcast %cst_100 : f32 to vector<1x128xf32>
    %280 = arith.subf %279, %278 : vector<1x128xf32>
    %281 = arith.mulf %277, %280 : vector<1x128xf32>
    %282 = vector.broadcast %281 : vector<1x128xf32> to vector<4x128xf32>
    %283 = arith.mulf %274, %282 : vector<4x128xf32>
    %cst_101 = arith.constant 0.000000e+00 : f32
    %284 = vector.broadcast %cst_101 : f32 to vector<4x128xf32>
    %285 = arith.subf %284, %269 : vector<4x128xf32>
    %286 = math.exp %285 : vector<4x128xf32>
    %c5_102 = arith.constant 5 : index
    %c0_103 = arith.constant 0 : index
    %287 = vector.load %arg1[%c5_102, %c0_103] : memref<8x128xf32, #tpu.memory_space<vmem>>, vector<1x128xf32>
    %288 = vector.broadcast %287 : vector<1x128xf32> to vector<4x128xf32>
    %289 = arith.subf %288, %268 : vector<4x128xf32>
    %290 = arith.mulf %289, %286 : vector<4x128xf32>
    %cst_104 = arith.constant 0.398942292 : f32
    %291 = vector.broadcast %cst_104 : f32 to vector<4x128xf32>
    %292 = arith.mulf %291, %286 : vector<4x128xf32>
    %cst_105 = arith.constant -5.000000e-01 : f32
    %293 = vector.broadcast %cst_105 : f32 to vector<4x128xf32>
    %294 = arith.mulf %293, %290 : vector<4x128xf32>
    %295 = arith.mulf %294, %290 : vector<4x128xf32>
    %296 = math.exp %295 : vector<4x128xf32>
    %297 = arith.mulf %292, %296 : vector<4x128xf32>
    %298 = arith.mulf %283, %297 : vector<4x128xf32>
    %cst_106 = arith.constant dense<0.000000e+00> : vector<128xf32>
    %299 = vector.multi_reduction <add>, %298, %cst_106 [0] : vector<4x128xf32> to vector<128xf32>
    %300 = vector.shape_cast %299 : vector<128xf32> to vector<1x128xf32>
    %cst_107 = arith.constant 1.000000e-10 : f32
    %301 = vector.broadcast %cst_107 : f32 to vector<1x128xf32>
    %302 = arith.addf %300, %301 : vector<1x128xf32>
    %303 = math.log %302 : vector<1x128xf32>
    %304 = arith.addf %253, %303 : vector<1x128xf32>
    %c0_108 = arith.constant 0 : index
    %c5_109 = arith.constant 5 : index
    %305 = vector.load %arg2[%c0_108, %c5_109] : memref<32x8xf32, #tpu.memory_space<vmem>>, vector<32x1xf32>
    %306 = vector.broadcast %305 : vector<32x1xf32> to vector<32x128xf32>
    %307 = vector.broadcast %287 : vector<1x128xf32> to vector<32x128xf32>
    %308 = arith.mulf %306, %307 : vector<32x128xf32>
    %309 = arith.addf %258, %308 : vector<32x128xf32>
    %cst_110 = arith.constant 0.000000e+00 : f32
    %310 = vector.broadcast %cst_110 : f32 to vector<32x128xf32>
    %311 = arith.maximumf %309, %310 : vector<32x128xf32>
    %c0_111 = arith.constant 0 : index
    %c6 = arith.constant 6 : index
    %312 = vector.load %arg4[%c0_111, %c6] : memref<12x8xf32, #tpu.memory_space<vmem>>, vector<12x1xf32>
    %c6_112 = arith.constant 6 : index
    %c0_113 = arith.constant 0 : index
    %c0_114 = arith.constant 0 : index
    %313 = vector.load %arg5[%c6_112, %c0_113, %c0_114] : memref<8x12x32xf32, #tpu.memory_space<vmem>>, vector<1x12x32xf32>
    %314 = vector.shape_cast %313 : vector<1x12x32xf32> to vector<12x32xf32>
    %cst_115 = arith.constant dense<0.000000e+00> : vector<12x128xf32>
    %315 = tpu.matmul %314, %311, %cst_115 {dimension_numbers = #tpu.dot_dimension_numbers<[1], [0], [0], [1], [0, 0, 1, 1], [], []>} : vector<12x32xf32>, vector<32x128xf32>, vector<12x128xf32> -> vector<12x128xf32>
    %316 = vector.broadcast %312 : vector<12x1xf32> to vector<12x128xf32>
    %317 = arith.addf %316, %315 : vector<12x128xf32>
    %318 = vector.extract_strided_slice %317 {offsets = [0, 0], sizes = [4, 128], strides = [1, 1]} : vector<12x128xf32> to vector<4x128xf32>
    %319 = vector.extract_strided_slice %317 {offsets = [4, 0], sizes = [4, 128], strides = [1, 1]} : vector<12x128xf32> to vector<4x128xf32>
    %320 = vector.extract_strided_slice %317 {offsets = [8, 0], sizes = [4, 128], strides = [1, 1]} : vector<12x128xf32> to vector<4x128xf32>
    %cst_116 = arith.constant dense<0xFF800000> : vector<128xf32>
    %321 = vector.multi_reduction <maximumf>, %318, %cst_116 [0] : vector<4x128xf32> to vector<128xf32>
    %322 = vector.shape_cast %321 : vector<128xf32> to vector<1x128xf32>
    %323 = vector.broadcast %322 : vector<1x128xf32> to vector<4x128xf32>
    %324 = arith.subf %318, %323 : vector<4x128xf32>
    %325 = math.exp %324 : vector<4x128xf32>
    %cst_117 = arith.constant dense<0.000000e+00> : vector<128xf32>
    %326 = vector.multi_reduction <add>, %325, %cst_117 [0] : vector<4x128xf32> to vector<128xf32>
    %327 = vector.shape_cast %326 : vector<128xf32> to vector<1x128xf32>
    %328 = tpu.reciprocal %327 {approx = true} : vector<1x128xf32> -> vector<1x128xf32>
    %329 = arith.mulf %327, %328 : vector<1x128xf32>
    %cst_118 = arith.constant 2.000000e+00 : f32
    %330 = vector.broadcast %cst_118 : f32 to vector<1x128xf32>
    %331 = arith.subf %330, %329 : vector<1x128xf32>
    %332 = arith.mulf %328, %331 : vector<1x128xf32>
    %333 = vector.broadcast %332 : vector<1x128xf32> to vector<4x128xf32>
    %334 = arith.mulf %325, %333 : vector<4x128xf32>
    %cst_119 = arith.constant 0.000000e+00 : f32
    %335 = vector.broadcast %cst_119 : f32 to vector<4x128xf32>
    %336 = arith.subf %335, %320 : vector<4x128xf32>
    %337 = math.exp %336 : vector<4x128xf32>
    %c6_120 = arith.constant 6 : index
    %c0_121 = arith.constant 0 : index
    %338 = vector.load %arg1[%c6_120, %c0_121] : memref<8x128xf32, #tpu.memory_space<vmem>>, vector<1x128xf32>
    %339 = vector.broadcast %338 : vector<1x128xf32> to vector<4x128xf32>
    %340 = arith.subf %339, %319 : vector<4x128xf32>
    %341 = arith.mulf %340, %337 : vector<4x128xf32>
    %cst_122 = arith.constant 0.398942292 : f32
    %342 = vector.broadcast %cst_122 : f32 to vector<4x128xf32>
    %343 = arith.mulf %342, %337 : vector<4x128xf32>
    %cst_123 = arith.constant -5.000000e-01 : f32
    %344 = vector.broadcast %cst_123 : f32 to vector<4x128xf32>
    %345 = arith.mulf %344, %341 : vector<4x128xf32>
    %346 = arith.mulf %345, %341 : vector<4x128xf32>
    %347 = math.exp %346 : vector<4x128xf32>
    %348 = arith.mulf %343, %347 : vector<4x128xf32>
    %349 = arith.mulf %334, %348 : vector<4x128xf32>
    %cst_124 = arith.constant dense<0.000000e+00> : vector<128xf32>
    %350 = vector.multi_reduction <add>, %349, %cst_124 [0] : vector<4x128xf32> to vector<128xf32>
    %351 = vector.shape_cast %350 : vector<128xf32> to vector<1x128xf32>
    %cst_125 = arith.constant 1.000000e-10 : f32
    %352 = vector.broadcast %cst_125 : f32 to vector<1x128xf32>
    %353 = arith.addf %351, %352 : vector<1x128xf32>
    %354 = math.log %353 : vector<1x128xf32>
    %355 = arith.addf %304, %354 : vector<1x128xf32>
    %c0_126 = arith.constant 0 : index
    %c6_127 = arith.constant 6 : index
    %356 = vector.load %arg2[%c0_126, %c6_127] : memref<32x8xf32, #tpu.memory_space<vmem>>, vector<32x1xf32>
    %357 = vector.broadcast %356 : vector<32x1xf32> to vector<32x128xf32>
    %358 = vector.broadcast %338 : vector<1x128xf32> to vector<32x128xf32>
    %359 = arith.mulf %357, %358 : vector<32x128xf32>
    %360 = arith.addf %309, %359 : vector<32x128xf32>
    %cst_128 = arith.constant 0.000000e+00 : f32
    %361 = vector.broadcast %cst_128 : f32 to vector<32x128xf32>
    %362 = arith.maximumf %360, %361 : vector<32x128xf32>
    %c0_129 = arith.constant 0 : index
    %c7 = arith.constant 7 : index
    %363 = vector.load %arg4[%c0_129, %c7] : memref<12x8xf32, #tpu.memory_space<vmem>>, vector<12x1xf32>
    %c7_130 = arith.constant 7 : index
    %c0_131 = arith.constant 0 : index
    %c0_132 = arith.constant 0 : index
    %364 = vector.load %arg5[%c7_130, %c0_131, %c0_132] : memref<8x12x32xf32, #tpu.memory_space<vmem>>, vector<1x12x32xf32>
    %365 = vector.shape_cast %364 : vector<1x12x32xf32> to vector<12x32xf32>
    %cst_133 = arith.constant dense<0.000000e+00> : vector<12x128xf32>
    %366 = tpu.matmul %365, %362, %cst_133 {dimension_numbers = #tpu.dot_dimension_numbers<[1], [0], [0], [1], [0, 0, 1, 1], [], []>} : vector<12x32xf32>, vector<32x128xf32>, vector<12x128xf32> -> vector<12x128xf32>
    %367 = vector.broadcast %363 : vector<12x1xf32> to vector<12x128xf32>
    %368 = arith.addf %367, %366 : vector<12x128xf32>
    %369 = vector.extract_strided_slice %368 {offsets = [0, 0], sizes = [4, 128], strides = [1, 1]} : vector<12x128xf32> to vector<4x128xf32>
    %370 = vector.extract_strided_slice %368 {offsets = [4, 0], sizes = [4, 128], strides = [1, 1]} : vector<12x128xf32> to vector<4x128xf32>
    %371 = vector.extract_strided_slice %368 {offsets = [8, 0], sizes = [4, 128], strides = [1, 1]} : vector<12x128xf32> to vector<4x128xf32>
    %cst_134 = arith.constant dense<0xFF800000> : vector<128xf32>
    %372 = vector.multi_reduction <maximumf>, %369, %cst_134 [0] : vector<4x128xf32> to vector<128xf32>
    %373 = vector.shape_cast %372 : vector<128xf32> to vector<1x128xf32>
    %374 = vector.broadcast %373 : vector<1x128xf32> to vector<4x128xf32>
    %375 = arith.subf %369, %374 : vector<4x128xf32>
    %376 = math.exp %375 : vector<4x128xf32>
    %cst_135 = arith.constant dense<0.000000e+00> : vector<128xf32>
    %377 = vector.multi_reduction <add>, %376, %cst_135 [0] : vector<4x128xf32> to vector<128xf32>
    %378 = vector.shape_cast %377 : vector<128xf32> to vector<1x128xf32>
    %379 = tpu.reciprocal %378 {approx = true} : vector<1x128xf32> -> vector<1x128xf32>
    %380 = arith.mulf %378, %379 : vector<1x128xf32>
    %cst_136 = arith.constant 2.000000e+00 : f32
    %381 = vector.broadcast %cst_136 : f32 to vector<1x128xf32>
    %382 = arith.subf %381, %380 : vector<1x128xf32>
    %383 = arith.mulf %379, %382 : vector<1x128xf32>
    %384 = vector.broadcast %383 : vector<1x128xf32> to vector<4x128xf32>
    %385 = arith.mulf %376, %384 : vector<4x128xf32>
    %cst_137 = arith.constant 0.000000e+00 : f32
    %386 = vector.broadcast %cst_137 : f32 to vector<4x128xf32>
    %387 = arith.subf %386, %371 : vector<4x128xf32>
    %388 = math.exp %387 : vector<4x128xf32>
    %c7_138 = arith.constant 7 : index
    %c0_139 = arith.constant 0 : index
    %389 = vector.load %arg1[%c7_138, %c0_139] : memref<8x128xf32, #tpu.memory_space<vmem>>, vector<1x128xf32>
    %390 = vector.broadcast %389 : vector<1x128xf32> to vector<4x128xf32>
    %391 = arith.subf %390, %370 : vector<4x128xf32>
    %392 = arith.mulf %391, %388 : vector<4x128xf32>
    %cst_140 = arith.constant 0.398942292 : f32
    %393 = vector.broadcast %cst_140 : f32 to vector<4x128xf32>
    %394 = arith.mulf %393, %388 : vector<4x128xf32>
    %cst_141 = arith.constant -5.000000e-01 : f32
    %395 = vector.broadcast %cst_141 : f32 to vector<4x128xf32>
    %396 = arith.mulf %395, %392 : vector<4x128xf32>
    %397 = arith.mulf %396, %392 : vector<4x128xf32>
    %398 = math.exp %397 : vector<4x128xf32>
    %399 = arith.mulf %394, %398 : vector<4x128xf32>
    %400 = arith.mulf %385, %399 : vector<4x128xf32>
    %cst_142 = arith.constant dense<0.000000e+00> : vector<128xf32>
    %401 = vector.multi_reduction <add>, %400, %cst_142 [0] : vector<4x128xf32> to vector<128xf32>
    %402 = vector.shape_cast %401 : vector<128xf32> to vector<1x128xf32>
    %cst_143 = arith.constant 1.000000e-10 : f32
    %403 = vector.broadcast %cst_143 : f32 to vector<1x128xf32>
    %404 = arith.addf %402, %403 : vector<1x128xf32>
    %405 = math.log %404 : vector<1x128xf32>
    %406 = arith.addf %355, %405 : vector<1x128xf32>
    %c0_144 = arith.constant 0 : index
    %c0_145 = arith.constant 0 : index
    %407 = vector.load %arg6[%c0_144, %c0_145] : memref<1x128xf32, #tpu.memory_space<vmem>>, vector<1x128xf32>
    tpu.vector_store %arg6[%c0_144, %c0_145], %406 {strides = array<i32>} : memref<1x128xf32, #tpu.memory_space<vmem>>, vector<1x128xf32>,
    return
  }
  func.func @transform_0(%arg0: i32) -> (i32, i32) {
    %c0_i32 = arith.constant 0 : i32
    %c0_i32_0 = arith.constant 0 : i32
    return %c0_i32, %arg0 : i32, i32
  }
  func.func @transform_1(%arg0: i32) -> (i32, i32) {
    %c0_i32 = arith.constant 0 : i32
    %c0_i32_0 = arith.constant 0 : i32
    %c0_i32_1 = arith.constant 0 : i32
    return %c0_i32, %c0_i32_0 : i32, i32
  }
  func.func @transform_2(%arg0: i32) -> (i32, i32) {
    %c0_i32 = arith.constant 0 : i32
    %c0_i32_0 = arith.constant 0 : i32
    %c0_i32_1 = arith.constant 0 : i32
    return %c0_i32, %c0_i32_0 : i32, i32
  }
  func.func @transform_3(%arg0: i32) -> (i32, i32) {
    %c0_i32 = arith.constant 0 : i32
    %c0_i32_0 = arith.constant 0 : i32
    %c0_i32_1 = arith.constant 0 : i32
    return %c0_i32, %c0_i32_0 : i32, i32
  }
  func.func @transform_4(%arg0: i32) -> (i32, i32, i32) {
    %c0_i32 = arith.constant 0 : i32
    %c0_i32_0 = arith.constant 0 : i32
    %c0_i32_1 = arith.constant 0 : i32
    %c0_i32_2 = arith.constant 0 : i32
    return %c0_i32, %c0_i32_0, %c0_i32_1 : i32, i32, i32
  }
  func.func @transform_5(%arg0: i32) -> (i32, i32) {
    %c0_i32 = arith.constant 0 : i32
    %c0_i32_0 = arith.constant 0 : i32
    return %c0_i32, %arg0 : i32, i32
  }
}

module attributes {stable_mosaic.version = 11 : i64} {
  func.func @rnade_kernel(%arg0: i32, %arg1: memref<8x128xf32, #tpu.memory_space<vmem>>, %arg2: memref<32x8xf32, #tpu.memory_space<vmem>>, %arg3: memref<32x1xf32, #tpu.memory_space<vmem>>, %arg4: memref<12x8xf32, #tpu.memory_space<vmem>>, %arg5: memref<8x12x32xf32, #tpu.memory_space<vmem>>, %arg6: memref<1x128xf32, #tpu.memory_space<vmem>>) attributes {dimension_semantics = [#tpu.dimension_semantics<parallel>], iteration_bounds = array<i64: 1>, scalar_prefetch = 0 : i64, scratch_operands = 0 : i64, tpu.core_type = #tpu.core_type<tc>, window_params = [{transform_indices = @transform_0, window_bounds = array<i64: 8, 128>}, {pipeline_mode = #tpu.pipeline_mode<synchronous>, transform_indices = @transform_1, window_bounds = array<i64: 32, 8>}, {pipeline_mode = #tpu.pipeline_mode<synchronous>, transform_indices = @transform_2, window_bounds = array<i64: 32, 1>}, {pipeline_mode = #tpu.pipeline_mode<synchronous>, transform_indices = @transform_3, window_bounds = array<i64: 12, 8>}, {pipeline_mode = #tpu.pipeline_mode<synchronous>, transform_indices = @transform_4, window_bounds = array<i64: 8, 12, 32>}, {transform_indices = @transform_5, window_bounds = array<i64: 1, 128>}]} {
    %c0 = arith.constant 0 : index
    %c0_0 = arith.constant 0 : index
    %0 = vector.load %arg3[%c0, %c0_0] : memref<32x1xf32, #tpu.memory_space<vmem>>, vector<32x1xf32>
    %1 = vector.shape_cast %0 : vector<32x1xf32> to vector<32x1xf32>
    %2 = vector.broadcast %1 : vector<32x1xf32> to vector<32x128xf32>
    %cst = arith.constant 0.000000e+00 : f32
    %3 = vector.broadcast %cst : f32 to vector<1x128xf32>
    %cst_1 = arith.constant 0.000000e+00 : f32
    %4 = vector.broadcast %cst_1 : f32 to vector<32x128xf32>
    %5 = arith.maximumf %2, %4 : vector<32x128xf32>
    %c0_2 = arith.constant 0 : index
    %c0_3 = arith.constant 0 : index
    %6 = vector.load %arg4[%c0_2, %c0_3] : memref<12x8xf32, #tpu.memory_space<vmem>>, vector<12x1xf32>
    %c0_4 = arith.constant 0 : index
    %c0_5 = arith.constant 0 : index
    %c0_6 = arith.constant 0 : index
    %7 = vector.load %arg5[%c0_4, %c0_5, %c0_6] : memref<8x12x32xf32, #tpu.memory_space<vmem>>, vector<1x12x32xf32>
    %8 = vector.shape_cast %7 : vector<1x12x32xf32> to vector<12x32xf32>
    %cst_7 = arith.constant dense<0.000000e+00> : vector<12x128xf32>
    %9 = tpu.matmul %8, %5, %cst_7 {dimension_numbers = #tpu.dot_dimension_numbers<[1], [0], [0], [1], [0, 0, 1, 1], [], []>} : vector<12x32xf32>, vector<32x128xf32>, vector<12x128xf32> -> vector<12x128xf32>
    %10 = vector.broadcast %6 : vector<12x1xf32> to vector<12x128xf32>
    %11 = arith.addf %10, %9 : vector<12x128xf32>
    %12 = vector.extract_strided_slice %11 {offsets = [0, 0], sizes = [4, 128], strides = [1, 1]} : vector<12x128xf32> to vector<4x128xf32>
    %13 = vector.extract_strided_slice %11 {offsets = [4, 0], sizes = [4, 128], strides = [1, 1]} : vector<12x128xf32> to vector<4x128xf32>
    %14 = vector.extract_strided_slice %11 {offsets = [8, 0], sizes = [4, 128], strides = [1, 1]} : vector<12x128xf32> to vector<4x128xf32>
    %cst_8 = arith.constant dense<0xFF800000> : vector<128xf32>
    %15 = vector.multi_reduction <maximumf>, %12, %cst_8 [0] : vector<4x128xf32> to vector<128xf32>
    %16 = vector.shape_cast %15 : vector<128xf32> to vector<1x128xf32>
    %17 = vector.broadcast %16 : vector<1x128xf32> to vector<4x128xf32>
    %18 = arith.subf %12, %17 : vector<4x128xf32>
    %19 = math.exp %18 : vector<4x128xf32>
    %cst_9 = arith.constant dense<0.000000e+00> : vector<128xf32>
    %20 = vector.multi_reduction <add>, %19, %cst_9 [0] : vector<4x128xf32> to vector<128xf32>
    %21 = vector.shape_cast %20 : vector<128xf32> to vector<1x128xf32>
    %22 = tpu.reciprocal %21 {approx = true} : vector<1x128xf32> -> vector<1x128xf32>
    %23 = arith.mulf %21, %22 : vector<1x128xf32>
    %cst_10 = arith.constant 2.000000e+00 : f32
    %24 = vector.broadcast %cst_10 : f32 to vector<1x128xf32>
    %25 = arith.subf %24, %23 : vector<1x128xf32>
    %26 = arith.mulf %22, %25 : vector<1x128xf32>
    %27 = vector.broadcast %26 : vector<1x128xf32> to vector<4x128xf32>
    %28 = arith.mulf %19, %27 : vector<4x128xf32>
    %cst_11 = arith.constant 0.000000e+00 : f32
    %29 = vector.broadcast %cst_11 : f32 to vector<4x128xf32>
    %30 = arith.subf %29, %14 : vector<4x128xf32>
    %31 = math.exp %30 : vector<4x128xf32>
    %c0_12 = arith.constant 0 : index
    %c0_13 = arith.constant 0 : index
    %32 = vector.load %arg1[%c0_12, %c0_13] : memref<8x128xf32, #tpu.memory_space<vmem>>, vector<1x128xf32>
    %33 = vector.broadcast %32 : vector<1x128xf32> to vector<4x128xf32>
    %34 = arith.subf %33, %13 : vector<4x128xf32>
    %35 = arith.mulf %34, %31 : vector<4x128xf32>
    %cst_14 = arith.constant 0.398942292 : f32
    %36 = vector.broadcast %cst_14 : f32 to vector<4x128xf32>
    %37 = arith.mulf %36, %31 : vector<4x128xf32>
    %cst_15 = arith.constant -5.000000e-01 : f32
    %38 = vector.broadcast %cst_15 : f32 to vector<4x128xf32>
    %39 = arith.mulf %38, %35 : vector<4x128xf32>
    %40 = arith.mulf %39, %35 : vector<4x128xf32>
    %41 = math.exp %40 : vector<4x128xf32>
    %42 = arith.mulf %37, %41 : vector<4x128xf32>
    %43 = arith.mulf %28, %42 : vector<4x128xf32>
    %cst_16 = arith.constant dense<0.000000e+00> : vector<128xf32>
    %44 = vector.multi_reduction <add>, %43, %cst_16 [0] : vector<4x128xf32> to vector<128xf32>
    %45 = vector.shape_cast %44 : vector<128xf32> to vector<1x128xf32>
    %cst_17 = arith.constant 1.000000e-10 : f32
    %46 = vector.broadcast %cst_17 : f32 to vector<1x128xf32>
    %47 = arith.addf %45, %46 : vector<1x128xf32>
    %48 = math.log %47 : vector<1x128xf32>
    %49 = arith.addf %3, %48 : vector<1x128xf32>
    %c0_18 = arith.constant 0 : index
    %c0_19 = arith.constant 0 : index
    %50 = vector.load %arg2[%c0_18, %c0_19] : memref<32x8xf32, #tpu.memory_space<vmem>>, vector<32x1xf32>
    %51 = vector.broadcast %50 : vector<32x1xf32> to vector<32x128xf32>
    %52 = vector.broadcast %32 : vector<1x128xf32> to vector<32x128xf32>
    %53 = arith.mulf %51, %52 : vector<32x128xf32>
    %54 = arith.addf %2, %53 : vector<32x128xf32>
    %cst_20 = arith.constant 0.000000e+00 : f32
    %55 = vector.broadcast %cst_20 : f32 to vector<32x128xf32>
    %56 = arith.maximumf %54, %55 : vector<32x128xf32>
    %c0_21 = arith.constant 0 : index
    %c1 = arith.constant 1 : index
    %57 = vector.load %arg4[%c0_21, %c1] : memref<12x8xf32, #tpu.memory_space<vmem>>, vector<12x1xf32>
    %c1_22 = arith.constant 1 : index
    %c0_23 = arith.constant 0 : index
    %c0_24 = arith.constant 0 : index
    %58 = vector.load %arg5[%c1_22, %c0_23, %c0_24] : memref<8x12x32xf32, #tpu.memory_space<vmem>>, vector<1x12x32xf32>
    %59 = vector.shape_cast %58 : vector<1x12x32xf32> to vector<12x32xf32>
    %cst_25 = arith.constant dense<0.000000e+00> : vector<12x128xf32>
    %60 = tpu.matmul %59, %56, %cst_25 {dimension_numbers = #tpu.dot_dimension_numbers<[1], [0], [0], [1], [0, 0, 1, 1], [], []>} : vector<12x32xf32>, vector<32x128xf32>, vector<12x128xf32> -> vector<12x128xf32>
    %61 = vector.broadcast %57 : vector<12x1xf32> to vector<12x128xf32>
    %62 = arith.addf %61, %60 : vector<12x128xf32>
    %63 = vector.extract_strided_slice %62 {offsets = [0, 0], sizes = [4, 128], strides = [1, 1]} : vector<12x128xf32> to vector<4x128xf32>
    %64 = vector.extract_strided_slice %62 {offsets = [4, 0], sizes = [4, 128], strides = [1, 1]} : vector<12x128xf32> to vector<4x128xf32>
    %65 = vector.extract_strided_slice %62 {offsets = [8, 0], sizes = [4, 128], strides = [1, 1]} : vector<12x128xf32> to vector<4x128xf32>
    %cst_26 = arith.constant dense<0xFF800000> : vector<128xf32>
    %66 = vector.multi_reduction <maximumf>, %63, %cst_26 [0] : vector<4x128xf32> to vector<128xf32>
    %67 = vector.shape_cast %66 : vector<128xf32> to vector<1x128xf32>
    %68 = vector.broadcast %67 : vector<1x128xf32> to vector<4x128xf32>
    %69 = arith.subf %63, %68 : vector<4x128xf32>
    %70 = math.exp %69 : vector<4x128xf32>
    %cst_27 = arith.constant dense<0.000000e+00> : vector<128xf32>
    %71 = vector.multi_reduction <add>, %70, %cst_27 [0] : vector<4x128xf32> to vector<128xf32>
    %72 = vector.shape_cast %71 : vector<128xf32> to vector<1x128xf32>
    %73 = tpu.reciprocal %72 {approx = true} : vector<1x128xf32> -> vector<1x128xf32>
    %74 = arith.mulf %72, %73 : vector<1x128xf32>
    %cst_28 = arith.constant 2.000000e+00 : f32
    %75 = vector.broadcast %cst_28 : f32 to vector<1x128xf32>
    %76 = arith.subf %75, %74 : vector<1x128xf32>
    %77 = arith.mulf %73, %76 : vector<1x128xf32>
    %78 = vector.broadcast %77 : vector<1x128xf32> to vector<4x128xf32>
    %79 = arith.mulf %70, %78 : vector<4x128xf32>
    %cst_29 = arith.constant 0.000000e+00 : f32
    %80 = vector.broadcast %cst_29 : f32 to vector<4x128xf32>
    %81 = arith.subf %80, %65 : vector<4x128xf32>
    %82 = math.exp %81 : vector<4x128xf32>
    %c1_30 = arith.constant 1 : index
    %c0_31 = arith.constant 0 : index
    %83 = vector.load %arg1[%c1_30, %c0_31] : memref<8x128xf32, #tpu.memory_space<vmem>>, vector<1x128xf32>
    %84 = vector.broadcast %83 : vector<1x128xf32> to vector<4x128xf32>
    %85 = arith.subf %84, %64 : vector<4x128xf32>
    %86 = arith.mulf %85, %82 : vector<4x128xf32>
    %cst_32 = arith.constant 0.398942292 : f32
    %87 = vector.broadcast %cst_32 : f32 to vector<4x128xf32>
    %88 = arith.mulf %87, %82 : vector<4x128xf32>
    %cst_33 = arith.constant -5.000000e-01 : f32
    %89 = vector.broadcast %cst_33 : f32 to vector<4x128xf32>
    %90 = arith.mulf %89, %86 : vector<4x128xf32>
    %91 = arith.mulf %90, %86 : vector<4x128xf32>
    %92 = math.exp %91 : vector<4x128xf32>
    %93 = arith.mulf %88, %92 : vector<4x128xf32>
    %94 = arith.mulf %79, %93 : vector<4x128xf32>
    %cst_34 = arith.constant dense<0.000000e+00> : vector<128xf32>
    %95 = vector.multi_reduction <add>, %94, %cst_34 [0] : vector<4x128xf32> to vector<128xf32>
    %96 = vector.shape_cast %95 : vector<128xf32> to vector<1x128xf32>
    %cst_35 = arith.constant 1.000000e-10 : f32
    %97 = vector.broadcast %cst_35 : f32 to vector<1x128xf32>
    %98 = arith.addf %96, %97 : vector<1x128xf32>
    %99 = math.log %98 : vector<1x128xf32>
    %100 = arith.addf %49, %99 : vector<1x128xf32>
    %c0_36 = arith.constant 0 : index
    %c1_37 = arith.constant 1 : index
    %101 = vector.load %arg2[%c0_36, %c1_37] : memref<32x8xf32, #tpu.memory_space<vmem>>, vector<32x1xf32>
    %102 = vector.broadcast %101 : vector<32x1xf32> to vector<32x128xf32>
    %103 = vector.broadcast %83 : vector<1x128xf32> to vector<32x128xf32>
    %104 = arith.mulf %102, %103 : vector<32x128xf32>
    %105 = arith.addf %54, %104 : vector<32x128xf32>
    %cst_38 = arith.constant 0.000000e+00 : f32
    %106 = vector.broadcast %cst_38 : f32 to vector<32x128xf32>
    %107 = arith.maximumf %105, %106 : vector<32x128xf32>
    %c0_39 = arith.constant 0 : index
    %c2 = arith.constant 2 : index
    %108 = vector.load %arg4[%c0_39, %c2] : memref<12x8xf32, #tpu.memory_space<vmem>>, vector<12x1xf32>
    %c2_40 = arith.constant 2 : index
    %c0_41 = arith.constant 0 : index
    %c0_42 = arith.constant 0 : index
    %109 = vector.load %arg5[%c2_40, %c0_41, %c0_42] : memref<8x12x32xf32, #tpu.memory_space<vmem>>, vector<1x12x32xf32>
    %110 = vector.shape_cast %109 : vector<1x12x32xf32> to vector<12x32xf32>
    %cst_43 = arith.constant dense<0.000000e+00> : vector<12x128xf32>
    %111 = tpu.matmul %110, %107, %cst_43 {dimension_numbers = #tpu.dot_dimension_numbers<[1], [0], [0], [1], [0, 0, 1, 1], [], []>} : vector<12x32xf32>, vector<32x128xf32>, vector<12x128xf32> -> vector<12x128xf32>
    %112 = vector.broadcast %108 : vector<12x1xf32> to vector<12x128xf32>
    %113 = arith.addf %112, %111 : vector<12x128xf32>
    %114 = vector.extract_strided_slice %113 {offsets = [0, 0], sizes = [4, 128], strides = [1, 1]} : vector<12x128xf32> to vector<4x128xf32>
    %115 = vector.extract_strided_slice %113 {offsets = [4, 0], sizes = [4, 128], strides = [1, 1]} : vector<12x128xf32> to vector<4x128xf32>
    %116 = vector.extract_strided_slice %113 {offsets = [8, 0], sizes = [4, 128], strides = [1, 1]} : vector<12x128xf32> to vector<4x128xf32>
    %cst_44 = arith.constant dense<0xFF800000> : vector<128xf32>
    %117 = vector.multi_reduction <maximumf>, %114, %cst_44 [0] : vector<4x128xf32> to vector<128xf32>
    %118 = vector.shape_cast %117 : vector<128xf32> to vector<1x128xf32>
    %119 = vector.broadcast %118 : vector<1x128xf32> to vector<4x128xf32>
    %120 = arith.subf %114, %119 : vector<4x128xf32>
    %121 = math.exp %120 : vector<4x128xf32>
    %cst_45 = arith.constant dense<0.000000e+00> : vector<128xf32>
    %122 = vector.multi_reduction <add>, %121, %cst_45 [0] : vector<4x128xf32> to vector<128xf32>
    %123 = vector.shape_cast %122 : vector<128xf32> to vector<1x128xf32>
    %124 = tpu.reciprocal %123 {approx = true} : vector<1x128xf32> -> vector<1x128xf32>
    %125 = arith.mulf %123, %124 : vector<1x128xf32>
    %cst_46 = arith.constant 2.000000e+00 : f32
    %126 = vector.broadcast %cst_46 : f32 to vector<1x128xf32>
    %127 = arith.subf %126, %125 : vector<1x128xf32>
    %128 = arith.mulf %124, %127 : vector<1x128xf32>
    %129 = vector.broadcast %128 : vector<1x128xf32> to vector<4x128xf32>
    %130 = arith.mulf %121, %129 : vector<4x128xf32>
    %cst_47 = arith.constant 0.000000e+00 : f32
    %131 = vector.broadcast %cst_47 : f32 to vector<4x128xf32>
    %132 = arith.subf %131, %116 : vector<4x128xf32>
    %133 = math.exp %132 : vector<4x128xf32>
    %c2_48 = arith.constant 2 : index
    %c0_49 = arith.constant 0 : index
    %134 = vector.load %arg1[%c2_48, %c0_49] : memref<8x128xf32, #tpu.memory_space<vmem>>, vector<1x128xf32>
    %135 = vector.broadcast %134 : vector<1x128xf32> to vector<4x128xf32>
    %136 = arith.subf %135, %115 : vector<4x128xf32>
    %137 = arith.mulf %136, %133 : vector<4x128xf32>
    %cst_50 = arith.constant 0.398942292 : f32
    %138 = vector.broadcast %cst_50 : f32 to vector<4x128xf32>
    %139 = arith.mulf %138, %133 : vector<4x128xf32>
    %cst_51 = arith.constant -5.000000e-01 : f32
    %140 = vector.broadcast %cst_51 : f32 to vector<4x128xf32>
    %141 = arith.mulf %140, %137 : vector<4x128xf32>
    %142 = arith.mulf %141, %137 : vector<4x128xf32>
    %143 = math.exp %142 : vector<4x128xf32>
    %144 = arith.mulf %139, %143 : vector<4x128xf32>
    %145 = arith.mulf %130, %144 : vector<4x128xf32>
    %cst_52 = arith.constant dense<0.000000e+00> : vector<128xf32>
    %146 = vector.multi_reduction <add>, %145, %cst_52 [0] : vector<4x128xf32> to vector<128xf32>
    %147 = vector.shape_cast %146 : vector<128xf32> to vector<1x128xf32>
    %cst_53 = arith.constant 1.000000e-10 : f32
    %148 = vector.broadcast %cst_53 : f32 to vector<1x128xf32>
    %149 = arith.addf %147, %148 : vector<1x128xf32>
    %150 = math.log %149 : vector<1x128xf32>
    %151 = arith.addf %100, %150 : vector<1x128xf32>
    %c0_54 = arith.constant 0 : index
    %c2_55 = arith.constant 2 : index
    %152 = vector.load %arg2[%c0_54, %c2_55] : memref<32x8xf32, #tpu.memory_space<vmem>>, vector<32x1xf32>
    %153 = vector.broadcast %152 : vector<32x1xf32> to vector<32x128xf32>
    %154 = vector.broadcast %134 : vector<1x128xf32> to vector<32x128xf32>
    %155 = arith.mulf %153, %154 : vector<32x128xf32>
    %156 = arith.addf %105, %155 : vector<32x128xf32>
    %cst_56 = arith.constant 0.000000e+00 : f32
    %157 = vector.broadcast %cst_56 : f32 to vector<32x128xf32>
    %158 = arith.maximumf %156, %157 : vector<32x128xf32>
    %c0_57 = arith.constant 0 : index
    %c3 = arith.constant 3 : index
    %159 = vector.load %arg4[%c0_57, %c3] : memref<12x8xf32, #tpu.memory_space<vmem>>, vector<12x1xf32>
    %c3_58 = arith.constant 3 : index
    %c0_59 = arith.constant 0 : index
    %c0_60 = arith.constant 0 : index
    %160 = vector.load %arg5[%c3_58, %c0_59, %c0_60] : memref<8x12x32xf32, #tpu.memory_space<vmem>>, vector<1x12x32xf32>
    %161 = vector.shape_cast %160 : vector<1x12x32xf32> to vector<12x32xf32>
    %cst_61 = arith.constant dense<0.000000e+00> : vector<12x128xf32>
    %162 = tpu.matmul %161, %158, %cst_61 {dimension_numbers = #tpu.dot_dimension_numbers<[1], [0], [0], [1], [0, 0, 1, 1], [], []>} : vector<12x32xf32>, vector<32x128xf32>, vector<12x128xf32> -> vector<12x128xf32>
    %163 = vector.broadcast %159 : vector<12x1xf32> to vector<12x128xf32>
    %164 = arith.addf %163, %162 : vector<12x128xf32>
    %165 = vector.extract_strided_slice %164 {offsets = [0, 0], sizes = [4, 128], strides = [1, 1]} : vector<12x128xf32> to vector<4x128xf32>
    %166 = vector.extract_strided_slice %164 {offsets = [4, 0], sizes = [4, 128], strides = [1, 1]} : vector<12x128xf32> to vector<4x128xf32>
    %167 = vector.extract_strided_slice %164 {offsets = [8, 0], sizes = [4, 128], strides = [1, 1]} : vector<12x128xf32> to vector<4x128xf32>
    %cst_62 = arith.constant dense<0xFF800000> : vector<128xf32>
    %168 = vector.multi_reduction <maximumf>, %165, %cst_62 [0] : vector<4x128xf32> to vector<128xf32>
    %169 = vector.shape_cast %168 : vector<128xf32> to vector<1x128xf32>
    %170 = vector.broadcast %169 : vector<1x128xf32> to vector<4x128xf32>
    %171 = arith.subf %165, %170 : vector<4x128xf32>
    %172 = math.exp %171 : vector<4x128xf32>
    %cst_63 = arith.constant dense<0.000000e+00> : vector<128xf32>
    %173 = vector.multi_reduction <add>, %172, %cst_63 [0] : vector<4x128xf32> to vector<128xf32>
    %174 = vector.shape_cast %173 : vector<128xf32> to vector<1x128xf32>
    %175 = tpu.reciprocal %174 {approx = true} : vector<1x128xf32> -> vector<1x128xf32>
    %176 = arith.mulf %174, %175 : vector<1x128xf32>
    %cst_64 = arith.constant 2.000000e+00 : f32
    %177 = vector.broadcast %cst_64 : f32 to vector<1x128xf32>
    %178 = arith.subf %177, %176 : vector<1x128xf32>
    %179 = arith.mulf %175, %178 : vector<1x128xf32>
    %180 = vector.broadcast %179 : vector<1x128xf32> to vector<4x128xf32>
    %181 = arith.mulf %172, %180 : vector<4x128xf32>
    %cst_65 = arith.constant 0.000000e+00 : f32
    %182 = vector.broadcast %cst_65 : f32 to vector<4x128xf32>
    %183 = arith.subf %182, %167 : vector<4x128xf32>
    %184 = math.exp %183 : vector<4x128xf32>
    %c3_66 = arith.constant 3 : index
    %c0_67 = arith.constant 0 : index
    %185 = vector.load %arg1[%c3_66, %c0_67] : memref<8x128xf32, #tpu.memory_space<vmem>>, vector<1x128xf32>
    %186 = vector.broadcast %185 : vector<1x128xf32> to vector<4x128xf32>
    %187 = arith.subf %186, %166 : vector<4x128xf32>
    %188 = arith.mulf %187, %184 : vector<4x128xf32>
    %cst_68 = arith.constant 0.398942292 : f32
    %189 = vector.broadcast %cst_68 : f32 to vector<4x128xf32>
    %190 = arith.mulf %189, %184 : vector<4x128xf32>
    %cst_69 = arith.constant -5.000000e-01 : f32
    %191 = vector.broadcast %cst_69 : f32 to vector<4x128xf32>
    %192 = arith.mulf %191, %188 : vector<4x128xf32>
    %193 = arith.mulf %192, %188 : vector<4x128xf32>
    %194 = math.exp %193 : vector<4x128xf32>
    %195 = arith.mulf %190, %194 : vector<4x128xf32>
    %196 = arith.mulf %181, %195 : vector<4x128xf32>
    %cst_70 = arith.constant dense<0.000000e+00> : vector<128xf32>
    %197 = vector.multi_reduction <add>, %196, %cst_70 [0] : vector<4x128xf32> to vector<128xf32>
    %198 = vector.shape_cast %197 : vector<128xf32> to vector<1x128xf32>
    %cst_71 = arith.constant 1.000000e-10 : f32
    %199 = vector.broadcast %cst_71 : f32 to vector<1x128xf32>
    %200 = arith.addf %198, %199 : vector<1x128xf32>
    %201 = math.log %200 : vector<1x128xf32>
    %202 = arith.addf %151, %201 : vector<1x128xf32>
    %c0_72 = arith.constant 0 : index
    %c3_73 = arith.constant 3 : index
    %203 = vector.load %arg2[%c0_72, %c3_73] : memref<32x8xf32, #tpu.memory_space<vmem>>, vector<32x1xf32>
    %204 = vector.broadcast %203 : vector<32x1xf32> to vector<32x128xf32>
    %205 = vector.broadcast %185 : vector<1x128xf32> to vector<32x128xf32>
    %206 = arith.mulf %204, %205 : vector<32x128xf32>
    %207 = arith.addf %156, %206 : vector<32x128xf32>
    %cst_74 = arith.constant 0.000000e+00 : f32
    %208 = vector.broadcast %cst_74 : f32 to vector<32x128xf32>
    %209 = arith.maximumf %207, %208 : vector<32x128xf32>
    %c0_75 = arith.constant 0 : index
    %c4 = arith.constant 4 : index
    %210 = vector.load %arg4[%c0_75, %c4] : memref<12x8xf32, #tpu.memory_space<vmem>>, vector<12x1xf32>
    %c4_76 = arith.constant 4 : index
    %c0_77 = arith.constant 0 : index
    %c0_78 = arith.constant 0 : index
    %211 = vector.load %arg5[%c4_76, %c0_77, %c0_78] : memref<8x12x32xf32, #tpu.memory_space<vmem>>, vector<1x12x32xf32>
    %212 = vector.shape_cast %211 : vector<1x12x32xf32> to vector<12x32xf32>
    %cst_79 = arith.constant dense<0.000000e+00> : vector<12x128xf32>
    %213 = tpu.matmul %212, %209, %cst_79 {dimension_numbers = #tpu.dot_dimension_numbers<[1], [0], [0], [1], [0, 0, 1, 1], [], []>} : vector<12x32xf32>, vector<32x128xf32>, vector<12x128xf32> -> vector<12x128xf32>
    %214 = vector.broadcast %210 : vector<12x1xf32> to vector<12x128xf32>
    %215 = arith.addf %214, %213 : vector<12x128xf32>
    %216 = vector.extract_strided_slice %215 {offsets = [0, 0], sizes = [4, 128], strides = [1, 1]} : vector<12x128xf32> to vector<4x128xf32>
    %217 = vector.extract_strided_slice %215 {offsets = [4, 0], sizes = [4, 128], strides = [1, 1]} : vector<12x128xf32> to vector<4x128xf32>
    %218 = vector.extract_strided_slice %215 {offsets = [8, 0], sizes = [4, 128], strides = [1, 1]} : vector<12x128xf32> to vector<4x128xf32>
    %cst_80 = arith.constant dense<0xFF800000> : vector<128xf32>
    %219 = vector.multi_reduction <maximumf>, %216, %cst_80 [0] : vector<4x128xf32> to vector<128xf32>
    %220 = vector.shape_cast %219 : vector<128xf32> to vector<1x128xf32>
    %221 = vector.broadcast %220 : vector<1x128xf32> to vector<4x128xf32>
    %222 = arith.subf %216, %221 : vector<4x128xf32>
    %223 = math.exp %222 : vector<4x128xf32>
    %cst_81 = arith.constant dense<0.000000e+00> : vector<128xf32>
    %224 = vector.multi_reduction <add>, %223, %cst_81 [0] : vector<4x128xf32> to vector<128xf32>
    %225 = vector.shape_cast %224 : vector<128xf32> to vector<1x128xf32>
    %226 = tpu.reciprocal %225 {approx = true} : vector<1x128xf32> -> vector<1x128xf32>
    %227 = arith.mulf %225, %226 : vector<1x128xf32>
    %cst_82 = arith.constant 2.000000e+00 : f32
    %228 = vector.broadcast %cst_82 : f32 to vector<1x128xf32>
    %229 = arith.subf %228, %227 : vector<1x128xf32>
    %230 = arith.mulf %226, %229 : vector<1x128xf32>
    %231 = vector.broadcast %230 : vector<1x128xf32> to vector<4x128xf32>
    %232 = arith.mulf %223, %231 : vector<4x128xf32>
    %cst_83 = arith.constant 0.000000e+00 : f32
    %233 = vector.broadcast %cst_83 : f32 to vector<4x128xf32>
    %234 = arith.subf %233, %218 : vector<4x128xf32>
    %235 = math.exp %234 : vector<4x128xf32>
    %c4_84 = arith.constant 4 : index
    %c0_85 = arith.constant 0 : index
    %236 = vector.load %arg1[%c4_84, %c0_85] : memref<8x128xf32, #tpu.memory_space<vmem>>, vector<1x128xf32>
    %237 = vector.broadcast %236 : vector<1x128xf32> to vector<4x128xf32>
    %238 = arith.subf %237, %217 : vector<4x128xf32>
    %239 = arith.mulf %238, %235 : vector<4x128xf32>
    %cst_86 = arith.constant 0.398942292 : f32
    %240 = vector.broadcast %cst_86 : f32 to vector<4x128xf32>
    %241 = arith.mulf %240, %235 : vector<4x128xf32>
    %cst_87 = arith.constant -5.000000e-01 : f32
    %242 = vector.broadcast %cst_87 : f32 to vector<4x128xf32>
    %243 = arith.mulf %242, %239 : vector<4x128xf32>
    %244 = arith.mulf %243, %239 : vector<4x128xf32>
    %245 = math.exp %244 : vector<4x128xf32>
    %246 = arith.mulf %241, %245 : vector<4x128xf32>
    %247 = arith.mulf %232, %246 : vector<4x128xf32>
    %cst_88 = arith.constant dense<0.000000e+00> : vector<128xf32>
    %248 = vector.multi_reduction <add>, %247, %cst_88 [0] : vector<4x128xf32> to vector<128xf32>
    %249 = vector.shape_cast %248 : vector<128xf32> to vector<1x128xf32>
    %cst_89 = arith.constant 1.000000e-10 : f32
    %250 = vector.broadcast %cst_89 : f32 to vector<1x128xf32>
    %251 = arith.addf %249, %250 : vector<1x128xf32>
    %252 = math.log %251 : vector<1x128xf32>
    %253 = arith.addf %202, %252 : vector<1x128xf32>
    %c0_90 = arith.constant 0 : index
    %c4_91 = arith.constant 4 : index
    %254 = vector.load %arg2[%c0_90, %c4_91] : memref<32x8xf32, #tpu.memory_space<vmem>>, vector<32x1xf32>
    %255 = vector.broadcast %254 : vector<32x1xf32> to vector<32x128xf32>
    %256 = vector.broadcast %236 : vector<1x128xf32> to vector<32x128xf32>
    %257 = arith.mulf %255, %256 : vector<32x128xf32>
    %258 = arith.addf %207, %257 : vector<32x128xf32>
    %cst_92 = arith.constant 0.000000e+00 : f32
    %259 = vector.broadcast %cst_92 : f32 to vector<32x128xf32>
    %260 = arith.maximumf %258, %259 : vector<32x128xf32>
    %c0_93 = arith.constant 0 : index
    %c5 = arith.constant 5 : index
    %261 = vector.load %arg4[%c0_93, %c5] : memref<12x8xf32, #tpu.memory_space<vmem>>, vector<12x1xf32>
    %c5_94 = arith.constant 5 : index
    %c0_95 = arith.constant 0 : index
    %c0_96 = arith.constant 0 : index
    %262 = vector.load %arg5[%c5_94, %c0_95, %c0_96] : memref<8x12x32xf32, #tpu.memory_space<vmem>>, vector<1x12x32xf32>
    %263 = vector.shape_cast %262 : vector<1x12x32xf32> to vector<12x32xf32>
    %cst_97 = arith.constant dense<0.000000e+00> : vector<12x128xf32>
    %264 = tpu.matmul %263, %260, %cst_97 {dimension_numbers = #tpu.dot_dimension_numbers<[1], [0], [0], [1], [0, 0, 1, 1], [], []>} : vector<12x32xf32>, vector<32x128xf32>, vector<12x128xf32> -> vector<12x128xf32>
    %265 = vector.broadcast %261 : vector<12x1xf32> to vector<12x128xf32>
    %266 = arith.addf %265, %264 : vector<12x128xf32>
    %267 = vector.extract_strided_slice %266 {offsets = [0, 0], sizes = [4, 128], strides = [1, 1]} : vector<12x128xf32> to vector<4x128xf32>
    %268 = vector.extract_strided_slice %266 {offsets = [4, 0], sizes = [4, 128], strides = [1, 1]} : vector<12x128xf32> to vector<4x128xf32>
    %269 = vector.extract_strided_slice %266 {offsets = [8, 0], sizes = [4, 128], strides = [1, 1]} : vector<12x128xf32> to vector<4x128xf32>
    %cst_98 = arith.constant dense<0xFF800000> : vector<128xf32>
    %270 = vector.multi_reduction <maximumf>, %267, %cst_98 [0] : vector<4x128xf32> to vector<128xf32>
    %271 = vector.shape_cast %270 : vector<128xf32> to vector<1x128xf32>
    %272 = vector.broadcast %271 : vector<1x128xf32> to vector<4x128xf32>
    %273 = arith.subf %267, %272 : vector<4x128xf32>
    %274 = math.exp %273 : vector<4x128xf32>
    %cst_99 = arith.constant dense<0.000000e+00> : vector<128xf32>
    %275 = vector.multi_reduction <add>, %274, %cst_99 [0] : vector<4x128xf32> to vector<128xf32>
    %276 = vector.shape_cast %275 : vector<128xf32> to vector<1x128xf32>
    %277 = tpu.reciprocal %276 {approx = true} : vector<1x128xf32> -> vector<1x128xf32>
    %278 = arith.mulf %276, %277 : vector<1x128xf32>
    %cst_100 = arith.constant 2.000000e+00 : f32
    %279 = vector.broadcast %cst_100 : f32 to vector<1x128xf32>
    %280 = arith.subf %279, %278 : vector<1x128xf32>
    %281 = arith.mulf %277, %280 : vector<1x128xf32>
    %282 = vector.broadcast %281 : vector<1x128xf32> to vector<4x128xf32>
    %283 = arith.mulf %274, %282 : vector<4x128xf32>
    %cst_101 = arith.constant 0.000000e+00 : f32
    %284 = vector.broadcast %cst_101 : f32 to vector<4x128xf32>
    %285 = arith.subf %284, %269 : vector<4x128xf32>
    %286 = math.exp %285 : vector<4x128xf32>
    %c5_102 = arith.constant 5 : index
    %c0_103 = arith.constant 0 : index
    %287 = vector.load %arg1[%c5_102, %c0_103] : memref<8x128xf32, #tpu.memory_space<vmem>>, vector<1x128xf32>
    %288 = vector.broadcast %287 : vector<1x128xf32> to vector<4x128xf32>
    %289 = arith.subf %288, %268 : vector<4x128xf32>
    %290 = arith.mulf %289, %286 : vector<4x128xf32>
    %cst_104 = arith.constant 0.398942292 : f32
    %291 = vector.broadcast %cst_104 : f32 to vector<4x128xf32>
    %292 = arith.mulf %291, %286 : vector<4x128xf32>
    %cst_105 = arith.constant -5.000000e-01 : f32
    %293 = vector.broadcast %cst_105 : f32 to vector<4x128xf32>
    %294 = arith.mulf %293, %290 : vector<4x128xf32>
    %295 = arith.mulf %294, %290 : vector<4x128xf32>
    %296 = math.exp %295 : vector<4x128xf32>
    %297 = arith.mulf %292, %296 : vector<4x128xf32>
    %298 = arith.mulf %283, %297 : vector<4x128xf32>
    %cst_106 = arith.constant dense<0.000000e+00> : vector<128xf32>
    %299 = vector.multi_reduction <add>, %298, %cst_106 [0] : vector<4x128xf32> to vector<128xf32>
    %300 = vector.shape_cast %299 : vector<128xf32> to vector<1x128xf32>
    %cst_107 = arith.constant 1.000000e-10 : f32
    %301 = vector.broadcast %cst_107 : f32 to vector<1x128xf32>
    %302 = arith.addf %300, %301 : vector<1x128xf32>
    %303 = math.log %302 : vector<1x128xf32>
    %304 = arith.addf %253, %303 : vector<1x128xf32>
    %c0_108 = arith.constant 0 : index
    %c5_109 = arith.constant 5 : index
    %305 = vector.load %arg2[%c0_108, %c5_109] : memref<32x8xf32, #tpu.memory_space<vmem>>, vector<32x1xf32>
    %306 = vector.broadcast %305 : vector<32x1xf32> to vector<32x128xf32>
    %307 = vector.broadcast %287 : vector<1x128xf32> to vector<32x128xf32>
    %308 = arith.mulf %306, %307 : vector<32x128xf32>
    %309 = arith.addf %258, %308 : vector<32x128xf32>
    %cst_110 = arith.constant 0.000000e+00 : f32
    %310 = vector.broadcast %cst_110 : f32 to vector<32x128xf32>
    %311 = arith.maximumf %309, %310 : vector<32x128xf32>
    %c0_111 = arith.constant 0 : index
    %c6 = arith.constant 6 : index
    %312 = vector.load %arg4[%c0_111, %c6] : memref<12x8xf32, #tpu.memory_space<vmem>>, vector<12x1xf32>
    %c6_112 = arith.constant 6 : index
    %c0_113 = arith.constant 0 : index
    %c0_114 = arith.constant 0 : index
    %313 = vector.load %arg5[%c6_112, %c0_113, %c0_114] : memref<8x12x32xf32, #tpu.memory_space<vmem>>, vector<1x12x32xf32>
    %314 = vector.shape_cast %313 : vector<1x12x32xf32> to vector<12x32xf32>
    %cst_115 = arith.constant dense<0.000000e+00> : vector<12x128xf32>
    %315 = tpu.matmul %314, %311, %cst_115 {dimension_numbers = #tpu.dot_dimension_numbers<[1], [0], [0], [1], [0, 0, 1, 1], [], []>} : vector<12x32xf32>, vector<32x128xf32>, vector<12x128xf32> -> vector<12x128xf32>
    %316 = vector.broadcast %312 : vector<12x1xf32> to vector<12x128xf32>
    %317 = arith.addf %316, %315 : vector<12x128xf32>
    %318 = vector.extract_strided_slice %317 {offsets = [0, 0], sizes = [4, 128], strides = [1, 1]} : vector<12x128xf32> to vector<4x128xf32>
    %319 = vector.extract_strided_slice %317 {offsets = [4, 0], sizes = [4, 128], strides = [1, 1]} : vector<12x128xf32> to vector<4x128xf32>
    %320 = vector.extract_strided_slice %317 {offsets = [8, 0], sizes = [4, 128], strides = [1, 1]} : vector<12x128xf32> to vector<4x128xf32>
    %cst_116 = arith.constant dense<0xFF800000> : vector<128xf32>
    %321 = vector.multi_reduction <maximumf>, %318, %cst_116 [0] : vector<4x128xf32> to vector<128xf32>
    %322 = vector.shape_cast %321 : vector<128xf32> to vector<1x128xf32>
    %323 = vector.broadcast %322 : vector<1x128xf32> to vector<4x128xf32>
    %324 = arith.subf %318, %323 : vector<4x128xf32>
    %325 = math.exp %324 : vector<4x128xf32>
    %cst_117 = arith.constant dense<0.000000e+00> : vector<128xf32>
    %326 = vector.multi_reduction <add>, %325, %cst_117 [0] : vector<4x128xf32> to vector<128xf32>
    %327 = vector.shape_cast %326 : vector<128xf32> to vector<1x128xf32>
    %328 = tpu.reciprocal %327 {approx = true} : vector<1x128xf32> -> vector<1x128xf32>
    %329 = arith.mulf %327, %328 : vector<1x128xf32>
    %cst_118 = arith.constant 2.000000e+00 : f32
    %330 = vector.broadcast %cst_118 : f32 to vector<1x128xf32>
    %331 = arith.subf %330, %329 : vector<1x128xf32>
    %332 = arith.mulf %328, %331 : vector<1x128xf32>
    %333 = vector.broadcast %332 : vector<1x128xf32> to vector<4x128xf32>
    %334 = arith.mulf %325, %333 : vector<4x128xf32>
    %cst_119 = arith.constant 0.000000e+00 : f32
    %335 = vector.broadcast %cst_119 : f32 to vector<4x128xf32>
    %336 = arith.subf %335, %320 : vector<4x128xf32>
    %337 = math.exp %336 : vector<4x128xf32>
    %c6_120 = arith.constant 6 : index
    %c0_121 = arith.constant 0 : index
    %338 = vector.load %arg1[%c6_120, %c0_121] : memref<8x128xf32, #tpu.memory_space<vmem>>, vector<1x128xf32>
    %339 = vector.broadcast %338 : vector<1x128xf32> to vector<4x128xf32>
    %340 = arith.subf %339, %319 : vector<4x128xf32>
    %341 = arith.mulf %340, %337 : vector<4x128xf32>
    %cst_122 = arith.constant 0.398942292 : f32
    %342 = vector.broadcast %cst_122 : f32 to vector<4x128xf32>
    %343 = arith.mulf %342, %337 : vector<4x128xf32>
    %cst_123 = arith.constant -5.000000e-01 : f32
    %344 = vector.broadcast %cst_123 : f32 to vector<4x128xf32>
    %345 = arith.mulf %344, %341 : vector<4x128xf32>
    %346 = arith.mulf %345, %341 : vector<4x128xf32>
    %347 = math.exp %346 : vector<4x128xf32>
    %348 = arith.mulf %343, %347 : vector<4x128xf32>
    %349 = arith.mulf %334, %348 : vector<4x128xf32>
    %cst_124 = arith.constant dense<0.000000e+00> : vector<128xf32>
    %350 = vector.multi_reduction <add>, %349, %cst_124 [0] : vector<4x128xf32> to vector<128xf32>
    %351 = vector.shape_cast %350 : vector<128xf32> to vector<1x128xf32>
    %cst_125 = arith.constant 1.000000e-10 : f32
    %352 = vector.broadcast %cst_125 : f32 to vector<1x128xf32>
    %353 = arith.addf %351, %352 : vector<1x128xf32>
    %354 = math.log %353 : vector<1x128xf32>
    %355 = arith.addf %304, %354 : vector<1x128xf32>
    %c0_126 = arith.constant 0 : index
    %c6_127 = arith.constant 6 : index
    %356 = vector.load %arg2[%c0_126, %c6_127] : memref<32x8xf32, #tpu.memory_space<vmem>>, vector<32x1xf32>
    %357 = vector.broadcast %356 : vector<32x1xf32> to vector<32x128xf32>
    %358 = vector.broadcast %338 : vector<1x128xf32> to vector<32x128xf32>
    %359 = arith.mulf %357, %358 : vector<32x128xf32>
    %360 = arith.addf %309, %359 : vector<32x128xf32>
    %cst_128 = arith.constant 0.000000e+00 : f32
    %361 = vector.broadcast %cst_128 : f32 to vector<32x128xf32>
    %362 = arith.maximumf %360, %361 : vector<32x128xf32>
    %c0_129 = arith.constant 0 : index
    %c7 = arith.constant 7 : index
    %363 = vector.load %arg4[%c0_129, %c7] : memref<12x8xf32, #tpu.memory_space<vmem>>, vector<12x1xf32>
    %c7_130 = arith.constant 7 : index
    %c0_131 = arith.constant 0 : index
    %c0_132 = arith.constant 0 : index
    %364 = vector.load %arg5[%c7_130, %c0_131, %c0_132] : memref<8x12x32xf32, #tpu.memory_space<vmem>>, vector<1x12x32xf32>
    %365 = vector.shape_cast %364 : vector<1x12x32xf32> to vector<12x32xf32>
    %cst_133 = arith.constant dense<0.000000e+00> : vector<12x128xf32>
    %366 = tpu.matmul %365, %362, %cst_133 {dimension_numbers = #tpu.dot_dimension_numbers<[1], [0], [0], [1], [0, 0, 1, 1], [], []>} : vector<12x32xf32>, vector<32x128xf32>, vector<12x128xf32> -> vector<12x128xf32>
    %367 = vector.broadcast %363 : vector<12x1xf32> to vector<12x128xf32>
    %368 = arith.addf %367, %366 : vector<12x128xf32>
    %369 = vector.extract_strided_slice %368 {offsets = [0, 0], sizes = [4, 128], strides = [1, 1]} : vector<12x128xf32> to vector<4x128xf32>
    %370 = vector.extract_strided_slice %368 {offsets = [4, 0], sizes = [4, 128], strides = [1, 1]} : vector<12x128xf32> to vector<4x128xf32>
    %371 = vector.extract_strided_slice %368 {offsets = [8, 0], sizes = [4, 128], strides = [1, 1]} : vector<12x128xf32> to vector<4x128xf32>
    %cst_134 = arith.constant dense<0xFF800000> : vector<128xf32>
    %372 = vector.multi_reduction <maximumf>, %369, %cst_134 [0] : vector<4x128xf32> to vector<128xf32>
    %373 = vector.shape_cast %372 : vector<128xf32> to vector<1x128xf32>
    %374 = vector.broadcast %373 : vector<1x128xf32> to vector<4x128xf32>
    %375 = arith.subf %369, %374 : vector<4x128xf32>
    %376 = math.exp %375 : vector<4x128xf32>
    %cst_135 = arith.constant dense<0.000000e+00> : vector<128xf32>
    %377 = vector.multi_reduction <add>, %376, %cst_135 [0] : vector<4x128xf32> to vector<128xf32>
    %378 = vector.shape_cast %377 : vector<128xf32> to vector<1x128xf32>
    %379 = tpu.reciprocal %378 {approx = true} : vector<1x128xf32> -> vector<1x128xf32>
    %380 = arith.mulf %378, %379 : vector<1x128xf32>
    %cst_136 = arith.constant 2.000000e+00 : f32
    %381 = vector.broadcast %cst_136 : f32 to vector<1x128xf32>
    %382 = arith.subf %381, %380 : vector<1x128xf32>
    %383 = arith.mulf %379, %382 : vector<1x128xf32>
    %384 = vector.broadcast %383 : vector<1x128xf32> to vector<4x128xf32>
    %385 = arith.mulf %376, %384 : vector<4x128xf32>
    %cst_137 = arith.constant 0.000000e+00 : f32
    %386 = vector.broadcast %cst_137 : f32 to vector<4x128xf32>
    %387 = arith.subf %386, %371 : vector<4x128xf32>
    %388 = math.exp %387 : vector<4x128xf32>
    %c7_138 = arith.constant 7 : index
    %c0_139 = arith.constant 0 : index
    %389 = vector.load %arg1[%c7_138, %c0_139] : memref<8x128xf32, #tpu.memory_space<vmem>>, vector<1x128xf32>
    %390 = vector.broadcast %389 : vector<1x128xf32> to vector<4x128xf32>
    %391 = arith.subf %390, %370 : vector<4x128xf32>
    %392 = arith.mulf %391, %388 : vector<4x128xf32>
    %cst_140 = arith.constant 0.398942292 : f32
    %393 = vector.broadcast %cst_140 : f32 to vector<4x128xf32>
    %394 = arith.mulf %393, %388 : vector<4x128xf32>
    %cst_141 = arith.constant -5.000000e-01 : f32
    %395 = vector.broadcast %cst_141 : f32 to vector<4x128xf32>
    %396 = arith.mulf %395, %392 : vector<4x128xf32>
    %397 = arith.mulf %396, %392 : vector<4x128xf32>
    %398 = math.exp %397 : vector<4x128xf32>
    %399 = arith.mulf %394, %398 : vector<4x128xf32>
    %400 = arith.mulf %385, %399 : vector<4x128xf32>
    %cst_142 = arith.constant dense<0.000000e+00> : vector<128xf32>
    %401 = vector.multi_reduction <add>, %400, %cst_142 [0] : vector<4x128xf32> to vector<128xf32>
    %402 = vector.shape_cast %401 : vector<128xf32> to vector<1x128xf32>
    %cst_143 = arith.constant 1.000000e-10 : f32
    %403 = vector.broadcast %cst_143 : f32 to vector<1x128xf32>
    %404 = arith.addf %402, %403 : vector<1x128xf32>
    %405 = math.log %404 : vector<1x128xf32>
    %406 = arith.addf %355, %405 : vector<1x128xf32>
    %c0_144 = arith.constant 0 : index
    %c0_145 = arith.constant 0 : index
    %407 = vector.load %arg6[%c0_144, %c0_145] : memref<1x128xf32, #tpu.memory_space<vmem>>, vector<1x128xf32>
    tpu.vector_store %arg6[%c0_144, %c0_145], %406 {strides = array<i32>} : memref<1x128xf32, #tpu.memory_space<vmem>>, vector<1x128xf32>,
    return
  }
  func.func @transform_0(%arg0: i32) -> (i32, i32) {
    %c0_i32 = arith.constant 0 : i32
    %c0_i32_0 = arith.constant 0 : i32
    return %c0_i32, %arg0 : i32, i32
  }
  func.func @transform_1(%arg0: i32) -> (i32, i32) {
    %c0_i32 = arith.constant 0 : i32
    %c0_i32_0 = arith.constant 0 : i32
    %c0_i32_1 = arith.constant 0 : i32
    return %c0_i32, %c0_i32_0 : i32, i32
  }
  func.func @transform_2(%arg0: i32) -> (i32, i32) {
    %c0_i32 = arith.constant 0 : i32
    %c0_i32_0 = arith.constant 0 : i32
    %c0_i32_1 = arith.constant 0 : i32
    return %c0_i32, %c0_i32_0 : i32, i32
  }
  func.func @transform_3(%arg0: i32) -> (i32, i32) {
    %c0_i32 = arith.constant 0 : i32
    %c0_i32_0 = arith.constant 0 : i32
    %c0_i32_1 = arith.constant 0 : i32
    return %c0_i32, %c0_i32_0 : i32, i32
  }
  func.func @transform_4(%arg0: i32) -> (i32, i32, i32) {
    %c0_i32 = arith.constant 0 : i32
    %c0_i32_0 = arith.constant 0 : i32
    %c0_i32_1 = arith.constant 0 : i32
    %c0_i32_2 = arith.constant 0 : i32
    return %c0_i32, %c0_i32_0, %c0_i32_1 : i32, i32, i32
  }
  func.func @transform_5(%arg0: i32) -> (i32, i32) {
    %c0_i32 = arith.constant 0 : i32
    %c0_i32_0 = arith.constant 0 : i32
    return %c0_i32, %arg0 : i32, i32
  }
}

</mosaic_0001>

<llo_original>
// kernel: tpu_custom_call.1
$region0: #{tpu_custom_call.1}
  #allocation0 [shape = 'u32[]', space=smem, size = 0x4, offset = 0x4, fixed_abs, tag = 'smem constant byte address 0x4 - core index']
  #allocation1 [shape = 'u32[72,128]{1,0:T(1,128)}', space=vmem, size = 0x9000, scoped, tag = 'internal scratch']
  %s0 = inlined_call_operand.vmem [shape: f32[8,128], index: 0, kind: input, shape index: {}]
  %s1 = inlined_call_operand.vmem [shape: f32[32,8], index: 1, kind: input, shape index: {}]
  %s2 = inlined_call_operand.vmem [shape: f32[32,1], index: 2, kind: input, shape index: {}]
  %s3 = inlined_call_operand.vmem [shape: f32[12,8], index: 3, kind: input, shape index: {}]
  %s4 = inlined_call_operand.vmem [shape: f32[8,12,32], index: 4, kind: input, shape index: {}]
  %s5 = inlined_call_operand.hbm [shape: f32[1,128], index: 5, kind: output, shape index: {}]
  %s6 = sld [smem:[#allocation0]]
  $region30: #{tpu_custom_call.1} parent=0
    _
  %s8 = ssub.s32 1, %s6
  %s9 = scalar_select 0, %s8, %s6
  $region1: #{tpu_custom_call.1} parent=0
    #allocation2 [shape = 'u8[512]{0}', space=vmem, size = 0x400, scoped, tag = 'output window, operand 0, single buffered']
    #allocation3 [shape = 's32[1]{0}', space=sflag, size = 0x4, scoped, tag = 'scoped memory for tpu_custom_call.1']
    %10 = vsyncpa [#allocation3], 0
    // Predicated region
    $region2: #{tpu_custom_call.1} parent=1 // pred_check
      _
    $region3: #{tpu_custom_call.1} parent=1 // pred_check_branch
      %12 = sbr.rel (0) target = $region5
    $region4: #{tpu_custom_call.1} parent=1 // pred_region
      _
    $region5: #{tpu_custom_call.1} parent=1 // pred_fallthru
      _
    // Predicated region
    $region6: #{tpu_custom_call.1} parent=1 // pred_check
      _
    $region7: #{tpu_custom_call.1} parent=1 // pred_check_branch
      %14 = sbr.rel (0) target = $region9
    $region8: #{tpu_custom_call.1} parent=1 // pred_region
      _
    $region9: #{tpu_custom_call.1} parent=1 // pred_fallthru
      _
    // Predicated region
    $region10: #{tpu_custom_call.1} parent=1 // pred_check
      _
    $region11: #{tpu_custom_call.1} parent=1 // pred_check_branch
      %16 = sbr.rel (0) target = $region13
    $region12: #{tpu_custom_call.1} parent=1 // pred_region
      _
    $region13: #{tpu_custom_call.1} parent=1 // pred_fallthru
      _
    // Predicated region
    $region14: #{tpu_custom_call.1} parent=1 // pred_check
      _
    $region15: #{tpu_custom_call.1} parent=1 // pred_check_branch
      %18 = sbr.rel (0) target = $region17
    $region16: #{tpu_custom_call.1} parent=1 // pred_region
      _
    $region17: #{tpu_custom_call.1} parent=1 // pred_fallthru
      _
    // Predicated region
    $region18: #{tpu_custom_call.1} parent=1 // pred_check
      _
    $region19: #{tpu_custom_call.1} parent=1 // pred_check_branch
      %20 = sbr.rel (0) target = $region21
    $region20: #{tpu_custom_call.1} parent=1 // pred_region
      _
    $region21: #{tpu_custom_call.1} parent=1 // pred_fallthru
      _
    %v21 = vld [vmem:[%s2] sm:$0xff]
    %v22 = vld [vmem:[%s2 + $0x8] sm:$0xff]
    %v23 = vld [vmem:[%s2 + $0x10] sm:$0xff]
    %v24 = vld [vmem:[%s2 + $0x18] sm:$0xff]
    %26 = vset.pattern.permute.xlu0 0
    %27 = vperm.xlu0 %26, %v21
    %v28 = vpop.permute.xlu0 %27
    %31 = vset.pattern.permute.xlu0 0
    %32 = vperm.xlu0 %31, %v22
    %v33 = vpop.permute.xlu0 %32
    %36 = vset.pattern.permute.xlu0 0
    %37 = vperm.xlu0 %36, %v23
    %v38 = vpop.permute.xlu0 %37
    %41 = vset.pattern.permute.xlu0 0
    %42 = vperm.xlu0 %41, %v24
    %v43 = vpop.permute.xlu0 %42
    %v45 = vmax.f32 %v28, 0.0
    %v46 = vmax.f32 %v33, 0.0
    %v47 = vmax.f32 %v38, 0.0
    %v48 = vmax.f32 %v43, 0.0
    %v49 = vld [vmem:[%s3] sm:$0xff]
    %v50 = vld [vmem:[%s3 + $0x8] sm:$0xf]
    %v51 = vld [vmem:[%s4] sm:$0xff]
    %v52 = vld [vmem:[%s4 + $0x8] sm:$0xf]
    %vm53 = vcmask 261120
    %v55 = vsel %vm53, %v51, 0
    %v58 = vsel %vm53, %v52, 0
    %60 = vmatpush.msra.mxu0 0.0
    %61 = vmatpush.msra.mxu0 0.0
    %62 = vmatpush.msra.mxu0 0.0
    %63 = vmatpush.msra.mxu0 0.0
    %64 = vmatpush.msra.mxu0 0.0
    %65 = vmatpush.msra.mxu0 0.0
    %66 = vmatpush.msra.mxu0 0.0
    %67 = vmatpush.msra.mxu0 0.0
    %68 = vmatpush.msra.mxu0 0.0
    %69 = vmatpush.msra.mxu0 0.0
    %70 = vmatpush.msra.mxu0 0.0
    %71 = vmatpush.msra.mxu0 0.0
    %72 = vmatpush.msra.mxu0 %v48
    %73 = vmatpush.msra.mxu0 %v47
    %74 = vmatpush.msra.mxu0 %v46
    %75 = vmatpush.msra.mxu0 %v45
    %76 = vmatmul.f32.gmra.mxu0 %v55
    %v77 = vpop.f32.mrf.mxu0
    %v78 = vadd.f32 0.0, %v77
    %79 = vmatmul.f32.gmra.mxu0 %v58
    %v80 = vpop.f32.mrf.mxu0
    %v81 = vadd.f32 0.0, %v80
    %82 = vdwg.mxu0
    %84 = vset.pattern.permute.xlu0 0
    %85 = vperm.xlu0 %84, %v49
    %v86 = vpop.permute.xlu0 %85
    %89 = vset.pattern.permute.xlu0 0
    %90 = vperm.xlu0 %89, %v50
    %v91 = vpop.permute.xlu0 %90
    %v93 = vadd.f32 %v86, %v78
    %v94 = vadd.f32 %v91, %v81
    %vm95 = vcmask 1043456
    %v96 = vsel %vm95, %v93, -inf
    %v97 = vrot.slane %v96, 4
    %v98 = vmax.f32 %v96, %v97
    %v99 = vrot.slane %v98, 2
    %v100 = vmax.f32 %v98, %v99
    %v101 = vrot.slane %v100, 1
    %v102 = vmax.f32 %v100, %v101
    %v103 = vsub.f32 %v93, %v102
    %v104 = vmul.f32 %v103, 1.442695
    %v105 = vpow.pop %v104
    %v106 = vsel %vm95, %v105, 0.0
    %v107 = vrot.slane %v106, 4
    %v108 = vadd.f32 %v106, %v107
    %v109 = vrot.slane %v108, 2
    %v110 = vadd.f32 %v108, %v109
    %v111 = vrot.slane %v110, 1
    %v112 = vadd.f32 %v110, %v111
    %v113 = vrcp.pop %v112
    %v114 = vmul.f32 %v112, %v113
    %v115 = vsub.f32 2.0, %v114
    %v116 = vmul.f32 %v113, %v115
    %v117 = vmul.f32 %v105, %v116
    %v118 = vsub.f32 0.0, %v94
    %v119 = vmul.f32 %v118, 1.442695
    %v120 = vpow.pop %v119
    %v121 = vld [vmem:[%s0] sm:$0x1]
    %v122 = vperm.slane %v121, 0
    %v123 = vsub.f32 %v122, %v93
    %v125 = vrot.slane %v120, 4
    %v127 = vmul.f32 %v123, %v125
    %v128 = vmul.f32 %v120, 0.3989423
    %v129 = vmul.f32 %v127, -0.5
    %v130 = vmul.f32 %v129, %v127
    %v131 = vmul.f32 %v130, 1.442695
    %v132 = vpow.pop %v131
    %v134 = vrot.slane %v132, 4
    %v136 = vmul.f32 %v128, %v134
    %v137 = vmul.f32 %v117, %v136
    %v138 = vsel %vm95, %v137, 0.0
    %v139 = vrot.slane %v138, 4
    %v140 = vadd.f32 %v138, %v139
    %v141 = vrot.slane %v140, 2
    %v142 = vadd.f32 %v140, %v141
    %v143 = vrot.slane %v142, 1
    %v144 = vadd.f32 %v142, %v143
    %v145 = vadd.f32 %v144, 1e-10
    %v146 = vlog2.pop %v145
    %v147 = vmul.f32 %v146, 0.6931472
    %v148 = vadd.f32 %v147, 0.0
    %v149 = vld [vmem:[%s1] sm:$0xff]
    %v150 = vld [vmem:[%s1 + $0x8] sm:$0xff]
    %v151 = vld [vmem:[%s1 + $0x10] sm:$0xff]
    %v152 = vld [vmem:[%s1 + $0x18] sm:$0xff]
    %154 = vset.pattern.permute.xlu0 0
    %155 = vperm.xlu0 %154, %v149
    %v156 = vpop.permute.xlu0 %155
    %159 = vset.pattern.permute.xlu0 0
    %160 = vperm.xlu0 %159, %v150
    %v161 = vpop.permute.xlu0 %160
    %164 = vset.pattern.permute.xlu0 0
    %165 = vperm.xlu0 %164, %v151
    %v166 = vpop.permute.xlu0 %165
    %169 = vset.pattern.permute.xlu0 0
    %170 = vperm.xlu0 %169, %v152
    %v171 = vpop.permute.xlu0 %170
    %v173 = vmul.f32 %v156, %v122
    %v174 = vmul.f32 %v161, %v122
    %v175 = vmul.f32 %v166, %v122
    %v176 = vmul.f32 %v171, %v122
    %v177 = vadd.f32 %v28, %v173
    %v178 = vadd.f32 %v33, %v174
    %v179 = vadd.f32 %v38, %v175
    %v180 = vadd.f32 %v43, %v176
    %v181 = vmax.f32 %v177, 0.0
    %v182 = vmax.f32 %v178, 0.0
    %v183 = vmax.f32 %v179, 0.0
    %v184 = vmax.f32 %v180, 0.0
    %s185 = scalar_lea.vmem %s4, 16
    %v186 = vld [vmem:[%s185] sm:$0xff]
    %v187 = vld [vmem:[%s185 + $0x8] sm:$0xf]
    %v189 = vsel %vm53, %v186, 0
    %v192 = vsel %vm53, %v187, 0
    %194 = vmatpush.msra.mxu0 0.0
    %195 = vmatpush.msra.mxu0 0.0
    %196 = vmatpush.msra.mxu0 0.0
    %197 = vmatpush.msra.mxu0 0.0
    %198 = vmatpush.msra.mxu0 0.0
    %199 = vmatpush.msra.mxu0 0.0
    %200 = vmatpush.msra.mxu0 0.0
    %201 = vmatpush.msra.mxu0 0.0
    %202 = vmatpush.msra.mxu0 0.0
    %203 = vmatpush.msra.mxu0 0.0
    %204 = vmatpush.msra.mxu0 0.0
    %205 = vmatpush.msra.mxu0 0.0
    %206 = vmatpush.msra.mxu0 %v184
    %207 = vmatpush.msra.mxu0 %v183
    %208 = vmatpush.msra.mxu0 %v182
    %209 = vmatpush.msra.mxu0 %v181
    %210 = vmatmul.f32.gmra.mxu0 %v189
    %v211 = vpop.f32.mrf.mxu0
    %v212 = vadd.f32 0.0, %v211
    %213 = vmatmul.f32.gmra.mxu0 %v192
    %v214 = vpop.f32.mrf.mxu0
    %v215 = vadd.f32 0.0, %v214
    %216 = vdwg.mxu0
    %217 = vset.pattern.permute.xlu0 1
    %218 = vperm.xlu0 %217, %v49
    %v219 = vpop.permute.xlu0 %218
    %221 = vset.pattern.permute.xlu0 1
    %222 = vperm.xlu0 %221, %v50
    %v223 = vpop.permute.xlu0 %222
    %v225 = vadd.f32 %v219, %v212
    %v226 = vadd.f32 %v223, %v215
    %v227 = vsel %vm95, %v225, -inf
    %v228 = vrot.slane %v227, 4
    %v229 = vmax.f32 %v227, %v228
    %v230 = vrot.slane %v229, 2
    %v231 = vmax.f32 %v229, %v230
    %v232 = vrot.slane %v231, 1
    %v233 = vmax.f32 %v231, %v232
    %v234 = vsub.f32 %v225, %v233
    %v235 = vmul.f32 %v234, 1.442695
    %v236 = vpow.pop %v235
    %v237 = vsel %vm95, %v236, 0.0
    %v238 = vrot.slane %v237, 4
    %v239 = vadd.f32 %v237, %v238
    %v240 = vrot.slane %v239, 2
    %v241 = vadd.f32 %v239, %v240
    %v242 = vrot.slane %v241, 1
    %v243 = vadd.f32 %v241, %v242
    %v244 = vrcp.pop %v243
    %v245 = vmul.f32 %v243, %v244
    %v246 = vsub.f32 2.0, %v245
    %v247 = vmul.f32 %v244, %v246
    %v248 = vmul.f32 %v236, %v247
    %v249 = vsub.f32 0.0, %v226
    %v250 = vmul.f32 %v249, 1.442695
    %v251 = vpow.pop %v250
    %v252 = vld [vmem:[%s0 + $0x1] sm:$0x1]
    %v253 = vperm.slane %v252, 0
    %v254 = vsub.f32 %v253, %v225
    %v256 = vrot.slane %v251, 4
    %v258 = vmul.f32 %v254, %v256
    %v259 = vmul.f32 %v251, 0.3989423
    %v260 = vmul.f32 %v258, -0.5
    %v261 = vmul.f32 %v260, %v258
    %v262 = vmul.f32 %v261, 1.442695
    %v263 = vpow.pop %v262
    %v265 = vrot.slane %v263, 4
    %v267 = vmul.f32 %v259, %v265
    %v268 = vmul.f32 %v248, %v267
    %v269 = vsel %vm95, %v268, 0.0
    %v270 = vrot.slane %v269, 4
    %v271 = vadd.f32 %v269, %v270
    %v272 = vrot.slane %v271, 2
    %v273 = vadd.f32 %v271, %v272
    %v274 = vrot.slane %v273, 1
    %v275 = vadd.f32 %v273, %v274
    %v276 = vadd.f32 %v275, 1e-10
    %v277 = vlog2.pop %v276
    %v278 = vmul.f32 %v277, 0.6931472
    %v279 = vadd.f32 %v148, %v278
    %280 = vset.pattern.permute.xlu0 1
    %281 = vperm.xlu0 %280, %v149
    %v282 = vpop.permute.xlu0 %281
    %284 = vset.pattern.permute.xlu0 1
    %285 = vperm.xlu0 %284, %v150
    %v286 = vpop.permute.xlu0 %285
    %288 = vset.pattern.permute.xlu0 1
    %289 = vperm.xlu0 %288, %v151
    %v290 = vpop.permute.xlu0 %289
    %292 = vset.pattern.permute.xlu0 1
    %293 = vperm.xlu0 %292, %v152
    %v294 = vpop.permute.xlu0 %293
    %v296 = vmul.f32 %v282, %v253
    %v297 = vmul.f32 %v286, %v253
    %v298 = vmul.f32 %v290, %v253
    %v299 = vmul.f32 %v294, %v253
    %v300 = vadd.f32 %v177, %v296
    %v301 = vadd.f32 %v178, %v297
    %v302 = vadd.f32 %v179, %v298
    %v303 = vadd.f32 %v180, %v299
    %v304 = vmax.f32 %v300, 0.0
    %v305 = vmax.f32 %v301, 0.0
    %v306 = vmax.f32 %v302, 0.0
    %v307 = vmax.f32 %v303, 0.0
    %s308 = scalar_lea.vmem %s4, 32
    %v309 = vld [vmem:[%s308] sm:$0xff]
    %v310 = vld [vmem:[%s308 + $0x8] sm:$0xf]
    %v312 = vsel %vm53, %v309, 0
    %v315 = vsel %vm53, %v310, 0
    %317 = vmatpush.msra.mxu0 0.0
    %318 = vmatpush.msra.mxu0 0.0
    %319 = vmatpush.msra.mxu0 0.0
    %320 = vmatpush.msra.mxu0 0.0
    %321 = vmatpush.msra.mxu0 0.0
    %322 = vmatpush.msra.mxu0 0.0
    %323 = vmatpush.msra.mxu0 0.0
    %324 = vmatpush.msra.mxu0 0.0
    %325 = vmatpush.msra.mxu0 0.0
    %326 = vmatpush.msra.mxu0 0.0
    %327 = vmatpush.msra.mxu0 0.0
    %328 = vmatpush.msra.mxu0 0.0
    %329 = vmatpush.msra.mxu0 %v307
    %330 = vmatpush.msra.mxu0 %v306
    %331 = vmatpush.msra.mxu0 %v305
    %332 = vmatpush.msra.mxu0 %v304
    %333 = vmatmul.f32.gmra.mxu0 %v312
    %v334 = vpop.f32.mrf.mxu0
    %v335 = vadd.f32 0.0, %v334
    %336 = vmatmul.f32.gmra.mxu0 %v315
    %v337 = vpop.f32.mrf.mxu0
    %v338 = vadd.f32 0.0, %v337
    %339 = vdwg.mxu0
    %340 = vset.pattern.permute.xlu0 2
    %341 = vperm.xlu0 %340, %v49
    %v342 = vpop.permute.xlu0 %341
    %344 = vset.pattern.permute.xlu0 2
    %345 = vperm.xlu0 %344, %v50
    %v346 = vpop.permute.xlu0 %345
    %v348 = vadd.f32 %v342, %v335
    %v349 = vadd.f32 %v346, %v338
    %v350 = vsel %vm95, %v348, -inf
    %v351 = vrot.slane %v350, 4
    %v352 = vmax.f32 %v350, %v351
    %v353 = vrot.slane %v352, 2
    %v354 = vmax.f32 %v352, %v353
    %v355 = vrot.slane %v354, 1
    %v356 = vmax.f32 %v354, %v355
    %v357 = vsub.f32 %v348, %v356
    %v358 = vmul.f32 %v357, 1.442695
    %v359 = vpow.pop %v358
    %v360 = vsel %vm95, %v359, 0.0
    %v361 = vrot.slane %v360, 4
    %v362 = vadd.f32 %v360, %v361
    %v363 = vrot.slane %v362, 2
    %v364 = vadd.f32 %v362, %v363
    %v365 = vrot.slane %v364, 1
    %v366 = vadd.f32 %v364, %v365
    %v367 = vrcp.pop %v366
    %v368 = vmul.f32 %v366, %v367
    %v369 = vsub.f32 2.0, %v368
    %v370 = vmul.f32 %v367, %v369
    %v371 = vmul.f32 %v359, %v370
    %v372 = vsub.f32 0.0, %v349
    %v373 = vmul.f32 %v372, 1.442695
    %v374 = vpow.pop %v373
    %v375 = vld [vmem:[%s0 + $0x2] sm:$0x1]
    %v376 = vperm.slane %v375, 0
    %v377 = vsub.f32 %v376, %v348
    %v379 = vrot.slane %v374, 4
    %v381 = vmul.f32 %v377, %v379
    %v382 = vmul.f32 %v374, 0.3989423
    %v383 = vmul.f32 %v381, -0.5
    %v384 = vmul.f32 %v383, %v381
    %v385 = vmul.f32 %v384, 1.442695
    %v386 = vpow.pop %v385
    %v388 = vrot.slane %v386, 4
    %v390 = vmul.f32 %v382, %v388
    %v391 = vmul.f32 %v371, %v390
    %v392 = vsel %vm95, %v391, 0.0
    %v393 = vrot.slane %v392, 4
    %v394 = vadd.f32 %v392, %v393
    %v395 = vrot.slane %v394, 2
    %v396 = vadd.f32 %v394, %v395
    %v397 = vrot.slane %v396, 1
    %v398 = vadd.f32 %v396, %v397
    %v399 = vadd.f32 %v398, 1e-10
    %v400 = vlog2.pop %v399
    %v401 = vmul.f32 %v400, 0.6931472
    %v402 = vadd.f32 %v279, %v401
    %403 = vset.pattern.permute.xlu0 2
    %404 = vperm.xlu0 %403, %v149
    %v405 = vpop.permute.xlu0 %404
    %407 = vset.pattern.permute.xlu0 2
    %408 = vperm.xlu0 %407, %v150
    %v409 = vpop.permute.xlu0 %408
    %411 = vset.pattern.permute.xlu0 2
    %412 = vperm.xlu0 %411, %v151
    %v413 = vpop.permute.xlu0 %412
    %415 = vset.pattern.permute.xlu0 2
    %416 = vperm.xlu0 %415, %v152
    %v417 = vpop.permute.xlu0 %416
    %v419 = vmul.f32 %v405, %v376
    %v420 = vmul.f32 %v409, %v376
    %v421 = vmul.f32 %v413, %v376
    %v422 = vmul.f32 %v417, %v376
    %v423 = vadd.f32 %v300, %v419
    %v424 = vadd.f32 %v301, %v420
    %v425 = vadd.f32 %v302, %v421
    %v426 = vadd.f32 %v303, %v422
    %v427 = vmax.f32 %v423, 0.0
    %v428 = vmax.f32 %v424, 0.0
    %v429 = vmax.f32 %v425, 0.0
    %v430 = vmax.f32 %v426, 0.0
    %s431 = scalar_lea.vmem %s4, 48
    %v432 = vld [vmem:[%s431] sm:$0xff]
    %v433 = vld [vmem:[%s431 + $0x8] sm:$0xf]
    %v435 = vsel %vm53, %v432, 0
    %v438 = vsel %vm53, %v433, 0
    %440 = vmatpush.msra.mxu0 0.0
    %441 = vmatpush.msra.mxu0 0.0
    %442 = vmatpush.msra.mxu0 0.0
    %443 = vmatpush.msra.mxu0 0.0
    %444 = vmatpush.msra.mxu0 0.0
    %445 = vmatpush.msra.mxu0 0.0
    %446 = vmatpush.msra.mxu0 0.0
    %447 = vmatpush.msra.mxu0 0.0
    %448 = vmatpush.msra.mxu0 0.0
    %449 = vmatpush.msra.mxu0 0.0
    %450 = vmatpush.msra.mxu0 0.0
    %451 = vmatpush.msra.mxu0 0.0
    %452 = vmatpush.msra.mxu0 %v430
    %453 = vmatpush.msra.mxu0 %v429
    %454 = vmatpush.msra.mxu0 %v428
    %455 = vmatpush.msra.mxu0 %v427
    %456 = vmatmul.f32.gmra.mxu0 %v435
    %v457 = vpop.f32.mrf.mxu0
    %v458 = vadd.f32 0.0, %v457
    %459 = vmatmul.f32.gmra.mxu0 %v438
    %v460 = vpop.f32.mrf.mxu0
    %v461 = vadd.f32 0.0, %v460
    %462 = vdwg.mxu0
    %463 = vset.pattern.permute.xlu0 3
    %464 = vperm.xlu0 %463, %v49
    %v465 = vpop.permute.xlu0 %464
    %467 = vset.pattern.permute.xlu0 3
    %468 = vperm.xlu0 %467, %v50
    %v469 = vpop.permute.xlu0 %468
    %v471 = vadd.f32 %v465, %v458
    %v472 = vadd.f32 %v469, %v461
    %v473 = vsel %vm95, %v471, -inf
    %v474 = vrot.slane %v473, 4
    %v475 = vmax.f32 %v473, %v474
    %v476 = vrot.slane %v475, 2
    %v477 = vmax.f32 %v475, %v476
    %v478 = vrot.slane %v477, 1
    %v479 = vmax.f32 %v477, %v478
    %v480 = vsub.f32 %v471, %v479
    %v481 = vmul.f32 %v480, 1.442695
    %v482 = vpow.pop %v481
    %v483 = vsel %vm95, %v482, 0.0
    %v484 = vrot.slane %v483, 4
    %v485 = vadd.f32 %v483, %v484
    %v486 = vrot.slane %v485, 2
    %v487 = vadd.f32 %v485, %v486
    %v488 = vrot.slane %v487, 1
    %v489 = vadd.f32 %v487, %v488
    %v490 = vrcp.pop %v489
    %v491 = vmul.f32 %v489, %v490
    %v492 = vsub.f32 2.0, %v491
    %v493 = vmul.f32 %v490, %v492
    %v494 = vmul.f32 %v482, %v493
    %v495 = vsub.f32 0.0, %v472
    %v496 = vmul.f32 %v495, 1.442695
    %v497 = vpow.pop %v496
    %v498 = vld [vmem:[%s0 + $0x3] sm:$0x1]
    %v499 = vperm.slane %v498, 0
    %v500 = vsub.f32 %v499, %v471
    %v502 = vrot.slane %v497, 4
    %v504 = vmul.f32 %v500, %v502
    %v505 = vmul.f32 %v497, 0.3989423
    %v506 = vmul.f32 %v504, -0.5
    %v507 = vmul.f32 %v506, %v504
    %v508 = vmul.f32 %v507, 1.442695
    %v509 = vpow.pop %v508
    %v511 = vrot.slane %v509, 4
    %v513 = vmul.f32 %v505, %v511
    %v514 = vmul.f32 %v494, %v513
    %v515 = vsel %vm95, %v514, 0.0
    %v516 = vrot.slane %v515, 4
    %v517 = vadd.f32 %v515, %v516
    %v518 = vrot.slane %v517, 2
    %v519 = vadd.f32 %v517, %v518
    %v520 = vrot.slane %v519, 1
    %v521 = vadd.f32 %v519, %v520
    %v522 = vadd.f32 %v521, 1e-10
    %v523 = vlog2.pop %v522
    %v524 = vmul.f32 %v523, 0.6931472
    %v525 = vadd.f32 %v402, %v524
    %526 = vset.pattern.permute.xlu0 3
    %527 = vperm.xlu0 %526, %v149
    %v528 = vpop.permute.xlu0 %527
    %530 = vset.pattern.permute.xlu0 3
    %531 = vperm.xlu0 %530, %v150
    %v532 = vpop.permute.xlu0 %531
    %534 = vset.pattern.permute.xlu0 3
    %535 = vperm.xlu0 %534, %v151
    %v536 = vpop.permute.xlu0 %535
    %538 = vset.pattern.permute.xlu0 3
    %539 = vperm.xlu0 %538, %v152
    %v540 = vpop.permute.xlu0 %539
    %v542 = vmul.f32 %v528, %v499
    %v543 = vmul.f32 %v532, %v499
    %v544 = vmul.f32 %v536, %v499
    %v545 = vmul.f32 %v540, %v499
    %v546 = vadd.f32 %v423, %v542
    %v547 = vadd.f32 %v424, %v543
    %v548 = vadd.f32 %v425, %v544
    %v549 = vadd.f32 %v426, %v545
    %v550 = vmax.f32 %v546, 0.0
    %v551 = vmax.f32 %v547, 0.0
    %v552 = vmax.f32 %v548, 0.0
    %v553 = vmax.f32 %v549, 0.0
    %s554 = scalar_lea.vmem %s4, 64
    %v555 = vld [vmem:[%s554] sm:$0xff]
    %v556 = vld [vmem:[%s554 + $0x8] sm:$0xf]
    %v558 = vsel %vm53, %v555, 0
    %v561 = vsel %vm53, %v556, 0
    %563 = vmatpush.msra.mxu0 0.0
    %564 = vmatpush.msra.mxu0 0.0
    %565 = vmatpush.msra.mxu0 0.0
    %566 = vmatpush.msra.mxu0 0.0
    %567 = vmatpush.msra.mxu0 0.0
    %568 = vmatpush.msra.mxu0 0.0
    %569 = vmatpush.msra.mxu0 0.0
    %570 = vmatpush.msra.mxu0 0.0
    %571 = vmatpush.msra.mxu0 0.0
    %572 = vmatpush.msra.mxu0 0.0
    %573 = vmatpush.msra.mxu0 0.0
    %574 = vmatpush.msra.mxu0 0.0
    %575 = vmatpush.msra.mxu0 %v553
    %576 = vmatpush.msra.mxu0 %v552
    %577 = vmatpush.msra.mxu0 %v551
    %578 = vmatpush.msra.mxu0 %v550
    %579 = vmatmul.f32.gmra.mxu0 %v558
    %v580 = vpop.f32.mrf.mxu0
    %v581 = vadd.f32 0.0, %v580
    %582 = vmatmul.f32.gmra.mxu0 %v561
    %v583 = vpop.f32.mrf.mxu0
    %v584 = vadd.f32 0.0, %v583
    %585 = vdwg.mxu0
    %586 = vset.pattern.permute.xlu0 4
    %587 = vperm.xlu0 %586, %v49
    %v588 = vpop.permute.xlu0 %587
    %590 = vset.pattern.permute.xlu0 4
    %591 = vperm.xlu0 %590, %v50
    %v592 = vpop.permute.xlu0 %591
    %v594 = vadd.f32 %v588, %v581
    %v595 = vadd.f32 %v592, %v584
    %v596 = vsel %vm95, %v594, -inf
    %v597 = vrot.slane %v596, 4
    %v598 = vmax.f32 %v596, %v597
    %v599 = vrot.slane %v598, 2
    %v600 = vmax.f32 %v598, %v599
    %v601 = vrot.slane %v600, 1
    %v602 = vmax.f32 %v600, %v601
    %v603 = vsub.f32 %v594, %v602
    %v604 = vmul.f32 %v603, 1.442695
    %v605 = vpow.pop %v604
    %v606 = vsel %vm95, %v605, 0.0
    %v607 = vrot.slane %v606, 4
    %v608 = vadd.f32 %v606, %v607
    %v609 = vrot.slane %v608, 2
    %v610 = vadd.f32 %v608, %v609
    %v611 = vrot.slane %v610, 1
    %v612 = vadd.f32 %v610, %v611
    %v613 = vrcp.pop %v612
    %v614 = vmul.f32 %v612, %v613
    %v615 = vsub.f32 2.0, %v614
    %v616 = vmul.f32 %v613, %v615
    %v617 = vmul.f32 %v605, %v616
    %v618 = vsub.f32 0.0, %v595
    %v619 = vmul.f32 %v618, 1.442695
    %v620 = vpow.pop %v619
    %v621 = vld [vmem:[%s0 + $0x4] sm:$0x1]
    %v622 = vperm.slane %v621, 0
    %v623 = vsub.f32 %v622, %v594
    %v625 = vrot.slane %v620, 4
    %v627 = vmul.f32 %v623, %v625
    %v628 = vmul.f32 %v620, 0.3989423
    %v629 = vmul.f32 %v627, -0.5
    %v630 = vmul.f32 %v629, %v627
    %v631 = vmul.f32 %v630, 1.442695
    %v632 = vpow.pop %v631
    %v634 = vrot.slane %v632, 4
    %v636 = vmul.f32 %v628, %v634
    %v637 = vmul.f32 %v617, %v636
    %v638 = vsel %vm95, %v637, 0.0
    %v639 = vrot.slane %v638, 4
    %v640 = vadd.f32 %v638, %v639
    %v641 = vrot.slane %v640, 2
    %v642 = vadd.f32 %v640, %v641
    %v643 = vrot.slane %v642, 1
    %v644 = vadd.f32 %v642, %v643
    %v645 = vadd.f32 %v644, 1e-10
    %v646 = vlog2.pop %v645
    %v647 = vmul.f32 %v646, 0.6931472
    %v648 = vadd.f32 %v525, %v647
    %649 = vset.pattern.permute.xlu0 4
    %650 = vperm.xlu0 %649, %v149
    %v651 = vpop.permute.xlu0 %650
    %653 = vset.pattern.permute.xlu0 4
    %654 = vperm.xlu0 %653, %v150
    %v655 = vpop.permute.xlu0 %654
    %657 = vset.pattern.permute.xlu0 4
    %658 = vperm.xlu0 %657, %v151
    %v659 = vpop.permute.xlu0 %658
    %661 = vset.pattern.permute.xlu0 4
    %662 = vperm.xlu0 %661, %v152
    %v663 = vpop.permute.xlu0 %662
    %v665 = vmul.f32 %v651, %v622
    %v666 = vmul.f32 %v655, %v622
    %v667 = vmul.f32 %v659, %v622
    %v668 = vmul.f32 %v663, %v622
    %v669 = vadd.f32 %v546, %v665
    %v670 = vadd.f32 %v547, %v666
    %v671 = vadd.f32 %v548, %v667
    %v672 = vadd.f32 %v549, %v668
    %v673 = vmax.f32 %v669, 0.0
    %v674 = vmax.f32 %v670, 0.0
    %v675 = vmax.f32 %v671, 0.0
    %v676 = vmax.f32 %v672, 0.0
    %s677 = scalar_lea.vmem %s4, 80
    %v678 = vld [vmem:[%s677] sm:$0xff]
    %v679 = vld [vmem:[%s677 + $0x8] sm:$0xf]
    %v681 = vsel %vm53, %v678, 0
    %v684 = vsel %vm53, %v679, 0
    %686 = vmatpush.msra.mxu0 0.0
    %687 = vmatpush.msra.mxu0 0.0
    %688 = vmatpush.msra.mxu0 0.0
    %689 = vmatpush.msra.mxu0 0.0
    %690 = vmatpush.msra.mxu0 0.0
    %691 = vmatpush.msra.mxu0 0.0
    %692 = vmatpush.msra.mxu0 0.0
    %693 = vmatpush.msra.mxu0 0.0
    %694 = vmatpush.msra.mxu0 0.0
    %695 = vmatpush.msra.mxu0 0.0
    %696 = vmatpush.msra.mxu0 0.0
    %697 = vmatpush.msra.mxu0 0.0
    %698 = vmatpush.msra.mxu0 %v676
    %699 = vmatpush.msra.mxu0 %v675
    %700 = vmatpush.msra.mxu0 %v674
    %701 = vmatpush.msra.mxu0 %v673
    %702 = vmatmul.f32.gmra.mxu0 %v681
    %v703 = vpop.f32.mrf.mxu0
    %v704 = vadd.f32 0.0, %v703
    %705 = vmatmul.f32.gmra.mxu0 %v684
    %v706 = vpop.f32.mrf.mxu0
    %v707 = vadd.f32 0.0, %v706
    %708 = vdwg.mxu0
    %709 = vset.pattern.permute.xlu0 5
    %710 = vperm.xlu0 %709, %v49
    %v711 = vpop.permute.xlu0 %710
    %713 = vset.pattern.permute.xlu0 5
    %714 = vperm.xlu0 %713, %v50
    %v715 = vpop.permute.xlu0 %714
    %v717 = vadd.f32 %v711, %v704
    %v718 = vadd.f32 %v715, %v707
    %v719 = vsel %vm95, %v717, -inf
    %v720 = vrot.slane %v719, 4
    %v721 = vmax.f32 %v719, %v720
    %v722 = vrot.slane %v721, 2
    %v723 = vmax.f32 %v721, %v722
    %v724 = vrot.slane %v723, 1
    %v725 = vmax.f32 %v723, %v724
    %v726 = vsub.f32 %v717, %v725
    %v727 = vmul.f32 %v726, 1.442695
    %v728 = vpow.pop %v727
    %v729 = vsel %vm95, %v728, 0.0
    %v730 = vrot.slane %v729, 4
    %v731 = vadd.f32 %v729, %v730
    %v732 = vrot.slane %v731, 2
    %v733 = vadd.f32 %v731, %v732
    %v734 = vrot.slane %v733, 1
    %v735 = vadd.f32 %v733, %v734
    %v736 = vrcp.pop %v735
    %v737 = vmul.f32 %v735, %v736
    %v738 = vsub.f32 2.0, %v737
    %v739 = vmul.f32 %v736, %v738
    %v740 = vmul.f32 %v728, %v739
    %v741 = vsub.f32 0.0, %v718
    %v742 = vmul.f32 %v741, 1.442695
    %v743 = vpow.pop %v742
    %v744 = vld [vmem:[%s0 + $0x5] sm:$0x1]
    %v745 = vperm.slane %v744, 0
    %v746 = vsub.f32 %v745, %v717
    %v748 = vrot.slane %v743, 4
    %v750 = vmul.f32 %v746, %v748
    %v751 = vmul.f32 %v743, 0.3989423
    %v752 = vmul.f32 %v750, -0.5
    %v753 = vmul.f32 %v752, %v750
    %v754 = vmul.f32 %v753, 1.442695
    %v755 = vpow.pop %v754
    %v757 = vrot.slane %v755, 4
    %v759 = vmul.f32 %v751, %v757
    %v760 = vmul.f32 %v740, %v759
    %v761 = vsel %vm95, %v760, 0.0
    %v762 = vrot.slane %v761, 4
    %v763 = vadd.f32 %v761, %v762
    %v764 = vrot.slane %v763, 2
    %v765 = vadd.f32 %v763, %v764
    %v766 = vrot.slane %v765, 1
    %v767 = vadd.f32 %v765, %v766
    %v768 = vadd.f32 %v767, 1e-10
    %v769 = vlog2.pop %v768
    %v770 = vmul.f32 %v769, 0.6931472
    %v771 = vadd.f32 %v648, %v770
    %772 = vset.pattern.permute.xlu0 5
    %773 = vperm.xlu0 %772, %v149
    %v774 = vpop.permute.xlu0 %773
    %776 = vset.pattern.permute.xlu0 5
    %777 = vperm.xlu0 %776, %v150
    %v778 = vpop.permute.xlu0 %777
    %780 = vset.pattern.permute.xlu0 5
    %781 = vperm.xlu0 %780, %v151
    %v782 = vpop.permute.xlu0 %781
    %784 = vset.pattern.permute.xlu0 5
    %785 = vperm.xlu0 %784, %v152
    %v786 = vpop.permute.xlu0 %785
    %v788 = vmul.f32 %v774, %v745
    %v789 = vmul.f32 %v778, %v745
    %v790 = vmul.f32 %v782, %v745
    %v791 = vmul.f32 %v786, %v745
    %v792 = vadd.f32 %v669, %v788
    %v793 = vadd.f32 %v670, %v789
    %v794 = vadd.f32 %v671, %v790
    %v795 = vadd.f32 %v672, %v791
    %v796 = vmax.f32 %v792, 0.0
    %v797 = vmax.f32 %v793, 0.0
    %v798 = vmax.f32 %v794, 0.0
    %v799 = vmax.f32 %v795, 0.0
    %s800 = scalar_lea.vmem %s4, 96
    %v801 = vld [vmem:[%s800] sm:$0xff]
    %v802 = vld [vmem:[%s800 + $0x8] sm:$0xf]
    %v804 = vsel %vm53, %v801, 0
    %v807 = vsel %vm53, %v802, 0
    %809 = vmatpush.msra.mxu0 0.0
    %810 = vmatpush.msra.mxu0 0.0
    %811 = vmatpush.msra.mxu0 0.0
    %812 = vmatpush.msra.mxu0 0.0
    %813 = vmatpush.msra.mxu0 0.0
    %814 = vmatpush.msra.mxu0 0.0
    %815 = vmatpush.msra.mxu0 0.0
    %816 = vmatpush.msra.mxu0 0.0
    %817 = vmatpush.msra.mxu0 0.0
    %818 = vmatpush.msra.mxu0 0.0
    %819 = vmatpush.msra.mxu0 0.0
    %820 = vmatpush.msra.mxu0 0.0
    %821 = vmatpush.msra.mxu0 %v799
    %822 = vmatpush.msra.mxu0 %v798
    %823 = vmatpush.msra.mxu0 %v797
    %824 = vmatpush.msra.mxu0 %v796
    %825 = vmatmul.f32.gmra.mxu0 %v804
    %v826 = vpop.f32.mrf.mxu0
    %v827 = vadd.f32 0.0, %v826
    %828 = vmatmul.f32.gmra.mxu0 %v807
    %v829 = vpop.f32.mrf.mxu0
    %v830 = vadd.f32 0.0, %v829
    %831 = vdwg.mxu0
    %832 = vset.pattern.permute.xlu0 6
    %833 = vperm.xlu0 %832, %v49
    %v834 = vpop.permute.xlu0 %833
    %836 = vset.pattern.permute.xlu0 6
    %837 = vperm.xlu0 %836, %v50
    %v838 = vpop.permute.xlu0 %837
    %v840 = vadd.f32 %v834, %v827
    %v841 = vadd.f32 %v838, %v830
    %v842 = vsel %vm95, %v840, -inf
    %v843 = vrot.slane %v842, 4
    %v844 = vmax.f32 %v842, %v843
    %v845 = vrot.slane %v844, 2
    %v846 = vmax.f32 %v844, %v845
    %v847 = vrot.slane %v846, 1
    %v848 = vmax.f32 %v846, %v847
    %v849 = vsub.f32 %v840, %v848
    %v850 = vmul.f32 %v849, 1.442695
    %v851 = vpow.pop %v850
    %v852 = vsel %vm95, %v851, 0.0
    %v853 = vrot.slane %v852, 4
    %v854 = vadd.f32 %v852, %v853
    %v855 = vrot.slane %v854, 2
    %v856 = vadd.f32 %v854, %v855
    %v857 = vrot.slane %v856, 1
    %v858 = vadd.f32 %v856, %v857
    %v859 = vrcp.pop %v858
    %v860 = vmul.f32 %v858, %v859
    %v861 = vsub.f32 2.0, %v860
    %v862 = vmul.f32 %v859, %v861
    %v863 = vmul.f32 %v851, %v862
    %v864 = vsub.f32 0.0, %v841
    %v865 = vmul.f32 %v864, 1.442695
    %v866 = vpow.pop %v865
    %v867 = vld [vmem:[%s0 + $0x6] sm:$0x1]
    %v868 = vperm.slane %v867, 0
    %v869 = vsub.f32 %v868, %v840
    %v871 = vrot.slane %v866, 4
    %v873 = vmul.f32 %v869, %v871
    %v874 = vmul.f32 %v866, 0.3989423
    %v875 = vmul.f32 %v873, -0.5
    %v876 = vmul.f32 %v875, %v873
    %v877 = vmul.f32 %v876, 1.442695
    %v878 = vpow.pop %v877
    %v880 = vrot.slane %v878, 4
    %v882 = vmul.f32 %v874, %v880
    %v883 = vmul.f32 %v863, %v882
    %v884 = vsel %vm95, %v883, 0.0
    %v885 = vrot.slane %v884, 4
    %v886 = vadd.f32 %v884, %v885
    %v887 = vrot.slane %v886, 2
    %v888 = vadd.f32 %v886, %v887
    %v889 = vrot.slane %v888, 1
    %v890 = vadd.f32 %v888, %v889
    %v891 = vadd.f32 %v890, 1e-10
    %v892 = vlog2.pop %v891
    %v893 = vmul.f32 %v892, 0.6931472
    %v894 = vadd.f32 %v771, %v893
    %895 = vset.pattern.permute.xlu0 6
    %896 = vperm.xlu0 %895, %v149
    %v897 = vpop.permute.xlu0 %896
    %899 = vset.pattern.permute.xlu0 6
    %900 = vperm.xlu0 %899, %v150
    %v901 = vpop.permute.xlu0 %900
    %903 = vset.pattern.permute.xlu0 6
    %904 = vperm.xlu0 %903, %v151
    %v905 = vpop.permute.xlu0 %904
    %907 = vset.pattern.permute.xlu0 6
    %908 = vperm.xlu0 %907, %v152
    %v909 = vpop.permute.xlu0 %908
    %v911 = vmul.f32 %v897, %v868
    %v912 = vmul.f32 %v901, %v868
    %v913 = vmul.f32 %v905, %v868
    %v914 = vmul.f32 %v909, %v868
    %v915 = vadd.f32 %v792, %v911
    %v916 = vadd.f32 %v793, %v912
    %v917 = vadd.f32 %v794, %v913
    %v918 = vadd.f32 %v795, %v914
    %v919 = vmax.f32 %v915, 0.0
    %v920 = vmax.f32 %v916, 0.0
    %v921 = vmax.f32 %v917, 0.0
    %v922 = vmax.f32 %v918, 0.0
    %s923 = scalar_lea.vmem %s4, 112
    %v924 = vld [vmem:[%s923] sm:$0xff]
    %v925 = vld [vmem:[%s923 + $0x8] sm:$0xf]
    %v927 = vsel %vm53, %v924, 0
    %v930 = vsel %vm53, %v925, 0
    %932 = vmatpush.msra.mxu0 0.0
    %933 = vmatpush.msra.mxu0 0.0
    %934 = vmatpush.msra.mxu0 0.0
    %935 = vmatpush.msra.mxu0 0.0
    %936 = vmatpush.msra.mxu0 0.0
    %937 = vmatpush.msra.mxu0 0.0
    %938 = vmatpush.msra.mxu0 0.0
    %939 = vmatpush.msra.mxu0 0.0
    %940 = vmatpush.msra.mxu0 0.0
    %941 = vmatpush.msra.mxu0 0.0
    %942 = vmatpush.msra.mxu0 0.0
    %943 = vmatpush.msra.mxu0 0.0
    %944 = vmatpush.msra.mxu0 %v922
    %945 = vmatpush.msra.mxu0 %v921
    %946 = vmatpush.msra.mxu0 %v920
    %947 = vmatpush.msra.mxu0 %v919
    %948 = vmatmul.f32.gmra.mxu0 %v927
    %v949 = vpop.f32.mrf.mxu0
    %v950 = vadd.f32 0.0, %v949
    %951 = vmatmul.f32.gmra.mxu0 %v930
    %v952 = vpop.f32.mrf.mxu0
    %v953 = vadd.f32 0.0, %v952
    %954 = vdwg.mxu0
    %955 = vset.pattern.permute.xlu0 7
    %956 = vperm.xlu0 %955, %v49
    %v957 = vpop.permute.xlu0 %956
    %959 = vset.pattern.permute.xlu0 7
    %960 = vperm.xlu0 %959, %v50
    %v961 = vpop.permute.xlu0 %960
    %v963 = vadd.f32 %v957, %v950
    %v964 = vadd.f32 %v961, %v953
    %v965 = vsel %vm95, %v963, -inf
    %v966 = vrot.slane %v965, 4
    %v967 = vmax.f32 %v965, %v966
    %v968 = vrot.slane %v967, 2
    %v969 = vmax.f32 %v967, %v968
    %v970 = vrot.slane %v969, 1
    %v971 = vmax.f32 %v969, %v970
    %v972 = vsub.f32 %v963, %v971
    %v973 = vmul.f32 %v972, 1.442695
    %v974 = vpow.pop %v973
    %v975 = vsel %vm95, %v974, 0.0
    %v976 = vrot.slane %v975, 4
    %v977 = vadd.f32 %v975, %v976
    %v978 = vrot.slane %v977, 2
    %v979 = vadd.f32 %v977, %v978
    %v980 = vrot.slane %v979, 1
    %v981 = vadd.f32 %v979, %v980
    %v982 = vrcp.pop %v981
    %v983 = vmul.f32 %v981, %v982
    %v984 = vsub.f32 2.0, %v983
    %v985 = vmul.f32 %v982, %v984
    %v986 = vmul.f32 %v974, %v985
    %v987 = vsub.f32 0.0, %v964
    %v988 = vmul.f32 %v987, 1.442695
    %v989 = vpow.pop %v988
    %v990 = vld [vmem:[%s0 + $0x7] sm:$0x1]
    %v991 = vperm.slane %v990, 0
    %v992 = vsub.f32 %v991, %v963
    %v994 = vrot.slane %v989, 4
    %v996 = vmul.f32 %v992, %v994
    %v997 = vmul.f32 %v989, 0.3989423
    %v998 = vmul.f32 %v996, -0.5
    %v999 = vmul.f32 %v998, %v996
    %v1000 = vmul.f32 %v999, 1.442695
    %v1001 = vpow.pop %v1000
    %v1003 = vrot.slane %v1001, 4
    %v1005 = vmul.f32 %v997, %v1003
    %v1006 = vmul.f32 %v986, %v1005
    %v1007 = vsel %vm95, %v1006, 0.0
    %v1008 = vrot.slane %v1007, 4
    %v1009 = vadd.f32 %v1007, %v1008
    %v1010 = vrot.slane %v1009, 2
    %v1011 = vadd.f32 %v1009, %v1010
    %v1012 = vrot.slane %v1011, 1
    %v1013 = vadd.f32 %v1011, %v1012
    %v1014 = vadd.f32 %v1013, 1e-10
    %v1015 = vlog2.pop %v1014
    %v1016 = vmul.f32 %v1015, 0.6931472
    %v1017 = vadd.f32 %v894, %v1016
    %1018 = vst [vmem:[#allocation2] sm:$0x1] %v1017
    // Predicated region
    $region22: #{tpu_custom_call.1} parent=1 // pred_check
      _
    $region23: #{tpu_custom_call.1} parent=1 // pred_check_branch
      %1020 = sbr.rel (0) target = $region25
    $region24: #{tpu_custom_call.1} parent=1 // pred_region
      %1022 = vsyncadd [#allocation3], 0
      %s1024 = sshll.u32 [#allocation2], 4
      %s1025 = int_to_ptr.vmem [resolvable:$true] %s1024
      %s1026 = sshll.u32 %s5, 4
      %s1027 = int_to_ptr.hbm [resolvable:$true] %s1026
      %1029 = dma.vmem_to_hbm [thread:$0]  %s1025, 16, %s1027, [#allocation3]
    $region25: #{tpu_custom_call.1} parent=1 // pred_fallthru
      _
    // Predicated region
    $region26: #{tpu_custom_call.1} parent=1 // pred_check
      _
    $region27: #{tpu_custom_call.1} parent=1 // pred_check_branch
      %1031 = sbr.rel (0) target = $region29
    $region28: #{tpu_custom_call.1} parent=1 // pred_region
      %1033 = dma.done [#allocation3], 16
    $region29: #{tpu_custom_call.1} parent=1 // pred_fallthru
      _
    %1034 = vsyncpa [#allocation3], 1

// kernel: tpu_custom_call.1
$region0: #{tpu_custom_call.1}
  #allocation0 [shape = 'u32[]', space=smem, size = 0x4, offset = 0x4, fixed_abs, tag = 'smem constant byte address 0x4 - core index']
  #allocation1 [shape = 'u32[72,128]{1,0:T(1,128)}', space=vmem, size = 0x9000, scoped, tag = 'internal scratch']
  %s0 = inlined_call_operand.vmem [shape: f32[8,128], index: 0, kind: input, shape index: {}]
  %s1 = inlined_call_operand.vmem [shape: f32[32,8], index: 1, kind: input, shape index: {}]
  %s2 = inlined_call_operand.vmem [shape: f32[32,1], index: 2, kind: input, shape index: {}]
  %s3 = inlined_call_operand.vmem [shape: f32[12,8], index: 3, kind: input, shape index: {}]
  %s4 = inlined_call_operand.vmem [shape: f32[8,12,32], index: 4, kind: input, shape index: {}]
  %s5 = inlined_call_operand.hbm [shape: f32[1,128], index: 5, kind: output, shape index: {}]
  %s6 = sld [smem:[#allocation0]]
  $region30: #{tpu_custom_call.1} parent=0
    _
  %s8 = ssub.s32 1, %s6
  %s9 = scalar_select 0, %s8, %s6
  $region1: #{tpu_custom_call.1} parent=0
    #allocation2 [shape = 'u8[512]{0}', space=vmem, size = 0x400, scoped, tag = 'output window, operand 0, single buffered']
    #allocation3 [shape = 's32[1]{0}', space=sflag, size = 0x4, scoped, tag = 'scoped memory for tpu_custom_call.1']
    %10 = vsyncpa [#allocation3], 0
    // Predicated region
    $region2: #{tpu_custom_call.1} parent=1 // pred_check
      _
    $region3: #{tpu_custom_call.1} parent=1 // pred_check_branch
      %12 = sbr.rel (0) target = $region5
    $region4: #{tpu_custom_call.1} parent=1 // pred_region
      _
    $region5: #{tpu_custom_call.1} parent=1 // pred_fallthru
      _
    // Predicated region
    $region6: #{tpu_custom_call.1} parent=1 // pred_check
      _
    $region7: #{tpu_custom_call.1} parent=1 // pred_check_branch
      %14 = sbr.rel (0) target = $region9
    $region8: #{tpu_custom_call.1} parent=1 // pred_region
      _
    $region9: #{tpu_custom_call.1} parent=1 // pred_fallthru
      _
    // Predicated region
    $region10: #{tpu_custom_call.1} parent=1 // pred_check
      _
    $region11: #{tpu_custom_call.1} parent=1 // pred_check_branch
      %16 = sbr.rel (0) target = $region13
    $region12: #{tpu_custom_call.1} parent=1 // pred_region
      _
    $region13: #{tpu_custom_call.1} parent=1 // pred_fallthru
      _
    // Predicated region
    $region14: #{tpu_custom_call.1} parent=1 // pred_check
      _
    $region15: #{tpu_custom_call.1} parent=1 // pred_check_branch
      %18 = sbr.rel (0) target = $region17
    $region16: #{tpu_custom_call.1} parent=1 // pred_region
      _
    $region17: #{tpu_custom_call.1} parent=1 // pred_fallthru
      _
    // Predicated region
    $region18: #{tpu_custom_call.1} parent=1 // pred_check
      _
    $region19: #{tpu_custom_call.1} parent=1 // pred_check_branch
      %20 = sbr.rel (0) target = $region21
    $region20: #{tpu_custom_call.1} parent=1 // pred_region
      _
    $region21: #{tpu_custom_call.1} parent=1 // pred_fallthru
      _
    %v21 = vld [vmem:[%s2] sm:$0xff]
    %v22 = vld [vmem:[%s2 + $0x8] sm:$0xff]
    %v23 = vld [vmem:[%s2 + $0x10] sm:$0xff]
    %v24 = vld [vmem:[%s2 + $0x18] sm:$0xff]
    %26 = vset.pattern.permute.xlu0 0
    %27 = vperm.xlu0 %26, %v21
    %v28 = vpop.permute.xlu0 %27
    %31 = vset.pattern.permute.xlu0 0
    %32 = vperm.xlu0 %31, %v22
    %v33 = vpop.permute.xlu0 %32
    %36 = vset.pattern.permute.xlu0 0
    %37 = vperm.xlu0 %36, %v23
    %v38 = vpop.permute.xlu0 %37
    %41 = vset.pattern.permute.xlu0 0
    %42 = vperm.xlu0 %41, %v24
    %v43 = vpop.permute.xlu0 %42
    %v45 = vmax.f32 %v28, 0.0
    %v46 = vmax.f32 %v33, 0.0
    %v47 = vmax.f32 %v38, 0.0
    %v48 = vmax.f32 %v43, 0.0
    %v49 = vld [vmem:[%s3] sm:$0xff]
    %v50 = vld [vmem:[%s3 + $0x8] sm:$0xf]
    %v51 = vld [vmem:[%s4] sm:$0xff]
    %v52 = vld [vmem:[%s4 + $0x8] sm:$0xf]
    %vm53 = vcmask 261120
    %v55 = vsel %vm53, %v51, 0
    %v58 = vsel %vm53, %v52, 0
    %60 = vmatpush.msra.mxu0 0.0
    %61 = vmatpush.msra.mxu0 0.0
    %62 = vmatpush.msra.mxu0 0.0
    %63 = vmatpush.msra.mxu0 0.0
    %64 = vmatpush.msra.mxu0 0.0
    %65 = vmatpush.msra.mxu0 0.0
    %66 = vmatpush.msra.mxu0 0.0
    %67 = vmatpush.msra.mxu0 0.0
    %68 = vmatpush.msra.mxu0 0.0
    %69 = vmatpush.msra.mxu0 0.0
    %70 = vmatpush.msra.mxu0 0.0
    %71 = vmatpush.msra.mxu0 0.0
    %72 = vmatpush.msra.mxu0 %v48
    %73 = vmatpush.msra.mxu0 %v47
    %74 = vmatpush.msra.mxu0 %v46
    %75 = vmatpush.msra.mxu0 %v45
    %76 = vmatmul.f32.gmra.mxu0 %v55
    %v77 = vpop.f32.mrf.mxu0
    %v78 = vadd.f32 0.0, %v77
    %79 = vmatmul.f32.gmra.mxu0 %v58
    %v80 = vpop.f32.mrf.mxu0
    %v81 = vadd.f32 0.0, %v80
    %82 = vdwg.mxu0
    %84 = vset.pattern.permute.xlu0 0
    %85 = vperm.xlu0 %84, %v49
    %v86 = vpop.permute.xlu0 %85
    %89 = vset.pattern.permute.xlu0 0
    %90 = vperm.xlu0 %89, %v50
    %v91 = vpop.permute.xlu0 %90
    %v93 = vadd.f32 %v86, %v78
    %v94 = vadd.f32 %v91, %v81
    %vm95 = vcmask 1043456
    %v96 = vsel %vm95, %v93, -inf
    %v97 = vrot.slane %v96, 4
    %v98 = vmax.f32 %v96, %v97
    %v99 = vrot.slane %v98, 2
    %v100 = vmax.f32 %v98, %v99
    %v101 = vrot.slane %v100, 1
    %v102 = vmax.f32 %v100, %v101
    %v103 = vsub.f32 %v93, %v102
    %v104 = vmul.f32 %v103, 1.442695
    %v105 = vpow.pop %v104
    %v106 = vsel %vm95, %v105, 0.0
    %v107 = vrot.slane %v106, 4
    %v108 = vadd.f32 %v106, %v107
    %v109 = vrot.slane %v108, 2
    %v110 = vadd.f32 %v108, %v109
    %v111 = vrot.slane %v110, 1
    %v112 = vadd.f32 %v110, %v111
    %v113 = vrcp.pop %v112
    %v114 = vmul.f32 %v112, %v113
    %v115 = vsub.f32 2.0, %v114
    %v116 = vmul.f32 %v113, %v115
    %v117 = vmul.f32 %v105, %v116
    %v118 = vsub.f32 0.0, %v94
    %v119 = vmul.f32 %v118, 1.442695
    %v120 = vpow.pop %v119
    %v121 = vld [vmem:[%s0] sm:$0x1]
    %v122 = vperm.slane %v121, 0
    %v123 = vsub.f32 %v122, %v93
    %v125 = vrot.slane %v120, 4
    %v127 = vmul.f32 %v123, %v125
    %v128 = vmul.f32 %v120, 0.3989423
    %v129 = vmul.f32 %v127, -0.5
    %v130 = vmul.f32 %v129, %v127
    %v131 = vmul.f32 %v130, 1.442695
    %v132 = vpow.pop %v131
    %v134 = vrot.slane %v132, 4
    %v136 = vmul.f32 %v128, %v134
    %v137 = vmul.f32 %v117, %v136
    %v138 = vsel %vm95, %v137, 0.0
    %v139 = vrot.slane %v138, 4
    %v140 = vadd.f32 %v138, %v139
    %v141 = vrot.slane %v140, 2
    %v142 = vadd.f32 %v140, %v141
    %v143 = vrot.slane %v142, 1
    %v144 = vadd.f32 %v142, %v143
    %v145 = vadd.f32 %v144, 1e-10
    %v146 = vlog2.pop %v145
    %v147 = vmul.f32 %v146, 0.6931472
    %v148 = vadd.f32 %v147, 0.0
    %v149 = vld [vmem:[%s1] sm:$0xff]
    %v150 = vld [vmem:[%s1 + $0x8] sm:$0xff]
    %v151 = vld [vmem:[%s1 + $0x10] sm:$0xff]
    %v152 = vld [vmem:[%s1 + $0x18] sm:$0xff]
    %154 = vset.pattern.permute.xlu0 0
    %155 = vperm.xlu0 %154, %v149
    %v156 = vpop.permute.xlu0 %155
    %159 = vset.pattern.permute.xlu0 0
    %160 = vperm.xlu0 %159, %v150
    %v161 = vpop.permute.xlu0 %160
    %164 = vset.pattern.permute.xlu0 0
    %165 = vperm.xlu0 %164, %v151
    %v166 = vpop.permute.xlu0 %165
    %169 = vset.pattern.permute.xlu0 0
    %170 = vperm.xlu0 %169, %v152
    %v171 = vpop.permute.xlu0 %170
    %v173 = vmul.f32 %v156, %v122
    %v174 = vmul.f32 %v161, %v122
    %v175 = vmul.f32 %v166, %v122
    %v176 = vmul.f32 %v171, %v122
    %v177 = vadd.f32 %v28, %v173
    %v178 = vadd.f32 %v33, %v174
    %v179 = vadd.f32 %v38, %v175
    %v180 = vadd.f32 %v43, %v176
    %v181 = vmax.f32 %v177, 0.0
    %v182 = vmax.f32 %v178, 0.0
    %v183 = vmax.f32 %v179, 0.0
    %v184 = vmax.f32 %v180, 0.0
    %s185 = scalar_lea.vmem %s4, 16
    %v186 = vld [vmem:[%s185] sm:$0xff]
    %v187 = vld [vmem:[%s185 + $0x8] sm:$0xf]
    %v189 = vsel %vm53, %v186, 0
    %v192 = vsel %vm53, %v187, 0
    %194 = vmatpush.msra.mxu0 0.0
    %195 = vmatpush.msra.mxu0 0.0
    %196 = vmatpush.msra.mxu0 0.0
    %197 = vmatpush.msra.mxu0 0.0
    %198 = vmatpush.msra.mxu0 0.0
    %199 = vmatpush.msra.mxu0 0.0
    %200 = vmatpush.msra.mxu0 0.0
    %201 = vmatpush.msra.mxu0 0.0
    %202 = vmatpush.msra.mxu0 0.0
    %203 = vmatpush.msra.mxu0 0.0
    %204 = vmatpush.msra.mxu0 0.0
    %205 = vmatpush.msra.mxu0 0.0
    %206 = vmatpush.msra.mxu0 %v184
    %207 = vmatpush.msra.mxu0 %v183
    %208 = vmatpush.msra.mxu0 %v182
    %209 = vmatpush.msra.mxu0 %v181
    %210 = vmatmul.f32.gmra.mxu0 %v189
    %v211 = vpop.f32.mrf.mxu0
    %v212 = vadd.f32 0.0, %v211
    %213 = vmatmul.f32.gmra.mxu0 %v192
    %v214 = vpop.f32.mrf.mxu0
    %v215 = vadd.f32 0.0, %v214
    %216 = vdwg.mxu0
    %217 = vset.pattern.permute.xlu0 1
    %218 = vperm.xlu0 %217, %v49
    %v219 = vpop.permute.xlu0 %218
    %221 = vset.pattern.permute.xlu0 1
    %222 = vperm.xlu0 %221, %v50
    %v223 = vpop.permute.xlu0 %222
    %v225 = vadd.f32 %v219, %v212
    %v226 = vadd.f32 %v223, %v215
    %v227 = vsel %vm95, %v225, -inf
    %v228 = vrot.slane %v227, 4
    %v229 = vmax.f32 %v227, %v228
    %v230 = vrot.slane %v229, 2
    %v231 = vmax.f32 %v229, %v230
    %v232 = vrot.slane %v231, 1
    %v233 = vmax.f32 %v231, %v232
    %v234 = vsub.f32 %v225, %v233
    %v235 = vmul.f32 %v234, 1.442695
    %v236 = vpow.pop %v235
    %v237 = vsel %vm95, %v236, 0.0
    %v238 = vrot.slane %v237, 4
    %v239 = vadd.f32 %v237, %v238
    %v240 = vrot.slane %v239, 2
    %v241 = vadd.f32 %v239, %v240
    %v242 = vrot.slane %v241, 1
    %v243 = vadd.f32 %v241, %v242
    %v244 = vrcp.pop %v243
    %v245 = vmul.f32 %v243, %v244
    %v246 = vsub.f32 2.0, %v245
    %v247 = vmul.f32 %v244, %v246
    %v248 = vmul.f32 %v236, %v247
    %v249 = vsub.f32 0.0, %v226
    %v250 = vmul.f32 %v249, 1.442695
    %v251 = vpow.pop %v250
    %v252 = vld [vmem:[%s0 + $0x1] sm:$0x1]
    %v253 = vperm.slane %v252, 0
    %v254 = vsub.f32 %v253, %v225
    %v256 = vrot.slane %v251, 4
    %v258 = vmul.f32 %v254, %v256
    %v259 = vmul.f32 %v251, 0.3989423
    %v260 = vmul.f32 %v258, -0.5
    %v261 = vmul.f32 %v260, %v258
    %v262 = vmul.f32 %v261, 1.442695
    %v263 = vpow.pop %v262
    %v265 = vrot.slane %v263, 4
    %v267 = vmul.f32 %v259, %v265
    %v268 = vmul.f32 %v248, %v267
    %v269 = vsel %vm95, %v268, 0.0
    %v270 = vrot.slane %v269, 4
    %v271 = vadd.f32 %v269, %v270
    %v272 = vrot.slane %v271, 2
    %v273 = vadd.f32 %v271, %v272
    %v274 = vrot.slane %v273, 1
    %v275 = vadd.f32 %v273, %v274
    %v276 = vadd.f32 %v275, 1e-10
    %v277 = vlog2.pop %v276
    %v278 = vmul.f32 %v277, 0.6931472
    %v279 = vadd.f32 %v148, %v278
    %280 = vset.pattern.permute.xlu0 1
    %281 = vperm.xlu0 %280, %v149
    %v282 = vpop.permute.xlu0 %281
    %284 = vset.pattern.permute.xlu0 1
    %285 = vperm.xlu0 %284, %v150
    %v286 = vpop.permute.xlu0 %285
    %288 = vset.pattern.permute.xlu0 1
    %289 = vperm.xlu0 %288, %v151
    %v290 = vpop.permute.xlu0 %289
    %292 = vset.pattern.permute.xlu0 1
    %293 = vperm.xlu0 %292, %v152
    %v294 = vpop.permute.xlu0 %293
    %v296 = vmul.f32 %v282, %v253
    %v297 = vmul.f32 %v286, %v253
    %v298 = vmul.f32 %v290, %v253
    %v299 = vmul.f32 %v294, %v253
    %v300 = vadd.f32 %v177, %v296
    %v301 = vadd.f32 %v178, %v297
    %v302 = vadd.f32 %v179, %v298
    %v303 = vadd.f32 %v180, %v299
    %v304 = vmax.f32 %v300, 0.0
    %v305 = vmax.f32 %v301, 0.0
    %v306 = vmax.f32 %v302, 0.0
    %v307 = vmax.f32 %v303, 0.0
    %s308 = scalar_lea.vmem %s4, 32
    %v309 = vld [vmem:[%s308] sm:$0xff]
    %v310 = vld [vmem:[%s308 + $0x8] sm:$0xf]
    %v312 = vsel %vm53, %v309, 0
    %v315 = vsel %vm53, %v310, 0
    %317 = vmatpush.msra.mxu0 0.0
    %318 = vmatpush.msra.mxu0 0.0
    %319 = vmatpush.msra.mxu0 0.0
    %320 = vmatpush.msra.mxu0 0.0
    %321 = vmatpush.msra.mxu0 0.0
    %322 = vmatpush.msra.mxu0 0.0
    %323 = vmatpush.msra.mxu0 0.0
    %324 = vmatpush.msra.mxu0 0.0
    %325 = vmatpush.msra.mxu0 0.0
    %326 = vmatpush.msra.mxu0 0.0
    %327 = vmatpush.msra.mxu0 0.0
    %328 = vmatpush.msra.mxu0 0.0
    %329 = vmatpush.msra.mxu0 %v307
    %330 = vmatpush.msra.mxu0 %v306
    %331 = vmatpush.msra.mxu0 %v305
    %332 = vmatpush.msra.mxu0 %v304
    %333 = vmatmul.f32.gmra.mxu0 %v312
    %v334 = vpop.f32.mrf.mxu0
    %v335 = vadd.f32 0.0, %v334
    %336 = vmatmul.f32.gmra.mxu0 %v315
    %v337 = vpop.f32.mrf.mxu0
    %v338 = vadd.f32 0.0, %v337
    %339 = vdwg.mxu0
    %340 = vset.pattern.permute.xlu0 2
    %341 = vperm.xlu0 %340, %v49
    %v342 = vpop.permute.xlu0 %341
    %344 = vset.pattern.permute.xlu0 2
    %345 = vperm.xlu0 %344, %v50
    %v346 = vpop.permute.xlu0 %345
    %v348 = vadd.f32 %v342, %v335
    %v349 = vadd.f32 %v346, %v338
    %v350 = vsel %vm95, %v348, -inf
    %v351 = vrot.slane %v350, 4
    %v352 = vmax.f32 %v350, %v351
    %v353 = vrot.slane %v352, 2
    %v354 = vmax.f32 %v352, %v353
    %v355 = vrot.slane %v354, 1
    %v356 = vmax.f32 %v354, %v355
    %v357 = vsub.f32 %v348, %v356
    %v358 = vmul.f32 %v357, 1.442695
    %v359 = vpow.pop %v358
    %v360 = vsel %vm95, %v359, 0.0
    %v361 = vrot.slane %v360, 4
    %v362 = vadd.f32 %v360, %v361
    %v363 = vrot.slane %v362, 2
    %v364 = vadd.f32 %v362, %v363
    %v365 = vrot.slane %v364, 1
    %v366 = vadd.f32 %v364, %v365
    %v367 = vrcp.pop %v366
    %v368 = vmul.f32 %v366, %v367
    %v369 = vsub.f32 2.0, %v368
    %v370 = vmul.f32 %v367, %v369
    %v371 = vmul.f32 %v359, %v370
    %v372 = vsub.f32 0.0, %v349
    %v373 = vmul.f32 %v372, 1.442695
    %v374 = vpow.pop %v373
    %v375 = vld [vmem:[%s0 + $0x2] sm:$0x1]
    %v376 = vperm.slane %v375, 0
    %v377 = vsub.f32 %v376, %v348
    %v379 = vrot.slane %v374, 4
    %v381 = vmul.f32 %v377, %v379
    %v382 = vmul.f32 %v374, 0.3989423
    %v383 = vmul.f32 %v381, -0.5
    %v384 = vmul.f32 %v383, %v381
    %v385 = vmul.f32 %v384, 1.442695
    %v386 = vpow.pop %v385
    %v388 = vrot.slane %v386, 4
    %v390 = vmul.f32 %v382, %v388
    %v391 = vmul.f32 %v371, %v390
    %v392 = vsel %vm95, %v391, 0.0
    %v393 = vrot.slane %v392, 4
    %v394 = vadd.f32 %v392, %v393
    %v395 = vrot.slane %v394, 2
    %v396 = vadd.f32 %v394, %v395
    %v397 = vrot.slane %v396, 1
    %v398 = vadd.f32 %v396, %v397
    %v399 = vadd.f32 %v398, 1e-10
    %v400 = vlog2.pop %v399
    %v401 = vmul.f32 %v400, 0.6931472
    %v402 = vadd.f32 %v279, %v401
    %403 = vset.pattern.permute.xlu0 2
    %404 = vperm.xlu0 %403, %v149
    %v405 = vpop.permute.xlu0 %404
    %407 = vset.pattern.permute.xlu0 2
    %408 = vperm.xlu0 %407, %v150
    %v409 = vpop.permute.xlu0 %408
    %411 = vset.pattern.permute.xlu0 2
    %412 = vperm.xlu0 %411, %v151
    %v413 = vpop.permute.xlu0 %412
    %415 = vset.pattern.permute.xlu0 2
    %416 = vperm.xlu0 %415, %v152
    %v417 = vpop.permute.xlu0 %416
    %v419 = vmul.f32 %v405, %v376
    %v420 = vmul.f32 %v409, %v376
    %v421 = vmul.f32 %v413, %v376
    %v422 = vmul.f32 %v417, %v376
    %v423 = vadd.f32 %v300, %v419
    %v424 = vadd.f32 %v301, %v420
    %v425 = vadd.f32 %v302, %v421
    %v426 = vadd.f32 %v303, %v422
    %v427 = vmax.f32 %v423, 0.0
    %v428 = vmax.f32 %v424, 0.0
    %v429 = vmax.f32 %v425, 0.0
    %v430 = vmax.f32 %v426, 0.0
    %s431 = scalar_lea.vmem %s4, 48
    %v432 = vld [vmem:[%s431] sm:$0xff]
    %v433 = vld [vmem:[%s431 + $0x8] sm:$0xf]
    %v435 = vsel %vm53, %v432, 0
    %v438 = vsel %vm53, %v433, 0
    %440 = vmatpush.msra.mxu0 0.0
    %441 = vmatpush.msra.mxu0 0.0
    %442 = vmatpush.msra.mxu0 0.0
    %443 = vmatpush.msra.mxu0 0.0
    %444 = vmatpush.msra.mxu0 0.0
    %445 = vmatpush.msra.mxu0 0.0
    %446 = vmatpush.msra.mxu0 0.0
    %447 = vmatpush.msra.mxu0 0.0
    %448 = vmatpush.msra.mxu0 0.0
    %449 = vmatpush.msra.mxu0 0.0
    %450 = vmatpush.msra.mxu0 0.0
    %451 = vmatpush.msra.mxu0 0.0
    %452 = vmatpush.msra.mxu0 %v430
    %453 = vmatpush.msra.mxu0 %v429
    %454 = vmatpush.msra.mxu0 %v428
    %455 = vmatpush.msra.mxu0 %v427
    %456 = vmatmul.f32.gmra.mxu0 %v435
    %v457 = vpop.f32.mrf.mxu0
    %v458 = vadd.f32 0.0, %v457
    %459 = vmatmul.f32.gmra.mxu0 %v438
    %v460 = vpop.f32.mrf.mxu0
    %v461 = vadd.f32 0.0, %v460
    %462 = vdwg.mxu0
    %463 = vset.pattern.permute.xlu0 3
    %464 = vperm.xlu0 %463, %v49
    %v465 = vpop.permute.xlu0 %464
    %467 = vset.pattern.permute.xlu0 3
    %468 = vperm.xlu0 %467, %v50
    %v469 = vpop.permute.xlu0 %468
    %v471 = vadd.f32 %v465, %v458
    %v472 = vadd.f32 %v469, %v461
    %v473 = vsel %vm95, %v471, -inf
    %v474 = vrot.slane %v473, 4
    %v475 = vmax.f32 %v473, %v474
    %v476 = vrot.slane %v475, 2
    %v477 = vmax.f32 %v475, %v476
    %v478 = vrot.slane %v477, 1
    %v479 = vmax.f32 %v477, %v478
    %v480 = vsub.f32 %v471, %v479
    %v481 = vmul.f32 %v480, 1.442695
    %v482 = vpow.pop %v481
    %v483 = vsel %vm95, %v482, 0.0
    %v484 = vrot.slane %v483, 4
    %v485 = vadd.f32 %v483, %v484
    %v486 = vrot.slane %v485, 2
    %v487 = vadd.f32 %v485, %v486
    %v488 = vrot.slane %v487, 1
    %v489 = vadd.f32 %v487, %v488
    %v490 = vrcp.pop %v489
    %v491 = vmul.f32 %v489, %v490
    %v492 = vsub.f32 2.0, %v491
    %v493 = vmul.f32 %v490, %v492
    %v494 = vmul.f32 %v482, %v493
    %v495 = vsub.f32 0.0, %v472
    %v496 = vmul.f32 %v495, 1.442695
    %v497 = vpow.pop %v496
    %v498 = vld [vmem:[%s0 + $0x3] sm:$0x1]
    %v499 = vperm.slane %v498, 0
    %v500 = vsub.f32 %v499, %v471
    %v502 = vrot.slane %v497, 4
    %v504 = vmul.f32 %v500, %v502
    %v505 = vmul.f32 %v497, 0.3989423
    %v506 = vmul.f32 %v504, -0.5
    %v507 = vmul.f32 %v506, %v504
    %v508 = vmul.f32 %v507, 1.442695
    %v509 = vpow.pop %v508
    %v511 = vrot.slane %v509, 4
    %v513 = vmul.f32 %v505, %v511
    %v514 = vmul.f32 %v494, %v513
    %v515 = vsel %vm95, %v514, 0.0
    %v516 = vrot.slane %v515, 4
    %v517 = vadd.f32 %v515, %v516
    %v518 = vrot.slane %v517, 2
    %v519 = vadd.f32 %v517, %v518
    %v520 = vrot.slane %v519, 1
    %v521 = vadd.f32 %v519, %v520
    %v522 = vadd.f32 %v521, 1e-10
    %v523 = vlog2.pop %v522
    %v524 = vmul.f32 %v523, 0.6931472
    %v525 = vadd.f32 %v402, %v524
    %526 = vset.pattern.permute.xlu0 3
    %527 = vperm.xlu0 %526, %v149
    %v528 = vpop.permute.xlu0 %527
    %530 = vset.pattern.permute.xlu0 3
    %531 = vperm.xlu0 %530, %v150
    %v532 = vpop.permute.xlu0 %531
    %534 = vset.pattern.permute.xlu0 3
    %535 = vperm.xlu0 %534, %v151
    %v536 = vpop.permute.xlu0 %535
    %538 = vset.pattern.permute.xlu0 3
    %539 = vperm.xlu0 %538, %v152
    %v540 = vpop.permute.xlu0 %539
    %v542 = vmul.f32 %v528, %v499
    %v543 = vmul.f32 %v532, %v499
    %v544 = vmul.f32 %v536, %v499
    %v545 = vmul.f32 %v540, %v499
    %v546 = vadd.f32 %v423, %v542
    %v547 = vadd.f32 %v424, %v543
    %v548 = vadd.f32 %v425, %v544
    %v549 = vadd.f32 %v426, %v545
    %v550 = vmax.f32 %v546, 0.0
    %v551 = vmax.f32 %v547, 0.0
    %v552 = vmax.f32 %v548, 0.0
    %v553 = vmax.f32 %v549, 0.0
    %s554 = scalar_lea.vmem %s4, 64
    %v555 = vld [vmem:[%s554] sm:$0xff]
    %v556 = vld [vmem:[%s554 + $0x8] sm:$0xf]
    %v558 = vsel %vm53, %v555, 0
    %v561 = vsel %vm53, %v556, 0
    %563 = vmatpush.msra.mxu0 0.0
    %564 = vmatpush.msra.mxu0 0.0
    %565 = vmatpush.msra.mxu0 0.0
    %566 = vmatpush.msra.mxu0 0.0
    %567 = vmatpush.msra.mxu0 0.0
    %568 = vmatpush.msra.mxu0 0.0
    %569 = vmatpush.msra.mxu0 0.0
    %570 = vmatpush.msra.mxu0 0.0
    %571 = vmatpush.msra.mxu0 0.0
    %572 = vmatpush.msra.mxu0 0.0
    %573 = vmatpush.msra.mxu0 0.0
    %574 = vmatpush.msra.mxu0 0.0
    %575 = vmatpush.msra.mxu0 %v553
    %576 = vmatpush.msra.mxu0 %v552
    %577 = vmatpush.msra.mxu0 %v551
    %578 = vmatpush.msra.mxu0 %v550
    %579 = vmatmul.f32.gmra.mxu0 %v558
    %v580 = vpop.f32.mrf.mxu0
    %v581 = vadd.f32 0.0, %v580
    %582 = vmatmul.f32.gmra.mxu0 %v561
    %v583 = vpop.f32.mrf.mxu0
    %v584 = vadd.f32 0.0, %v583
    %585 = vdwg.mxu0
    %586 = vset.pattern.permute.xlu0 4
    %587 = vperm.xlu0 %586, %v49
    %v588 = vpop.permute.xlu0 %587
    %590 = vset.pattern.permute.xlu0 4
    %591 = vperm.xlu0 %590, %v50
    %v592 = vpop.permute.xlu0 %591
    %v594 = vadd.f32 %v588, %v581
    %v595 = vadd.f32 %v592, %v584
    %v596 = vsel %vm95, %v594, -inf
    %v597 = vrot.slane %v596, 4
    %v598 = vmax.f32 %v596, %v597
    %v599 = vrot.slane %v598, 2
    %v600 = vmax.f32 %v598, %v599
    %v601 = vrot.slane %v600, 1
    %v602 = vmax.f32 %v600, %v601
    %v603 = vsub.f32 %v594, %v602
    %v604 = vmul.f32 %v603, 1.442695
    %v605 = vpow.pop %v604
    %v606 = vsel %vm95, %v605, 0.0
    %v607 = vrot.slane %v606, 4
    %v608 = vadd.f32 %v606, %v607
    %v609 = vrot.slane %v608, 2
    %v610 = vadd.f32 %v608, %v609
    %v611 = vrot.slane %v610, 1
    %v612 = vadd.f32 %v610, %v611
    %v613 = vrcp.pop %v612
    %v614 = vmul.f32 %v612, %v613
    %v615 = vsub.f32 2.0, %v614
    %v616 = vmul.f32 %v613, %v615
    %v617 = vmul.f32 %v605, %v616
    %v618 = vsub.f32 0.0, %v595
    %v619 = vmul.f32 %v618, 1.442695
    %v620 = vpow.pop %v619
    %v621 = vld [vmem:[%s0 + $0x4] sm:$0x1]
    %v622 = vperm.slane %v621, 0
    %v623 = vsub.f32 %v622, %v594
    %v625 = vrot.slane %v620, 4
    %v627 = vmul.f32 %v623, %v625
    %v628 = vmul.f32 %v620, 0.3989423
    %v629 = vmul.f32 %v627, -0.5
    %v630 = vmul.f32 %v629, %v627
    %v631 = vmul.f32 %v630, 1.442695
    %v632 = vpow.pop %v631
    %v634 = vrot.slane %v632, 4
    %v636 = vmul.f32 %v628, %v634
    %v637 = vmul.f32 %v617, %v636
    %v638 = vsel %vm95, %v637, 0.0
    %v639 = vrot.slane %v638, 4
    %v640 = vadd.f32 %v638, %v639
    %v641 = vrot.slane %v640, 2
    %v642 = vadd.f32 %v640, %v641
    %v643 = vrot.slane %v642, 1
    %v644 = vadd.f32 %v642, %v643
    %v645 = vadd.f32 %v644, 1e-10
    %v646 = vlog2.pop %v645
    %v647 = vmul.f32 %v646, 0.6931472
    %v648 = vadd.f32 %v525, %v647
    %649 = vset.pattern.permute.xlu0 4
    %650 = vperm.xlu0 %649, %v149
    %v651 = vpop.permute.xlu0 %650
    %653 = vset.pattern.permute.xlu0 4
    %654 = vperm.xlu0 %653, %v150
    %v655 = vpop.permute.xlu0 %654
    %657 = vset.pattern.permute.xlu0 4
    %658 = vperm.xlu0 %657, %v151
    %v659 = vpop.permute.xlu0 %658
    %661 = vset.pattern.permute.xlu0 4
    %662 = vperm.xlu0 %661, %v152
    %v663 = vpop.permute.xlu0 %662
    %v665 = vmul.f32 %v651, %v622
    %v666 = vmul.f32 %v655, %v622
    %v667 = vmul.f32 %v659, %v622
    %v668 = vmul.f32 %v663, %v622
    %v669 = vadd.f32 %v546, %v665
    %v670 = vadd.f32 %v547, %v666
    %v671 = vadd.f32 %v548, %v667
    %v672 = vadd.f32 %v549, %v668
    %v673 = vmax.f32 %v669, 0.0
    %v674 = vmax.f32 %v670, 0.0
    %v675 = vmax.f32 %v671, 0.0
    %v676 = vmax.f32 %v672, 0.0
    %s677 = scalar_lea.vmem %s4, 80
    %v678 = vld [vmem:[%s677] sm:$0xff]
    %v679 = vld [vmem:[%s677 + $0x8] sm:$0xf]
    %v681 = vsel %vm53, %v678, 0
    %v684 = vsel %vm53, %v679, 0
    %686 = vmatpush.msra.mxu0 0.0
    %687 = vmatpush.msra.mxu0 0.0
    %688 = vmatpush.msra.mxu0 0.0
    %689 = vmatpush.msra.mxu0 0.0
    %690 = vmatpush.msra.mxu0 0.0
    %691 = vmatpush.msra.mxu0 0.0
    %692 = vmatpush.msra.mxu0 0.0
    %693 = vmatpush.msra.mxu0 0.0
    %694 = vmatpush.msra.mxu0 0.0
    %695 = vmatpush.msra.mxu0 0.0
    %696 = vmatpush.msra.mxu0 0.0
    %697 = vmatpush.msra.mxu0 0.0
    %698 = vmatpush.msra.mxu0 %v676
    %699 = vmatpush.msra.mxu0 %v675
    %700 = vmatpush.msra.mxu0 %v674
    %701 = vmatpush.msra.mxu0 %v673
    %702 = vmatmul.f32.gmra.mxu0 %v681
    %v703 = vpop.f32.mrf.mxu0
    %v704 = vadd.f32 0.0, %v703
    %705 = vmatmul.f32.gmra.mxu0 %v684
    %v706 = vpop.f32.mrf.mxu0
    %v707 = vadd.f32 0.0, %v706
    %708 = vdwg.mxu0
    %709 = vset.pattern.permute.xlu0 5
    %710 = vperm.xlu0 %709, %v49
    %v711 = vpop.permute.xlu0 %710
    %713 = vset.pattern.permute.xlu0 5
    %714 = vperm.xlu0 %713, %v50
    %v715 = vpop.permute.xlu0 %714
    %v717 = vadd.f32 %v711, %v704
    %v718 = vadd.f32 %v715, %v707
    %v719 = vsel %vm95, %v717, -inf
    %v720 = vrot.slane %v719, 4
    %v721 = vmax.f32 %v719, %v720
    %v722 = vrot.slane %v721, 2
    %v723 = vmax.f32 %v721, %v722
    %v724 = vrot.slane %v723, 1
    %v725 = vmax.f32 %v723, %v724
    %v726 = vsub.f32 %v717, %v725
    %v727 = vmul.f32 %v726, 1.442695
    %v728 = vpow.pop %v727
    %v729 = vsel %vm95, %v728, 0.0
    %v730 = vrot.slane %v729, 4
    %v731 = vadd.f32 %v729, %v730
    %v732 = vrot.slane %v731, 2
    %v733 = vadd.f32 %v731, %v732
    %v734 = vrot.slane %v733, 1
    %v735 = vadd.f32 %v733, %v734
    %v736 = vrcp.pop %v735
    %v737 = vmul.f32 %v735, %v736
    %v738 = vsub.f32 2.0, %v737
    %v739 = vmul.f32 %v736, %v738
    %v740 = vmul.f32 %v728, %v739
    %v741 = vsub.f32 0.0, %v718
    %v742 = vmul.f32 %v741, 1.442695
    %v743 = vpow.pop %v742
    %v744 = vld [vmem:[%s0 + $0x5] sm:$0x1]
    %v745 = vperm.slane %v744, 0
    %v746 = vsub.f32 %v745, %v717
    %v748 = vrot.slane %v743, 4
    %v750 = vmul.f32 %v746, %v748
    %v751 = vmul.f32 %v743, 0.3989423
    %v752 = vmul.f32 %v750, -0.5
    %v753 = vmul.f32 %v752, %v750
    %v754 = vmul.f32 %v753, 1.442695
    %v755 = vpow.pop %v754
    %v757 = vrot.slane %v755, 4
    %v759 = vmul.f32 %v751, %v757
    %v760 = vmul.f32 %v740, %v759
    %v761 = vsel %vm95, %v760, 0.0
    %v762 = vrot.slane %v761, 4
    %v763 = vadd.f32 %v761, %v762
    %v764 = vrot.slane %v763, 2
    %v765 = vadd.f32 %v763, %v764
    %v766 = vrot.slane %v765, 1
    %v767 = vadd.f32 %v765, %v766
    %v768 = vadd.f32 %v767, 1e-10
    %v769 = vlog2.pop %v768
    %v770 = vmul.f32 %v769, 0.6931472
    %v771 = vadd.f32 %v648, %v770
    %772 = vset.pattern.permute.xlu0 5
    %773 = vperm.xlu0 %772, %v149
    %v774 = vpop.permute.xlu0 %773
    %776 = vset.pattern.permute.xlu0 5
    %777 = vperm.xlu0 %776, %v150
    %v778 = vpop.permute.xlu0 %777
    %780 = vset.pattern.permute.xlu0 5
    %781 = vperm.xlu0 %780, %v151
    %v782 = vpop.permute.xlu0 %781
    %784 = vset.pattern.permute.xlu0 5
    %785 = vperm.xlu0 %784, %v152
    %v786 = vpop.permute.xlu0 %785
    %v788 = vmul.f32 %v774, %v745
    %v789 = vmul.f32 %v778, %v745
    %v790 = vmul.f32 %v782, %v745
    %v791 = vmul.f32 %v786, %v745
    %v792 = vadd.f32 %v669, %v788
    %v793 = vadd.f32 %v670, %v789
    %v794 = vadd.f32 %v671, %v790
    %v795 = vadd.f32 %v672, %v791
    %v796 = vmax.f32 %v792, 0.0
    %v797 = vmax.f32 %v793, 0.0
    %v798 = vmax.f32 %v794, 0.0
    %v799 = vmax.f32 %v795, 0.0
    %s800 = scalar_lea.vmem %s4, 96
    %v801 = vld [vmem:[%s800] sm:$0xff]
    %v802 = vld [vmem:[%s800 + $0x8] sm:$0xf]
    %v804 = vsel %vm53, %v801, 0
    %v807 = vsel %vm53, %v802, 0
    %809 = vmatpush.msra.mxu0 0.0
    %810 = vmatpush.msra.mxu0 0.0
    %811 = vmatpush.msra.mxu0 0.0
    %812 = vmatpush.msra.mxu0 0.0
    %813 = vmatpush.msra.mxu0 0.0
    %814 = vmatpush.msra.mxu0 0.0
    %815 = vmatpush.msra.mxu0 0.0
    %816 = vmatpush.msra.mxu0 0.0
    %817 = vmatpush.msra.mxu0 0.0
    %818 = vmatpush.msra.mxu0 0.0
    %819 = vmatpush.msra.mxu0 0.0
    %820 = vmatpush.msra.mxu0 0.0
    %821 = vmatpush.msra.mxu0 %v799
    %822 = vmatpush.msra.mxu0 %v798
    %823 = vmatpush.msra.mxu0 %v797
    %824 = vmatpush.msra.mxu0 %v796
    %825 = vmatmul.f32.gmra.mxu0 %v804
    %v826 = vpop.f32.mrf.mxu0
    %v827 = vadd.f32 0.0, %v826
    %828 = vmatmul.f32.gmra.mxu0 %v807
    %v829 = vpop.f32.mrf.mxu0
    %v830 = vadd.f32 0.0, %v829
    %831 = vdwg.mxu0
    %832 = vset.pattern.permute.xlu0 6
    %833 = vperm.xlu0 %832, %v49
    %v834 = vpop.permute.xlu0 %833
    %836 = vset.pattern.permute.xlu0 6
    %837 = vperm.xlu0 %836, %v50
    %v838 = vpop.permute.xlu0 %837
    %v840 = vadd.f32 %v834, %v827
    %v841 = vadd.f32 %v838, %v830
    %v842 = vsel %vm95, %v840, -inf
    %v843 = vrot.slane %v842, 4
    %v844 = vmax.f32 %v842, %v843
    %v845 = vrot.slane %v844, 2
    %v846 = vmax.f32 %v844, %v845
    %v847 = vrot.slane %v846, 1
    %v848 = vmax.f32 %v846, %v847
    %v849 = vsub.f32 %v840, %v848
    %v850 = vmul.f32 %v849, 1.442695
    %v851 = vpow.pop %v850
    %v852 = vsel %vm95, %v851, 0.0
    %v853 = vrot.slane %v852, 4
    %v854 = vadd.f32 %v852, %v853
    %v855 = vrot.slane %v854, 2
    %v856 = vadd.f32 %v854, %v855
    %v857 = vrot.slane %v856, 1
    %v858 = vadd.f32 %v856, %v857
    %v859 = vrcp.pop %v858
    %v860 = vmul.f32 %v858, %v859
    %v861 = vsub.f32 2.0, %v860
    %v862 = vmul.f32 %v859, %v861
    %v863 = vmul.f32 %v851, %v862
    %v864 = vsub.f32 0.0, %v841
    %v865 = vmul.f32 %v864, 1.442695
    %v866 = vpow.pop %v865
    %v867 = vld [vmem:[%s0 + $0x6] sm:$0x1]
    %v868 = vperm.slane %v867, 0
    %v869 = vsub.f32 %v868, %v840
    %v871 = vrot.slane %v866, 4
    %v873 = vmul.f32 %v869, %v871
    %v874 = vmul.f32 %v866, 0.3989423
    %v875 = vmul.f32 %v873, -0.5
    %v876 = vmul.f32 %v875, %v873
    %v877 = vmul.f32 %v876, 1.442695
    %v878 = vpow.pop %v877
    %v880 = vrot.slane %v878, 4
    %v882 = vmul.f32 %v874, %v880
    %v883 = vmul.f32 %v863, %v882
    %v884 = vsel %vm95, %v883, 0.0
    %v885 = vrot.slane %v884, 4
    %v886 = vadd.f32 %v884, %v885
    %v887 = vrot.slane %v886, 2
    %v888 = vadd.f32 %v886, %v887
    %v889 = vrot.slane %v888, 1
    %v890 = vadd.f32 %v888, %v889
    %v891 = vadd.f32 %v890, 1e-10
    %v892 = vlog2.pop %v891
    %v893 = vmul.f32 %v892, 0.6931472
    %v894 = vadd.f32 %v771, %v893
    %895 = vset.pattern.permute.xlu0 6
    %896 = vperm.xlu0 %895, %v149
    %v897 = vpop.permute.xlu0 %896
    %899 = vset.pattern.permute.xlu0 6
    %900 = vperm.xlu0 %899, %v150
    %v901 = vpop.permute.xlu0 %900
    %903 = vset.pattern.permute.xlu0 6
    %904 = vperm.xlu0 %903, %v151
    %v905 = vpop.permute.xlu0 %904
    %907 = vset.pattern.permute.xlu0 6
    %908 = vperm.xlu0 %907, %v152
    %v909 = vpop.permute.xlu0 %908
    %v911 = vmul.f32 %v897, %v868
    %v912 = vmul.f32 %v901, %v868
    %v913 = vmul.f32 %v905, %v868
    %v914 = vmul.f32 %v909, %v868
    %v915 = vadd.f32 %v792, %v911
    %v916 = vadd.f32 %v793, %v912
    %v917 = vadd.f32 %v794, %v913
    %v918 = vadd.f32 %v795, %v914
    %v919 = vmax.f32 %v915, 0.0
    %v920 = vmax.f32 %v916, 0.0
    %v921 = vmax.f32 %v917, 0.0
    %v922 = vmax.f32 %v918, 0.0
    %s923 = scalar_lea.vmem %s4, 112
    %v924 = vld [vmem:[%s923] sm:$0xff]
    %v925 = vld [vmem:[%s923 + $0x8] sm:$0xf]
    %v927 = vsel %vm53, %v924, 0
    %v930 = vsel %vm53, %v925, 0
    %932 = vmatpush.msra.mxu0 0.0
    %933 = vmatpush.msra.mxu0 0.0
    %934 = vmatpush.msra.mxu0 0.0
    %935 = vmatpush.msra.mxu0 0.0
    %936 = vmatpush.msra.mxu0 0.0
    %937 = vmatpush.msra.mxu0 0.0
    %938 = vmatpush.msra.mxu0 0.0
    %939 = vmatpush.msra.mxu0 0.0
    %940 = vmatpush.msra.mxu0 0.0
    %941 = vmatpush.msra.mxu0 0.0
    %942 = vmatpush.msra.mxu0 0.0
    %943 = vmatpush.msra.mxu0 0.0
    %944 = vmatpush.msra.mxu0 %v922
    %945 = vmatpush.msra.mxu0 %v921
    %946 = vmatpush.msra.mxu0 %v920
    %947 = vmatpush.msra.mxu0 %v919
    %948 = vmatmul.f32.gmra.mxu0 %v927
    %v949 = vpop.f32.mrf.mxu0
    %v950 = vadd.f32 0.0, %v949
    %951 = vmatmul.f32.gmra.mxu0 %v930
    %v952 = vpop.f32.mrf.mxu0
    %v953 = vadd.f32 0.0, %v952
    %954 = vdwg.mxu0
    %955 = vset.pattern.permute.xlu0 7
    %956 = vperm.xlu0 %955, %v49
    %v957 = vpop.permute.xlu0 %956
    %959 = vset.pattern.permute.xlu0 7
    %960 = vperm.xlu0 %959, %v50
    %v961 = vpop.permute.xlu0 %960
    %v963 = vadd.f32 %v957, %v950
    %v964 = vadd.f32 %v961, %v953
    %v965 = vsel %vm95, %v963, -inf
    %v966 = vrot.slane %v965, 4
    %v967 = vmax.f32 %v965, %v966
    %v968 = vrot.slane %v967, 2
    %v969 = vmax.f32 %v967, %v968
    %v970 = vrot.slane %v969, 1
    %v971 = vmax.f32 %v969, %v970
    %v972 = vsub.f32 %v963, %v971
    %v973 = vmul.f32 %v972, 1.442695
    %v974 = vpow.pop %v973
    %v975 = vsel %vm95, %v974, 0.0
    %v976 = vrot.slane %v975, 4
    %v977 = vadd.f32 %v975, %v976
    %v978 = vrot.slane %v977, 2
    %v979 = vadd.f32 %v977, %v978
    %v980 = vrot.slane %v979, 1
    %v981 = vadd.f32 %v979, %v980
    %v982 = vrcp.pop %v981
    %v983 = vmul.f32 %v981, %v982
    %v984 = vsub.f32 2.0, %v983
    %v985 = vmul.f32 %v982, %v984
    %v986 = vmul.f32 %v974, %v985
    %v987 = vsub.f32 0.0, %v964
    %v988 = vmul.f32 %v987, 1.442695
    %v989 = vpow.pop %v988
    %v990 = vld [vmem:[%s0 + $0x7] sm:$0x1]
    %v991 = vperm.slane %v990, 0
    %v992 = vsub.f32 %v991, %v963
    %v994 = vrot.slane %v989, 4
    %v996 = vmul.f32 %v992, %v994
    %v997 = vmul.f32 %v989, 0.3989423
    %v998 = vmul.f32 %v996, -0.5
    %v999 = vmul.f32 %v998, %v996
    %v1000 = vmul.f32 %v999, 1.442695
    %v1001 = vpow.pop %v1000
    %v1003 = vrot.slane %v1001, 4
    %v1005 = vmul.f32 %v997, %v1003
    %v1006 = vmul.f32 %v986, %v1005
    %v1007 = vsel %vm95, %v1006, 0.0
    %v1008 = vrot.slane %v1007, 4
    %v1009 = vadd.f32 %v1007, %v1008
    %v1010 = vrot.slane %v1009, 2
    %v1011 = vadd.f32 %v1009, %v1010
    %v1012 = vrot.slane %v1011, 1
    %v1013 = vadd.f32 %v1011, %v1012
    %v1014 = vadd.f32 %v1013, 1e-10
    %v1015 = vlog2.pop %v1014
    %v1016 = vmul.f32 %v1015, 0.6931472
    %v1017 = vadd.f32 %v894, %v1016
    %1018 = vst [vmem:[#allocation2] sm:$0x1] %v1017
    // Predicated region
    $region22: #{tpu_custom_call.1} parent=1 // pred_check
      _
    $region23: #{tpu_custom_call.1} parent=1 // pred_check_branch
      %1020 = sbr.rel (0) target = $region25
    $region24: #{tpu_custom_call.1} parent=1 // pred_region
      %1022 = vsyncadd [#allocation3], 0
      %s1024 = sshll.u32 [#allocation2], 4
      %s1025 = int_to_ptr.vmem [resolvable:$true] %s1024
      %s1026 = sshll.u32 %s5, 4
      %s1027 = int_to_ptr.hbm [resolvable:$true] %s1026
      %1029 = dma.vmem_to_hbm [thread:$0]  %s1025, 16, %s1027, [#allocation3]
    $region25: #{tpu_custom_call.1} parent=1 // pred_fallthru
      _
    // Predicated region
    $region26: #{tpu_custom_call.1} parent=1 // pred_check
      _
    $region27: #{tpu_custom_call.1} parent=1 // pred_check_branch
      %1031 = sbr.rel (0) target = $region29
    $region28: #{tpu_custom_call.1} parent=1 // pred_region
      %1033 = dma.done [#allocation3], 16
    $region29: #{tpu_custom_call.1} parent=1 // pred_fallthru
      _
    %1034 = vsyncpa [#allocation3], 1

</llo_original>
